<compile_context>
chip_gen: v7x
topology: tpu7x:2x2x1
jax: 0.10.0
libtpu: 0.0.40
codegen_flags: <defaults>
</compile_context>

<pallas_src>
import jax
import jax.numpy as jnp
from jax.experimental import pallas as pl
from jax.experimental.pallas import tpu as pltpu

EPS = 1e-5                      # torch.nn.LayerNorm default eps
COMPUTE_DTYPE = jnp.bfloat16    # MXU operand / h_E storage dtype (f32 accumulation)

MATMUL_WEIGHTS = ("w1s", "w1n", "w1e", "w2", "w3", "wi", "wo",
                  "w11s", "w11n", "w11e", "w12", "w13")


def _layernorm(x, gamma, beta):
    mu = jnp.mean(x, axis=-1, keepdims=True)
    var = jnp.mean((x - mu) ** 2, axis=-1, keepdims=True)
    return (x - mu) * jax.lax.rsqrt(var + EPS) * gamma + beta


def _neighbor_projection(hv_all, w_nbr_ref, eidx):
    """In-kernel gather+projection: one_hot(E_idx) @ (h_V @ W_nbr).

    hv_all: [N, H] f32 (full per-batch node features, grid-invariant block)
    eidx:   [T, K] int32
    Returns [T*K, H] f32 — the W_nbr projection of each neighbour's features.
    """
    f32 = jnp.float32
    T, K = eidx.shape
    N, _ = hv_all.shape
    q = jnp.dot(hv_all.astype(COMPUTE_DTYPE), w_nbr_ref[...],
                preferred_element_type=f32).astype(COMPUTE_DTYPE)        # [N, H]
    iota_n = jax.lax.broadcasted_iota(jnp.int32, (T, K, N), 2)
    onehot = (eidx[:, :, None] == iota_n).astype(f32)                    # [T, K, N]
    onehot = onehot.reshape(T * K, N).astype(COMPUTE_DTYPE)              # no-op reshape (K % 8 == 0)
    return jnp.dot(onehot, q, preferred_element_type=f32)                # [T*K, H] f32


def _node_update_kernel(hv_ref, he_ref, eidx_ref, mask_at_ref, mask_v_ref,
                        w1s_ref, w1n_ref, w1e_ref, w2_ref, w3_ref,
                        wi_ref, wo_ref, vecs_ref, bi_ref, out_ref):
    f32 = jnp.float32
    bf = COMPUTE_DTYPE
    T, K = eidx_ref.shape
    _, H = hv_ref.shape
    TK = T * K

    n0 = pl.multiple_of(pl.program_id(1) * T, 8)
    hv_all = hv_ref[...]                              # [N, H] f32 (pre-update h_V)
    hv_t = hv_ref[pl.ds(n0, T), :]                    # [T, H] f32, this node tile
    he = he_ref[...]                                  # [TK, H] bf16
    vecs = vecs_ref[...]                              # [8, H] f32 packed vectors
    b1, b2, b3 = vecs[0:1], vecs[1:2], vecs[2:3]      # (w3/b3 pre-scaled by 1/scale)
    g1, be1, bo, g2, be2 = vecs[3:4], vecs[4:5], vecs[5:6], vecs[6:7], vecs[7:8]

    # W1 on cat([h_V_i, h_E_ij, h_V_j]) realized as three split projections.
    s = jnp.dot(hv_t.astype(bf), w1s_ref[...], preferred_element_type=f32) + b1   # [T, H]
    nbr = _neighbor_projection(hv_all, w1n_ref, eidx_ref[...])                    # [TK, H]
    m = jnp.dot(he, w1e_ref[...], preferred_element_type=f32) + nbr               # [TK, H]
    m = jnp.maximum(m.reshape(T, K, H) + s[:, None, :], 0.0).reshape(TK, H)       # ReLU
    m = jnp.maximum(
        jnp.dot(m.astype(bf), w2_ref[...], preferred_element_type=f32) + b2, 0.0)
    m = jnp.dot(m.astype(bf), w3_ref[...], preferred_element_type=f32) + b3

    # masked sum over K neighbours (1/scale already folded into w3/b3)
    dh = jnp.sum(m.reshape(T, K, H) * mask_at_ref[...][:, :, None], axis=1)       # [T, H]
    x = _layernorm(hv_t + dh, g1, be1)

    # position-wise feed forward (H -> 4H -> H)
    ff = jnp.maximum(
        jnp.dot(x.astype(bf), wi_ref[...], preferred_element_type=f32) + bi_ref[...], 0.0)
    ff = jnp.dot(ff.astype(bf), wo_ref[...], preferred_element_type=f32) + bo
    x = _layernorm(x + ff, g2, be2)

    out_ref[...] = (x * mask_v_ref[...]).astype(out_ref.dtype)


def _edge_update_kernel(hv_ref, he_ref, eidx_ref,
                        w11s_ref, w11n_ref, w11e_ref, w12_ref, w13_ref,
                        vecs_ref, out_ref):
    f32 = jnp.float32
    bf = COMPUTE_DTYPE
    T, K = eidx_ref.shape
    _, H = hv_ref.shape
    TK = T * K

    n0 = pl.multiple_of(pl.program_id(1) * T, 8)
    hv_all = hv_ref[...]                              # [N, H] f32 (updated, masked h_V)
    hv_t = hv_ref[pl.ds(n0, T), :]
    he = he_ref[...]                                  # [TK, H] bf16
    vecs = vecs_ref[...]
    b11, b12, b13, g3, be3 = vecs[0:1], vecs[1:2], vecs[2:3], vecs[3:4], vecs[4:5]

    s = jnp.dot(hv_t.astype(bf), w11s_ref[...], preferred_element_type=f32) + b11
    nbr = _neighbor_projection(hv_all, w11n_ref, eidx_ref[...])
    m = jnp.dot(he, w11e_ref[...], preferred_element_type=f32) + nbr
    m = jnp.maximum(m.reshape(T, K, H) + s[:, None, :], 0.0).reshape(TK, H)
    m = jnp.maximum(
        jnp.dot(m.astype(bf), w12_ref[...], preferred_element_type=f32) + b12, 0.0)
    m = jnp.dot(m.astype(bf), w13_ref[...], preferred_element_type=f32) + b13

    out_ref[...] = _layernorm(he.astype(f32) + m, g3, be3).astype(out_ref.dtype)  # no mask (matches ref)


# ---------------------------------------------------------------------------
# VMEM / tiling plan
# ---------------------------------------------------------------------------

def _vmem_budget_and_limit():
    try:
        cap = int(pltpu.get_tpu_info().vmem_capacity_bytes)
    except Exception:
        cap = 64 * 1024 * 1024          # conservative fallback (v7x per-TC VMEM)
    limit = min((cap * 3) // 4, 112 * 1024 * 1024)
    return int(limit * 0.8), int(limit)


def _vmem_bytes_estimate(tile_n, N, K, H):
    tk = tile_n * K
    n_pad = max(N, 128)
    # streamed blocks, double-buffered by the Pallas pipeline
    stream = 2 * (tk * H * 2            # h_E input tile (bf16)
                  + tk * H * 2          # h_E output tile (edge kernel, bf16)
                  + N * H * 4           # full per-batch h_V (f32)
                  + 3 * tile_n * 128 * 4  # E_idx + mask_attend + mask_v (lane padded)
                  + tile_n * H * 4)     # h_V output tile (f32)
    weights = 2 * (13 * H * H * 2 + 9 * H * 4)   # node-kernel weights, double-buffered
    scratch = (2 * tk * H * 4           # f32 message intermediates
               + 2 * tk * n_pad * 4     # one-hot build (compare / relayout)
               + N * H * 4              # projected neighbour features
               + tile_n * 4 * H * 4)    # FFN hidden
    return stream + weights + scratch


def _pick_tile_n(B, N, K, H, budget):
    if N % 8 != 0:
        return N                        # full-dim block (exempt from (8,128) rule)
    cands = [t for t in range(8, N + 1, 8) if N % t == 0]
    if not cands:
        return N
    fits = [t for t in cands if _vmem_bytes_estimate(t, N, K, H) <= budget]
    if not fits:
        return cands[0]
    t = max(fits)
    if B * (N // t) < 2:                # keep >=2 grid steps for v7x's two TensorCores
        two_step = [s for s in fits if B * (N // s) >= 2]
        if two_step:
            t = max(two_step)
    return t


# ---------------------------------------------------------------------------
# pallas_call wrappers
# ---------------------------------------------------------------------------

def _full_spec(arr):
    nd = arr.ndim

    def imap(b, n):
        return (0,) * nd

    return pl.BlockSpec(arr.shape, imap)


def node_update(h_V, he_flat, E_idx, mask_attend, mask_v, p, tile_n, vmem_limit):
    B, N, H = h_V.shape
    K = E_idx.shape[-1]
    T = tile_n
    weights = (p["w1s"], p["w1n"], p["w1e"], p["w2"], p["w3"],
               p["wi"], p["wo"], p["node_vecs"], p["bi"])
    in_specs = ([pl.BlockSpec((None, N, H), lambda b, n: (b, 0, 0)),       # full h_V per batch
                 pl.BlockSpec((None, T * K, H), lambda b, n: (b, n, 0)),   # h_E tile
                 pl.BlockSpec((None, T, K), lambda b, n: (b, n, 0)),       # E_idx tile
                 pl.BlockSpec((None, T, K), lambda b, n: (b, n, 0)),       # mask_attend tile
                 pl.BlockSpec((None, T, 1), lambda b, n: (b, n, 0))]       # node mask tile
                + [_full_spec(w) for w in weights])
    return pl.pallas_call(
        _node_update_kernel,
        out_shape=jax.ShapeDtypeStruct((B, N, H), jnp.float32),
        grid=(B, N // T),
        in_specs=in_specs,
        out_specs=pl.BlockSpec((None, T, H), lambda b, n: (b, n, 0)),
        compiler_params=pltpu.CompilerParams(
            dimension_semantics=("parallel", "parallel"),
            vmem_limit_bytes=vmem_limit),
    )(h_V, he_flat, E_idx, mask_attend, mask_v, *weights)


def edge_update(h_V, he_flat, E_idx, p, tile_n, vmem_limit):
    B, NK, H = he_flat.shape
    N = h_V.shape[1]
    K = E_idx.shape[-1]
    T = tile_n
    weights = (p["w11s"], p["w11n"], p["w11e"], p["w12"], p["w13"], p["edge_vecs"])
    in_specs = ([pl.BlockSpec((None, N, H), lambda b, n: (b, 0, 0)),
                 pl.BlockSpec((None, T * K, H), lambda b, n: (b, n, 0)),
                 pl.BlockSpec((None, T, K), lambda b, n: (b, n, 0))]
                + [_full_spec(w) for w in weights])
    return pl.pallas_call(
        _edge_update_kernel,
        out_shape=jax.ShapeDtypeStruct((B, NK, H), he_flat.dtype),
        grid=(B, N // T),
        in_specs=in_specs,
        out_specs=pl.BlockSpec((None, T * K, H), lambda b, n: (b, n, 0)),
        input_output_aliases={1: 0},   # update the edge state in place
        compiler_params=pltpu.CompilerParams(
            dimension_semantics=("parallel", "parallel"),
            vmem_limit_bytes=vmem_limit),
    )(h_V, he_flat, E_idx, *weights)


# ---------------------------------------------------------------------------
# Parameter prep + forward
# ---------------------------------------------------------------------------

def _prepare_layer_params(p, scale):
    """Fold 1/scale into W3/b3, cast matmul weights to bf16, pack bias vectors.

    NOTE: when loading real torch weights, W1/W11 must be split so that
    (w1s, w1e, w1n) correspond to the cat([h_V_expand, h_E, h_V_neighbors])
    row-blocks (same for w11*), stored as [in, out].
    """
    f32 = jnp.float32
    q = {k: jnp.asarray(v, f32) for k, v in p.items()}
    H = q["b1"].shape[-1]
    row = lambda v: v.reshape(1, H)
    inv = 1.0 / float(scale)
    out = {k: q[k].astype(COMPUTE_DTYPE) for k in MATMUL_WEIGHTS}
    out["w3"] = (q["w3"] * inv).astype(COMPUTE_DTYPE)
    out["bi"] = q["bi"].reshape(1, -1)
    out["node_vecs"] = jnp.concatenate(
        [row(q["b1"]), row(q["b2"]), row(q["b3"]) * inv, row(q["g1"]), row(q["be1"]),
         row(q["bo"]), row(q["g2"]), row(q["be2"])], axis=0)            # [8, H]
    out["edge_vecs"] = jnp.concatenate(
        [row(q["b11"]), row(q["b12"]), row(q["b13"]), row(q["g3"]), row(q["be3"]),
         jnp.zeros((3, H), f32)], axis=0)                                # [8, H]
    return out


def mpnn_net_forward(h_V, h_E, E_idx, X, S, mask, layer_params, scale, tile_n=None):
    """Forward pass of MpnnNet with use_ipmp=False.  Returns the updated h_V."""
    del X, S  # only used by the InvariantPointMessagePassing branch
    B, N, H = h_V.shape
    K0 = E_idx.shape[-1]
    out_dtype = h_V.dtype

    mask = mask.astype(jnp.float32)
    E_idx = E_idx.astype(jnp.int32)

    # mask_attend = gather_nodes(mask[..., None], E_idx).squeeze(-1) * mask[..., None]
    mask_nbr = jnp.take_along_axis(mask, E_idx.reshape(B, N * K0), axis=1).reshape(B, N, K0)
    mask_attend = mask[:, :, None] * mask_nbr                            # [B, N, K]
    mask_v = mask[:, :, None]                                            # [B, N, 1]

    h_E = h_E.reshape(B, N, K0, H)

    # pad K to a multiple of 8 (zero mask) so in-kernel reshapes stay layout no-ops
    K = -(-K0 // 8) * 8
    if K != K0:
        pad = K - K0
        E_idx = jnp.pad(E_idx, ((0, 0), (0, 0), (0, pad)))
        mask_attend = jnp.pad(mask_attend, ((0, 0), (0, 0), (0, pad)))
        h_E = jnp.pad(h_E, ((0, 0), (0, 0), (0, pad), (0, 0)))

    h_V = h_V.astype(jnp.float32)
    he_flat = h_E.reshape(B, N * K, H).astype(COMPUTE_DTYPE)

    budget, vmem_limit = _vmem_budget_and_limit()
    if tile_n is None:
        tile_n = _pick_tile_n(B, N, K, H, budget)
    assert N % tile_n == 0, "tile_n must divide N"

    prepped = [_prepare_layer_params(p, scale) for p in layer_params]
    for p in prepped:
        h_V = node_update(h_V, he_flat, E_idx, mask_attend, mask_v, p, tile_n, vmem_limit)
        he_flat = edge_update(h_V, he_flat, E_idx, p, tile_n, vmem_limit)
    return h_V.astype(out_dtype)


def init_layer_params(key, H):
    ks = jax.random.split(key, 12)

    def lin_w(k, fi, fo):
        return jax.random.normal(k, (fi, fo), jnp.float32) / jnp.sqrt(float(fi))

    zeros = lambda n: jnp.zeros((1, n), jnp.float32)
    ones = lambda n: jnp.ones((1, n), jnp.float32)
    return dict(
        # node message MLP (W1: 3H->H split into [self, edge, neighbour] blocks, W2, W3)
        w1s=lin_w(ks[0], H, H), w1e=lin_w(ks[1], H, H), w1n=lin_w(ks[2], H, H), b1=zeros(H),
        w2=lin_w(ks[3], H, H), b2=zeros(H),
        w3=lin_w(ks[4], H, H), b3=zeros(H),
        g1=ones(H), be1=zeros(H),
        # position-wise FFN
        wi=lin_w(ks[5], H, 4 * H), bi=zeros(4 * H),
        wo=lin_w(ks[6], 4 * H, H), bo=zeros(H),
        g2=ones(H), be2=zeros(H),
        # edge update MLP (W11: 3H->H split, W12, W13) + norm3
        w11s=lin_w(ks[7], H, H), w11e=lin_w(ks[8], H, H), w11n=lin_w(ks[9], H, H), b11=zeros(H),
        w12=lin_w(ks[10], H, H), b12=zeros(H),
        w13=lin_w(ks[11], H, H), b13=zeros(H),
        g3=ones(H), be3=zeros(H),
    )


if __name__ == "__main__":
    # hidden_dim=128 matches the module default and keeps every block lane-dense.
    B, N, K, H = 2, 32, 8, 128
    num_mpnn_layers = 3
    k_neighbors = K  # MPNNLayer(scale=k_neighbors)

    key = jax.random.PRNGKey(0)
    k_hv, k_he, k_idx, k_x, k_s, k_m, k_p = jax.random.split(key, 7)

    h_V = jax.random.normal(k_hv, (B, N, H), jnp.float32)
    h_E = jax.random.normal(k_he, (B, N, K, H), jnp.float32)
    E_idx = jax.random.randint(k_idx, (B, N, K), 0, N, jnp.int32)
    X = jax.random.normal(k_x, (B, N, 4, 3), jnp.float32)        # backbone coords (unused here)
    S = jax.random.randint(k_s, (B, N), 0, 20, jnp.int32)        # sequence tokens (unused here)
    mask = (jax.random.uniform(k_m, (B, N)) > 0.1).astype(jnp.float32)

    layer_params = [init_layer_params(jax.random.fold_in(k_p, i), H)
                    for i in range(num_mpnn_layers)]

    out = mpnn_net_forward(h_V, h_E, E_idx, X, S, mask, layer_params,
                           scale=float(k_neighbors))
    jax.block_until_ready(out)
    assert out.shape == (B, N, H)
    assert bool(jnp.all(jnp.isfinite(out)))
    print("KERNEL_OK")
</pallas_src>

<mosaic_0001>
module attributes {stable_mosaic.version = 11 : i64} {
  func.func @_node_update_kernel(%arg0: i32, %arg1: i32, %arg2: memref<1x32x128xf32, #tpu.memory_space<vmem>>, %arg3: memref<1x256x128xbf16, #tpu.memory_space<vmem>>, %arg4: memref<1x32x8xi32, #tpu.memory_space<vmem>>, %arg5: memref<1x32x8xf32, #tpu.memory_space<vmem>>, %arg6: memref<1x32x1xf32, #tpu.memory_space<vmem>>, %arg7: memref<128x128xbf16, #tpu.memory_space<vmem>>, %arg8: memref<128x128xbf16, #tpu.memory_space<vmem>>, %arg9: memref<128x128xbf16, #tpu.memory_space<vmem>>, %arg10: memref<128x128xbf16, #tpu.memory_space<vmem>>, %arg11: memref<128x128xbf16, #tpu.memory_space<vmem>>, %arg12: memref<128x512xbf16, #tpu.memory_space<vmem>>, %arg13: memref<512x128xbf16, #tpu.memory_space<vmem>>, %arg14: memref<8x128xf32, #tpu.memory_space<vmem>>, %arg15: memref<1x512xf32, #tpu.memory_space<vmem>>, %arg16: memref<1x32x128xf32, #tpu.memory_space<vmem>>) attributes {dimension_semantics = [#tpu.dimension_semantics<parallel>, #tpu.dimension_semantics<parallel>], iteration_bounds = array<i64: 2, 1>, scalar_prefetch = 0 : i64, scratch_operands = 0 : i64, tpu.core_type = #tpu.core_type<tc>, window_params = [{transform_indices = @transform_0, window_bounds = array<i64: 1, 32, 128>}, {transform_indices = @transform_1, window_bounds = array<i64: 1, 256, 128>}, {transform_indices = @transform_2, window_bounds = array<i64: 1, 32, 8>}, {transform_indices = @transform_3, window_bounds = array<i64: 1, 32, 8>}, {transform_indices = @transform_4, window_bounds = array<i64: 1, 32, 1>}, {pipeline_mode = #tpu.pipeline_mode<synchronous>, transform_indices = @transform_5, window_bounds = array<i64: 128, 128>}, {pipeline_mode = #tpu.pipeline_mode<synchronous>, transform_indices = @transform_6, window_bounds = array<i64: 128, 128>}, {pipeline_mode = #tpu.pipeline_mode<synchronous>, transform_indices = @transform_7, window_bounds = array<i64: 128, 128>}, {pipeline_mode = #tpu.pipeline_mode<synchronous>, transform_indices = @transform_8, window_bounds = array<i64: 128, 128>}, {pipeline_mode = #tpu.pipeline_mode<synchronous>, transform_indices = @transform_9, window_bounds = array<i64: 128, 128>}, {pipeline_mode = #tpu.pipeline_mode<synchronous>, transform_indices = @transform_10, window_bounds = array<i64: 128, 512>}, {pipeline_mode = #tpu.pipeline_mode<synchronous>, transform_indices = @transform_11, window_bounds = array<i64: 512, 128>}, {pipeline_mode = #tpu.pipeline_mode<synchronous>, transform_indices = @transform_12, window_bounds = array<i64: 8, 128>}, {pipeline_mode = #tpu.pipeline_mode<synchronous>, transform_indices = @transform_13, window_bounds = array<i64: 1, 512>}, {transform_indices = @transform_14, window_bounds = array<i64: 1, 32, 128>}]} {
    %c32_i32 = arith.constant 32 : i32
    %0 = arith.muli %arg1, %c32_i32 : i32
    %1 = tpu.assume_multiple %0, 8 : i32
    %c0 = arith.constant 0 : index
    %c0_0 = arith.constant 0 : index
    %c0_1 = arith.constant 0 : index
    %2 = vector.load %arg2[%c0, %c0_0, %c0_1] : memref<1x32x128xf32, #tpu.memory_space<vmem>>, vector<1x32x128xf32>
    %3 = vector.shape_cast %2 : vector<1x32x128xf32> to vector<32x128xf32>
    %c0_2 = arith.constant 0 : index
    %4 = arith.index_cast %1 : i32 to index
    %c0_3 = arith.constant 0 : index
    %5 = vector.load %arg2[%c0_2, %4, %c0_3] : memref<1x32x128xf32, #tpu.memory_space<vmem>>, vector<1x32x128xf32>
    %6 = vector.shape_cast %5 : vector<1x32x128xf32> to vector<32x128xf32>
    %c0_4 = arith.constant 0 : index
    %c0_5 = arith.constant 0 : index
    %c0_6 = arith.constant 0 : index
    %7 = vector.load %arg3[%c0_4, %c0_5, %c0_6] : memref<1x256x128xbf16, #tpu.memory_space<vmem>>, vector<1x256x128xbf16>
    %8 = vector.shape_cast %7 : vector<1x256x128xbf16> to vector<256x128xbf16>
    %c0_7 = arith.constant 0 : index
    %c0_8 = arith.constant 0 : index
    %9 = vector.load %arg14[%c0_7, %c0_8] : memref<8x128xf32, #tpu.memory_space<vmem>>, vector<8x128xf32>
    %10 = vector.extract_strided_slice %9 {offsets = [0, 0], sizes = [1, 128], strides = [1, 1]} : vector<8x128xf32> to vector<1x128xf32>
    %11 = vector.extract_strided_slice %9 {offsets = [1, 0], sizes = [1, 128], strides = [1, 1]} : vector<8x128xf32> to vector<1x128xf32>
    %12 = vector.extract_strided_slice %9 {offsets = [2, 0], sizes = [1, 128], strides = [1, 1]} : vector<8x128xf32> to vector<1x128xf32>
    %13 = vector.extract_strided_slice %9 {offsets = [3, 0], sizes = [1, 128], strides = [1, 1]} : vector<8x128xf32> to vector<1x128xf32>
    %14 = vector.extract_strided_slice %9 {offsets = [4, 0], sizes = [1, 128], strides = [1, 1]} : vector<8x128xf32> to vector<1x128xf32>
    %15 = vector.extract_strided_slice %9 {offsets = [5, 0], sizes = [1, 128], strides = [1, 1]} : vector<8x128xf32> to vector<1x128xf32>
    %16 = vector.extract_strided_slice %9 {offsets = [6, 0], sizes = [1, 128], strides = [1, 1]} : vector<8x128xf32> to vector<1x128xf32>
    %17 = vector.extract_strided_slice %9 {offsets = [7, 0], sizes = [1, 128], strides = [1, 1]} : vector<8x128xf32> to vector<1x128xf32>
    %18 = arith.truncf %6 : vector<32x128xf32> to vector<32x128xbf16>
    %c0_9 = arith.constant 0 : index
    %c0_10 = arith.constant 0 : index
    %19 = vector.load %arg7[%c0_9, %c0_10] : memref<128x128xbf16, #tpu.memory_space<vmem>>, vector<128x128xbf16>
    %cst = arith.constant dense<0.000000e+00> : vector<32x128xf32>
    %20 = tpu.matmul %18, %19, %cst {dimension_numbers = #tpu.dot_dimension_numbers<[1], [0], [0], [1], [0, 0, 1, 1], [], []>} : vector<32x128xbf16>, vector<128x128xbf16>, vector<32x128xf32> -> vector<32x128xf32>
    %21 = vector.broadcast %10 : vector<1x128xf32> to vector<32x128xf32>
    %22 = arith.addf %20, %21 : vector<32x128xf32>
    %c0_11 = arith.constant 0 : index
    %c0_12 = arith.constant 0 : index
    %c0_13 = arith.constant 0 : index
    %23 = vector.load %arg4[%c0_11, %c0_12, %c0_13] : memref<1x32x8xi32, #tpu.memory_space<vmem>>, vector<1x32x8xi32>
    %24 = vector.shape_cast %23 : vector<1x32x8xi32> to vector<32x8xi32>
    %25 = arith.truncf %3 : vector<32x128xf32> to vector<32x128xbf16>
    %c0_14 = arith.constant 0 : index
    %c0_15 = arith.constant 0 : index
    %26 = vector.load %arg8[%c0_14, %c0_15] : memref<128x128xbf16, #tpu.memory_space<vmem>>, vector<128x128xbf16>
    %cst_16 = arith.constant dense<0.000000e+00> : vector<32x128xf32>
    %27 = tpu.matmul %25, %26, %cst_16 {dimension_numbers = #tpu.dot_dimension_numbers<[1], [0], [0], [1], [0, 0, 1, 1], [], []>} : vector<32x128xbf16>, vector<128x128xbf16>, vector<32x128xf32> -> vector<32x128xf32>
    %28 = arith.truncf %27 : vector<32x128xf32> to vector<32x128xbf16>
    %29 = tpu.iota {dimensions = array<i32: 2>} : vector<32x8x32xi32>
    %30 = vector.shape_cast %24 : vector<32x8xi32> to vector<32x8x1xi32>
    %31 = vector.broadcast %30 : vector<32x8x1xi32> to vector<32x8x32xi32>
    %32 = arith.cmpi eq, %31, %29 : vector<32x8x32xi32>
    %33 = arith.extui %32 : vector<32x8x32xi1> to vector<32x8x32xi32>
    %34 = arith.sitofp %33 : vector<32x8x32xi32> to vector<32x8x32xf32>
    %35 = vector.shape_cast %34 : vector<32x8x32xf32> to vector<256x32xf32>
    %36 = arith.truncf %35 : vector<256x32xf32> to vector<256x32xbf16>
    %cst_17 = arith.constant dense<0.000000e+00> : vector<256x128xf32>
    %37 = tpu.matmul %36, %28, %cst_17 {dimension_numbers = #tpu.dot_dimension_numbers<[1], [0], [0], [1], [0, 0, 1, 1], [], []>} : vector<256x32xbf16>, vector<32x128xbf16>, vector<256x128xf32> -> vector<256x128xf32>
    %c0_18 = arith.constant 0 : index
    %c0_19 = arith.constant 0 : index
    %38 = vector.load %arg9[%c0_18, %c0_19] : memref<128x128xbf16, #tpu.memory_space<vmem>>, vector<128x128xbf16>
    %cst_20 = arith.constant dense<0.000000e+00> : vector<256x128xf32>
    %39 = tpu.matmul %8, %38, %cst_20 {dimension_numbers = #tpu.dot_dimension_numbers<[1], [0], [0], [1], [0, 0, 1, 1], [], []>} : vector<256x128xbf16>, vector<128x128xbf16>, vector<256x128xf32> -> vector<256x128xf32>
    %40 = arith.addf %39, %37 : vector<256x128xf32>
    %41 = vector.shape_cast %40 : vector<256x128xf32> to vector<32x8x128xf32>
    %42 = vector.shape_cast %22 : vector<32x128xf32> to vector<32x1x128xf32>
    %43 = vector.broadcast %42 : vector<32x1x128xf32> to vector<32x8x128xf32>
    %44 = arith.addf %41, %43 : vector<32x8x128xf32>
    %cst_21 = arith.constant 0.000000e+00 : f32
    %45 = vector.broadcast %cst_21 : f32 to vector<32x8x128xf32>
    %46 = arith.maximumf %44, %45 : vector<32x8x128xf32>
    %47 = vector.shape_cast %46 : vector<32x8x128xf32> to vector<256x128xf32>
    %48 = arith.truncf %47 : vector<256x128xf32> to vector<256x128xbf16>
    %c0_22 = arith.constant 0 : index
    %c0_23 = arith.constant 0 : index
    %49 = vector.load %arg10[%c0_22, %c0_23] : memref<128x128xbf16, #tpu.memory_space<vmem>>, vector<128x128xbf16>
    %cst_24 = arith.constant dense<0.000000e+00> : vector<256x128xf32>
    %50 = tpu.matmul %48, %49, %cst_24 {dimension_numbers = #tpu.dot_dimension_numbers<[1], [0], [0], [1], [0, 0, 1, 1], [], []>} : vector<256x128xbf16>, vector<128x128xbf16>, vector<256x128xf32> -> vector<256x128xf32>
    %51 = vector.broadcast %11 : vector<1x128xf32> to vector<256x128xf32>
    %52 = arith.addf %50, %51 : vector<256x128xf32>
    %cst_25 = arith.constant 0.000000e+00 : f32
    %53 = vector.broadcast %cst_25 : f32 to vector<256x128xf32>
    %54 = arith.maximumf %52, %53 : vector<256x128xf32>
    %55 = arith.truncf %54 : vector<256x128xf32> to vector<256x128xbf16>
    %c0_26 = arith.constant 0 : index
    %c0_27 = arith.constant 0 : index
    %56 = vector.load %arg11[%c0_26, %c0_27] : memref<128x128xbf16, #tpu.memory_space<vmem>>, vector<128x128xbf16>
    %cst_28 = arith.constant dense<0.000000e+00> : vector<256x128xf32>
    %57 = tpu.matmul %55, %56, %cst_28 {dimension_numbers = #tpu.dot_dimension_numbers<[1], [0], [0], [1], [0, 0, 1, 1], [], []>} : vector<256x128xbf16>, vector<128x128xbf16>, vector<256x128xf32> -> vector<256x128xf32>
    %58 = vector.broadcast %12 : vector<1x128xf32> to vector<256x128xf32>
    %59 = arith.addf %57, %58 : vector<256x128xf32>
    %60 = vector.shape_cast %59 : vector<256x128xf32> to vector<32x8x128xf32>
    %c0_29 = arith.constant 0 : index
    %c0_30 = arith.constant 0 : index
    %c0_31 = arith.constant 0 : index
    %61 = vector.load %arg5[%c0_29, %c0_30, %c0_31] : memref<1x32x8xf32, #tpu.memory_space<vmem>>, vector<1x32x8xf32>
    %62 = vector.shape_cast %61 : vector<1x32x8xf32> to vector<32x8xf32>
    %63 = vector.shape_cast %62 : vector<32x8xf32> to vector<32x8x1xf32>
    %64 = vector.broadcast %63 : vector<32x8x1xf32> to vector<32x8x128xf32>
    %65 = arith.mulf %60, %64 : vector<32x8x128xf32>
    %cst_32 = arith.constant dense<0.000000e+00> : vector<32x128xf32>
    %66 = vector.multi_reduction <add>, %65, %cst_32 [1] : vector<32x8x128xf32> to vector<32x128xf32>
    %67 = arith.addf %6, %66 : vector<32x128xf32>
    %cst_33 = arith.constant dense<0.000000e+00> : vector<32xf32>
    %68 = vector.multi_reduction <add>, %67, %cst_33 [1] : vector<32x128xf32> to vector<32xf32>
    %69 = vector.shape_cast %68 : vector<32xf32> to vector<32x1xf32>
    %cst_34 = arith.constant 1.280000e+02 : f32
    %70 = vector.broadcast %cst_34 : f32 to vector<32x1xf32>
    %71 = arith.divf %69, %70 : vector<32x1xf32>
    %72 = vector.broadcast %71 : vector<32x1xf32> to vector<32x128xf32>
    %73 = arith.subf %67, %72 : vector<32x128xf32>
    %74 = arith.mulf %73, %73 : vector<32x128xf32>
    %cst_35 = arith.constant dense<0.000000e+00> : vector<32xf32>
    %75 = vector.multi_reduction <add>, %74, %cst_35 [1] : vector<32x128xf32> to vector<32xf32>
    %76 = vector.shape_cast %75 : vector<32xf32> to vector<32x1xf32>
    %cst_36 = arith.constant 1.280000e+02 : f32
    %77 = vector.broadcast %cst_36 : f32 to vector<32x1xf32>
    %78 = arith.divf %76, %77 : vector<32x1xf32>
    %79 = vector.broadcast %71 : vector<32x1xf32> to vector<32x128xf32>
    %80 = arith.subf %67, %79 : vector<32x128xf32>
    %cst_37 = arith.constant 9.99999974E-6 : f32
    %81 = vector.broadcast %cst_37 : f32 to vector<32x1xf32>
    %82 = arith.addf %78, %81 : vector<32x1xf32>
    %83 = math.rsqrt %82 : vector<32x1xf32>
    %84 = vector.broadcast %83 : vector<32x1xf32> to vector<32x128xf32>
    %85 = arith.mulf %80, %84 : vector<32x128xf32>
    %86 = vector.broadcast %13 : vector<1x128xf32> to vector<32x128xf32>
    %87 = arith.mulf %85, %86 : vector<32x128xf32>
    %88 = vector.broadcast %14 : vector<1x128xf32> to vector<32x128xf32>
    %89 = arith.addf %87, %88 : vector<32x128xf32>
    %90 = arith.truncf %89 : vector<32x128xf32> to vector<32x128xbf16>
    %c0_38 = arith.constant 0 : index
    %c0_39 = arith.constant 0 : index
    %91 = vector.load %arg12[%c0_38, %c0_39] : memref<128x512xbf16, #tpu.memory_space<vmem>>, vector<128x512xbf16>
    %cst_40 = arith.constant dense<0.000000e+00> : vector<32x512xf32>
    %92 = tpu.matmul %90, %91, %cst_40 {dimension_numbers = #tpu.dot_dimension_numbers<[1], [0], [0], [1], [0, 0, 1, 1], [], []>} : vector<32x128xbf16>, vector<128x512xbf16>, vector<32x512xf32> -> vector<32x512xf32>
    %c0_41 = arith.constant 0 : index
    %c0_42 = arith.constant 0 : index
    %93 = vector.load %arg15[%c0_41, %c0_42] : memref<1x512xf32, #tpu.memory_space<vmem>>, vector<1x512xf32>
    %94 = vector.broadcast %93 : vector<1x512xf32> to vector<32x512xf32>
    %95 = arith.addf %92, %94 : vector<32x512xf32>
    %cst_43 = arith.constant 0.000000e+00 : f32
    %96 = vector.broadcast %cst_43 : f32 to vector<32x512xf32>
    %97 = arith.maximumf %95, %96 : vector<32x512xf32>
    %98 = arith.truncf %97 : vector<32x512xf32> to vector<32x512xbf16>
    %c0_44 = arith.constant 0 : index
    %c0_45 = arith.constant 0 : index
    %99 = vector.load %arg13[%c0_44, %c0_45] : memref<512x128xbf16, #tpu.memory_space<vmem>>, vector<512x128xbf16>
    %cst_46 = arith.constant dense<0.000000e+00> : vector<32x128xf32>
    %100 = tpu.matmul %98, %99, %cst_46 {dimension_numbers = #tpu.dot_dimension_numbers<[1], [0], [0], [1], [0, 0, 1, 1], [], []>} : vector<32x512xbf16>, vector<512x128xbf16>, vector<32x128xf32> -> vector<32x128xf32>
    %101 = vector.broadcast %15 : vector<1x128xf32> to vector<32x128xf32>
    %102 = arith.addf %100, %101 : vector<32x128xf32>
    %103 = arith.addf %89, %102 : vector<32x128xf32>
    %cst_47 = arith.constant dense<0.000000e+00> : vector<32xf32>
    %104 = vector.multi_reduction <add>, %103, %cst_47 [1] : vector<32x128xf32> to vector<32xf32>
    %105 = vector.shape_cast %104 : vector<32xf32> to vector<32x1xf32>
    %cst_48 = arith.constant 1.280000e+02 : f32
    %106 = vector.broadcast %cst_48 : f32 to vector<32x1xf32>
    %107 = arith.divf %105, %106 : vector<32x1xf32>
    %108 = vector.broadcast %107 : vector<32x1xf32> to vector<32x128xf32>
    %109 = arith.subf %103, %108 : vector<32x128xf32>
    %110 = arith.mulf %109, %109 : vector<32x128xf32>
    %cst_49 = arith.constant dense<0.000000e+00> : vector<32xf32>
    %111 = vector.multi_reduction <add>, %110, %cst_49 [1] : vector<32x128xf32> to vector<32xf32>
    %112 = vector.shape_cast %111 : vector<32xf32> to vector<32x1xf32>
    %cst_50 = arith.constant 1.280000e+02 : f32
    %113 = vector.broadcast %cst_50 : f32 to vector<32x1xf32>
    %114 = arith.divf %112, %113 : vector<32x1xf32>
    %115 = vector.broadcast %107 : vector<32x1xf32> to vector<32x128xf32>
    %116 = arith.subf %103, %115 : vector<32x128xf32>
    %cst_51 = arith.constant 9.99999974E-6 : f32
    %117 = vector.broadcast %cst_51 : f32 to vector<32x1xf32>
    %118 = arith.addf %114, %117 : vector<32x1xf32>
    %119 = math.rsqrt %118 : vector<32x1xf32>
    %120 = vector.broadcast %119 : vector<32x1xf32> to vector<32x128xf32>
    %121 = arith.mulf %116, %120 : vector<32x128xf32>
    %122 = vector.broadcast %16 : vector<1x128xf32> to vector<32x128xf32>
    %123 = arith.mulf %121, %122 : vector<32x128xf32>
    %124 = vector.broadcast %17 : vector<1x128xf32> to vector<32x128xf32>
    %125 = arith.addf %123, %124 : vector<32x128xf32>
    %c0_52 = arith.constant 0 : index
    %c0_53 = arith.constant 0 : index
    %c0_54 = arith.constant 0 : index
    %126 = vector.load %arg6[%c0_52, %c0_53, %c0_54] : memref<1x32x1xf32, #tpu.memory_space<vmem>>, vector<1x32x1xf32>
    %127 = vector.shape_cast %126 : vector<1x32x1xf32> to vector<32x1xf32>
    %128 = vector.broadcast %127 : vector<32x1xf32> to vector<32x128xf32>
    %129 = arith.mulf %125, %128 : vector<32x128xf32>
    %c0_55 = arith.constant 0 : index
    %c0_56 = arith.constant 0 : index
    %c0_57 = arith.constant 0 : index
    %130 = vector.load %arg16[%c0_55, %c0_56, %c0_57] : memref<1x32x128xf32, #tpu.memory_space<vmem>>, vector<1x32x128xf32>
    %131 = vector.shape_cast %130 : vector<1x32x128xf32> to vector<32x128xf32>
    %132 = vector.shape_cast %129 : vector<32x128xf32> to vector<1x32x128xf32>
    tpu.vector_store %arg16[%c0_55, %c0_56, %c0_57], %132 {strides = array<i32>} : memref<1x32x128xf32, #tpu.memory_space<vmem>>, vector<1x32x128xf32>,
    return
  }
  func.func @transform_0(%arg0: i32, %arg1: i32) -> (i32, i32, i32) {
    %c0_i32 = arith.constant 0 : i32
    %c0_i32_0 = arith.constant 0 : i32
    %c0_i32_1 = arith.constant 0 : i32
    return %arg0, %c0_i32, %c0_i32_0 : i32, i32, i32
  }
  func.func @transform_1(%arg0: i32, %arg1: i32) -> (i32, i32, i32) {
    %c0_i32 = arith.constant 0 : i32
    %c0_i32_0 = arith.constant 0 : i32
    return %arg0, %arg1, %c0_i32 : i32, i32, i32
  }
  func.func @transform_2(%arg0: i32, %arg1: i32) -> (i32, i32, i32) {
    %c0_i32 = arith.constant 0 : i32
    %c0_i32_0 = arith.constant 0 : i32
    return %arg0, %arg1, %c0_i32 : i32, i32, i32
  }
  func.func @transform_3(%arg0: i32, %arg1: i32) -> (i32, i32, i32) {
    %c0_i32 = arith.constant 0 : i32
    %c0_i32_0 = arith.constant 0 : i32
    return %arg0, %arg1, %c0_i32 : i32, i32, i32
  }
  func.func @transform_4(%arg0: i32, %arg1: i32) -> (i32, i32, i32) {
    %c0_i32 = arith.constant 0 : i32
    %c0_i32_0 = arith.constant 0 : i32
    return %arg0, %arg1, %c0_i32 : i32, i32, i32
  }
  func.func @transform_5(%arg0: i32, %arg1: i32) -> (i32, i32) {
    %c0_i32 = arith.constant 0 : i32
    %c0_i32_0 = arith.constant 0 : i32
    %c0_i32_1 = arith.constant 0 : i32
    return %c0_i32, %c0_i32_0 : i32, i32
  }
  func.func @transform_6(%arg0: i32, %arg1: i32) -> (i32, i32) {
    %c0_i32 = arith.constant 0 : i32
    %c0_i32_0 = arith.constant 0 : i32
    %c0_i32_1 = arith.constant 0 : i32
    return %c0_i32, %c0_i32_0 : i32, i32
  }
  func.func @transform_7(%arg0: i32, %arg1: i32) -> (i32, i32) {
    %c0_i32 = arith.constant 0 : i32
    %c0_i32_0 = arith.constant 0 : i32
    %c0_i32_1 = arith.constant 0 : i32
    return %c0_i32, %c0_i32_0 : i32, i32
  }
  func.func @transform_8(%arg0: i32, %arg1: i32) -> (i32, i32) {
    %c0_i32 = arith.constant 0 : i32
    %c0_i32_0 = arith.constant 0 : i32
    %c0_i32_1 = arith.constant 0 : i32
    return %c0_i32, %c0_i32_0 : i32, i32
  }
  func.func @transform_9(%arg0: i32, %arg1: i32) -> (i32, i32) {
    %c0_i32 = arith.constant 0 : i32
    %c0_i32_0 = arith.constant 0 : i32
    %c0_i32_1 = arith.constant 0 : i32
    return %c0_i32, %c0_i32_0 : i32, i32
  }
  func.func @transform_10(%arg0: i32, %arg1: i32) -> (i32, i32) {
    %c0_i32 = arith.constant 0 : i32
    %c0_i32_0 = arith.constant 0 : i32
    %c0_i32_1 = arith.constant 0 : i32
    return %c0_i32, %c0_i32_0 : i32, i32
  }
  func.func @transform_11(%arg0: i32, %arg1: i32) -> (i32, i32) {
    %c0_i32 = arith.constant 0 : i32
    %c0_i32_0 = arith.constant 0 : i32
    %c0_i32_1 = arith.constant 0 : i32
    return %c0_i32, %c0_i32_0 : i32, i32
  }
  func.func @transform_12(%arg0: i32, %arg1: i32) -> (i32, i32) {
    %c0_i32 = arith.constant 0 : i32
    %c0_i32_0 = arith.constant 0 : i32
    %c0_i32_1 = arith.constant 0 : i32
    return %c0_i32, %c0_i32_0 : i32, i32
  }
  func.func @transform_13(%arg0: i32, %arg1: i32) -> (i32, i32) {
    %c0_i32 = arith.constant 0 : i32
    %c0_i32_0 = arith.constant 0 : i32
    %c0_i32_1 = arith.constant 0 : i32
    return %c0_i32, %c0_i32_0 : i32, i32
  }
  func.func @transform_14(%arg0: i32, %arg1: i32) -> (i32, i32, i32) {
    %c0_i32 = arith.constant 0 : i32
    %c0_i32_0 = arith.constant 0 : i32
    return %arg0, %arg1, %c0_i32 : i32, i32, i32
  }
}

</mosaic_0001>

<llo_original>
// kernel: tpu_custom_call.1
$region0: #{tpu_custom_call.1}
  #allocation0 [shape = 'u32[]', space=smem, size = 0x4, offset = 0x4, fixed_abs, tag = 'smem constant byte address 0x4 - core index']
  #allocation1 [shape = 'u32[144,128]{1,0:T(1,128)}', space=vmem, size = 0x12000, scoped, tag = 'internal scratch']
  %s0 = inlined_call_operand.hbm [shape: f32[2,32,128], index: 0, kind: input, shape index: {}]
  %s1 = inlined_call_operand.hbm [shape: bf16[2,256,128], index: 1, kind: input, shape index: {}]
  %s2 = inlined_call_operand.vmem [shape: s32[2,32,8], index: 2, kind: input, shape index: {}]
  %s3 = inlined_call_operand.vmem [shape: f32[2,32,8], index: 3, kind: input, shape index: {}]
  %s4 = inlined_call_operand.vmem [shape: f32[2,32,1], index: 4, kind: input, shape index: {}]
  %s5 = inlined_call_operand.hbm [shape: bf16[128,128], index: 5, kind: input, shape index: {}]
  %s6 = inlined_call_operand.hbm [shape: bf16[128,128], index: 6, kind: input, shape index: {}]
  %s7 = inlined_call_operand.hbm [shape: bf16[128,128], index: 7, kind: input, shape index: {}]
  %s8 = inlined_call_operand.hbm [shape: bf16[128,128], index: 8, kind: input, shape index: {}]
  %s9 = inlined_call_operand.hbm [shape: bf16[128,128], index: 9, kind: input, shape index: {}]
  %s10 = inlined_call_operand.vmem [shape: bf16[128,512], index: 10, kind: input, shape index: {}]
  %s11 = inlined_call_operand.hbm [shape: bf16[512,128], index: 11, kind: input, shape index: {}]
  %s12 = inlined_call_operand.vmem [shape: f32[8,128], index: 12, kind: input, shape index: {}]
  %s13 = inlined_call_operand.vmem [shape: f32[1,512], index: 13, kind: input, shape index: {}]
  %s14 = inlined_call_operand.hbm [shape: f32[2,32,128], index: 14, kind: output, shape index: {}]
  %s15 = sld [smem:[#allocation0]]
  $region121: #{tpu_custom_call.1} parent=0
    _
  %s17 = ssub.s32 1, %s15
  %s18 = scalar_select 0, %s17, %s15
  $region1: #{tpu_custom_call.1} parent=0
    #allocation2 [shape = 'u8[32768]{0}', space=vmem, size = 0x8000, scoped, tag = 'input window, operand 0']
    #allocation3 [shape = 's32[2]{0}', space=sflag, size = 0x8, scoped, tag = 'scoped memory for tpu_custom_call.1']
    #allocation4 [shape = 's32[2]{0}', space=sflag, size = 0x8, scoped, tag = 'scoped memory for tpu_custom_call.1']
    #allocation5 [shape = 'u8[131072]{0}', space=vmem, size = 0x20000, scoped, tag = 'input window, operand 1']
    #allocation6 [shape = 's32[2]{0}', space=sflag, size = 0x8, scoped, tag = 'scoped memory for tpu_custom_call.1']
    #allocation7 [shape = 'u8[32768]{0}', space=vmem, size = 0x8000, scoped, tag = 'input window, operand 5, single buffered']
    #allocation8 [shape = 'u8[32768]{0}', space=vmem, size = 0x8000, scoped, tag = 'input window, operand 6, single buffered']
    #allocation9 [shape = 's32[1]{0}', space=sflag, size = 0x4, scoped, tag = 'scoped memory for tpu_custom_call.1']
    #allocation10 [shape = 'u8[32768]{0}', space=vmem, size = 0x8000, scoped, tag = 'input window, operand 7, single buffered']
    #allocation11 [shape = 'u8[32768]{0}', space=vmem, size = 0x8000, scoped, tag = 'input window, operand 8, single buffered']
    #allocation12 [shape = 's32[1]{0}', space=sflag, size = 0x4, scoped, tag = 'scoped memory for tpu_custom_call.1']
    #allocation13 [shape = 'u8[32768]{0}', space=vmem, size = 0x8000, scoped, tag = 'input window, operand 9, single buffered']
    #allocation14 [shape = 'u8[131072]{0}', space=vmem, size = 0x20000, scoped, tag = 'input window, operand 11, single buffered']
    #allocation15 [shape = 's32[1]{0}', space=sflag, size = 0x4, scoped, tag = 'scoped memory for tpu_custom_call.1']
    #allocation16 [shape = 'u8[32768]{0}', space=vmem, size = 0x8000, scoped, tag = 'output window, operand 0']
    %19 = vsyncpa [#allocation3], 0
    %s20 = scalar_lea.sflag [#allocation3], 1
    %21 = vsyncpa %s20, 0
    %22 = vsyncpa [#allocation6], 0
    %s23 = scalar_lea.sflag [#allocation6], 1
    %24 = vsyncpa %s23, 0
    %25 = vsyncpa [#allocation9], 0
    %26 = vsyncpa [#allocation12], 0
    %27 = vsyncpa [#allocation15], 0
    %28 = vsyncpa [#allocation4], 0
    %s29 = scalar_lea.sflag [#allocation4], 1
    %30 = vsyncpa %s29, 0
    loop: start=0, step=1, limit=4
    $region2: #{tpu_custom_call.1} parent=1 // loop_pre_header
      _
    $region3: #{tpu_custom_call.1} parent=1 // loop_header
      %s32 = sphi 0, %s36
      %p33 = scmp.ge.s32.totalorder %s32, 4
      %s39 = sphi 0, %s51
      %s40 = sphi 0, %s47
      %s41 = sphi 0, %s39
      %s42 = sphi 0, %s40
      %s43 = sphi 0, %s41
      %s44 = sphi 0, %s42
      %s54 = sphi 0, %s56
      %s57 = sphi 0, %s54
      %s58 = sphi 0, %s57
      %s74 = sphi 0, %s58
      %s82 = sphi 0, %s84
      %s85 = sphi 0, %s82
      %s86 = sphi 0, %s85
      %s102 = sphi 0, %s86
      %s110 = sphi 0, %s112
      %s113 = sphi 0, %s110
      %s114 = sphi 0, %s113
      %s130 = sphi 0, %s114
      %s138 = sphi 0, %s140
      %s141 = sphi 0, %s138
      %s142 = sphi 0, %s141
      %s158 = sphi 0, %s142
      %s166 = sphi 0, %s168
      %s169 = sphi 0, %s166
      %s170 = sphi 0, %s169
      %s186 = sphi 0, %s170
      %s190 = sphi 0, %s190
      %s192 = sphi 0, %s190
      %s193 = sphi 0, %s192
      %s207 = sphi 0, %s193
      %s211 = sphi 0, %s211
      %s213 = sphi 0, %s211
      %s214 = sphi 0, %s213
      %s228 = sphi 0, %s214
      %s232 = sphi 0, %s232
      %s234 = sphi 0, %s232
      %s235 = sphi 0, %s234
      %s249 = sphi 0, %s235
      %s253 = sphi 0, %s253
      %s255 = sphi 0, %s253
      %s256 = sphi 0, %s255
      %s270 = sphi 0, %s256
      %s274 = sphi 0, %s274
      %s276 = sphi 0, %s274
      %s277 = sphi 0, %s276
      %s291 = sphi 0, %s277
      %s295 = sphi 0, %s295
      %s297 = sphi 0, %s295
      %s298 = sphi 0, %s297
      %s312 = sphi 0, %s298
      %s316 = sphi 0, %s316
      %s318 = sphi 0, %s316
      %s319 = sphi 0, %s318
      %s333 = sphi 0, %s319
      %s337 = sphi 0, %s337
      %s339 = sphi 0, %s337
      %s340 = sphi 0, %s339
      %s354 = sphi 0, %s340
      %s358 = sphi 0, %s358
      %s360 = sphi 0, %s358
      %s361 = sphi 0, %s360
      %s375 = sphi 0, %s361
      %s383 = sphi 0, %s385
      %s386 = sphi 0, %s383
      %s387 = sphi 0, %s386
      %s403 = sphi 0, %s387
    $region4: #{tpu_custom_call.1} parent=1 // loop_header_branch
      %35 = sbr.rel (%p33) target = $region8
    $region5: #{tpu_custom_call.1} parent=1 // loop_body
      %s37 = ssub.s32 %s32, 1
      %s38 = ssub.s32 %s32, 2
      %s45 = sadd.s32 1, %s40
      %p46 = scmp.ge.s32.totalorder %s45, 1
      %s47 = scalar_select %p46, 0, %s45
      %s48 = sadd.s32 1, %s39
      %s49 = scalar_select %p46, %s48, %s39
      %p50 = scmp.ge.s32.totalorder %s49, 2
      %s51 = scalar_select %p50, 0, %s49
      %s52 = ssub.s32 %s39, %s51
      %p53 = scmp.eq.s32.totalorder %s52, 0
      %s55 = sadd.s32 %s54, 1
      %s56 = scalar_select %p53, %s54, %s55
      %p59 = pneg %p53
      %p60 = scmp.eq.s32.totalorder %s32, 1
      %p61 = por %p59, %p60
      %p62 = scmp.ne.s32.totalorder %s54, %s57
      %p63 = scmp.eq.s32.totalorder %s32, 0
      %p64 = por %p62, %p63
      %p65 = scmp.ne.s32.totalorder %s54, %s57
      %p66 = scmp.eq.s32.totalorder %s37, 1
      %p67 = por %p65, %p66
      %p68 = scmp.ne.s32.totalorder %s57, %s58
      %p69 = scmp.eq.s32.totalorder %s37, 0
      %p70 = por %p68, %p69
      %p71 = scmp.ne.s32.totalorder %s57, %s58
      %p72 = scmp.eq.s32.totalorder %s38, 1
      %p73 = por %p71, %p72
      %p75 = scmp.ne.s32.totalorder %s58, %s74
      %p76 = scmp.eq.s32.totalorder %s38, 0
      %p77 = por %p75, %p76
      %s78 = ssub.s32 %s39, %s51
      %s79 = ssub.s32 %s40, %s47
      %s80 = sor.u32 %s78, %s79
      %p81 = scmp.eq.s32.totalorder %s80, 0
      %s83 = sadd.s32 %s82, 1
      %s84 = scalar_select %p81, %s82, %s83
      %p87 = pneg %p81
      %p88 = scmp.eq.s32.totalorder %s32, 1
      %p89 = por %p87, %p88
      %p90 = scmp.ne.s32.totalorder %s82, %s85
      %p91 = scmp.eq.s32.totalorder %s32, 0
      %p92 = por %p90, %p91
      %p93 = scmp.ne.s32.totalorder %s82, %s85
      %p94 = scmp.eq.s32.totalorder %s37, 1
      %p95 = por %p93, %p94
      %p96 = scmp.ne.s32.totalorder %s85, %s86
      %p97 = scmp.eq.s32.totalorder %s37, 0
      %p98 = por %p96, %p97
      %p99 = scmp.ne.s32.totalorder %s85, %s86
      %p100 = scmp.eq.s32.totalorder %s38, 1
      %p101 = por %p99, %p100
      %p103 = scmp.ne.s32.totalorder %s86, %s102
      %p104 = scmp.eq.s32.totalorder %s38, 0
      %p105 = por %p103, %p104
      %s106 = ssub.s32 %s39, %s51
      %s107 = ssub.s32 %s40, %s47
      %s108 = sor.u32 %s106, %s107
      %p109 = scmp.eq.s32.totalorder %s108, 0
      %s111 = sadd.s32 %s110, 1
      %s112 = scalar_select %p109, %s110, %s111
      %p115 = pneg %p109
      %p116 = scmp.eq.s32.totalorder %s32, 1
      %p117 = por %p115, %p116
      %p118 = scmp.ne.s32.totalorder %s110, %s113
      %p119 = scmp.eq.s32.totalorder %s32, 0
      %p120 = por %p118, %p119
      %p121 = scmp.ne.s32.totalorder %s110, %s113
      %p122 = scmp.eq.s32.totalorder %s37, 1
      %p123 = por %p121, %p122
      %p124 = scmp.ne.s32.totalorder %s113, %s114
      %p125 = scmp.eq.s32.totalorder %s37, 0
      %p126 = por %p124, %p125
      %p127 = scmp.ne.s32.totalorder %s113, %s114
      %p128 = scmp.eq.s32.totalorder %s38, 1
      %p129 = por %p127, %p128
      %p131 = scmp.ne.s32.totalorder %s114, %s130
      %p132 = scmp.eq.s32.totalorder %s38, 0
      %p133 = por %p131, %p132
      %s134 = ssub.s32 %s39, %s51
      %s135 = ssub.s32 %s40, %s47
      %s136 = sor.u32 %s134, %s135
      %p137 = scmp.eq.s32.totalorder %s136, 0
      %s139 = sadd.s32 %s138, 1
      %s140 = scalar_select %p137, %s138, %s139
      %p143 = pneg %p137
      %p144 = scmp.eq.s32.totalorder %s32, 1
      %p145 = por %p143, %p144
      %p146 = scmp.ne.s32.totalorder %s138, %s141
      %p147 = scmp.eq.s32.totalorder %s32, 0
      %p148 = por %p146, %p147
      %p149 = scmp.ne.s32.totalorder %s138, %s141
      %p150 = scmp.eq.s32.totalorder %s37, 1
      %p151 = por %p149, %p150
      %p152 = scmp.ne.s32.totalorder %s141, %s142
      %p153 = scmp.eq.s32.totalorder %s37, 0
      %p154 = por %p152, %p153
      %p155 = scmp.ne.s32.totalorder %s141, %s142
      %p156 = scmp.eq.s32.totalorder %s38, 1
      %p157 = por %p155, %p156
      %p159 = scmp.ne.s32.totalorder %s142, %s158
      %p160 = scmp.eq.s32.totalorder %s38, 0
      %p161 = por %p159, %p160
      %s162 = ssub.s32 %s39, %s51
      %s163 = ssub.s32 %s40, %s47
      %s164 = sor.u32 %s162, %s163
      %p165 = scmp.eq.s32.totalorder %s164, 0
      %s167 = sadd.s32 %s166, 1
      %s168 = scalar_select %p165, %s166, %s167
      %p171 = pneg %p165
      %p172 = scmp.eq.s32.totalorder %s32, 1
      %p173 = por %p171, %p172
      %p174 = scmp.ne.s32.totalorder %s166, %s169
      %p175 = scmp.eq.s32.totalorder %s32, 0
      %p176 = por %p174, %p175
      %p177 = scmp.ne.s32.totalorder %s166, %s169
      %p178 = scmp.eq.s32.totalorder %s37, 1
      %p179 = por %p177, %p178
      %p180 = scmp.ne.s32.totalorder %s169, %s170
      %p181 = scmp.eq.s32.totalorder %s37, 0
      %p182 = por %p180, %p181
      %p183 = scmp.ne.s32.totalorder %s169, %s170
      %p184 = scmp.eq.s32.totalorder %s38, 1
      %p185 = por %p183, %p184
      %p187 = scmp.ne.s32.totalorder %s170, %s186
      %p188 = scmp.eq.s32.totalorder %s38, 0
      %p189 = por %p187, %p188
      %s191 = sadd.s32 %s190, 1
      %p194 = scmp.eq.s32.totalorder %s32, 1
      %p195 = scmp.ne.s32.totalorder %s190, %s192
      %p196 = scmp.eq.s32.totalorder %s32, 0
      %p197 = por %p195, %p196
      %p198 = scmp.ne.s32.totalorder %s190, %s192
      %p199 = scmp.eq.s32.totalorder %s37, 1
      %p200 = por %p198, %p199
      %p201 = scmp.ne.s32.totalorder %s192, %s193
      %p202 = scmp.eq.s32.totalorder %s37, 0
      %p203 = por %p201, %p202
      %p204 = scmp.ne.s32.totalorder %s192, %s193
      %p205 = scmp.eq.s32.totalorder %s38, 1
      %p206 = por %p204, %p205
      %p208 = scmp.ne.s32.totalorder %s193, %s207
      %p209 = scmp.eq.s32.totalorder %s38, 0
      %p210 = por %p208, %p209
      %s212 = sadd.s32 %s211, 1
      %p215 = scmp.eq.s32.totalorder %s32, 1
      %p216 = scmp.ne.s32.totalorder %s211, %s213
      %p217 = scmp.eq.s32.totalorder %s32, 0
      %p218 = por %p216, %p217
      %p219 = scmp.ne.s32.totalorder %s211, %s213
      %p220 = scmp.eq.s32.totalorder %s37, 1
      %p221 = por %p219, %p220
      %p222 = scmp.ne.s32.totalorder %s213, %s214
      %p223 = scmp.eq.s32.totalorder %s37, 0
      %p224 = por %p222, %p223
      %p225 = scmp.ne.s32.totalorder %s213, %s214
      %p226 = scmp.eq.s32.totalorder %s38, 1
      %p227 = por %p225, %p226
      %p229 = scmp.ne.s32.totalorder %s214, %s228
      %p230 = scmp.eq.s32.totalorder %s38, 0
      %p231 = por %p229, %p230
      %s233 = sadd.s32 %s232, 1
      %p236 = scmp.eq.s32.totalorder %s32, 1
      %p237 = scmp.ne.s32.totalorder %s232, %s234
      %p238 = scmp.eq.s32.totalorder %s32, 0
      %p239 = por %p237, %p238
      %p240 = scmp.ne.s32.totalorder %s232, %s234
      %p241 = scmp.eq.s32.totalorder %s37, 1
      %p242 = por %p240, %p241
      %p243 = scmp.ne.s32.totalorder %s234, %s235
      %p244 = scmp.eq.s32.totalorder %s37, 0
      %p245 = por %p243, %p244
      %p246 = scmp.ne.s32.totalorder %s234, %s235
      %p247 = scmp.eq.s32.totalorder %s38, 1
      %p248 = por %p246, %p247
      %p250 = scmp.ne.s32.totalorder %s235, %s249
      %p251 = scmp.eq.s32.totalorder %s38, 0
      %p252 = por %p250, %p251
      %s254 = sadd.s32 %s253, 1
      %p257 = scmp.eq.s32.totalorder %s32, 1
      %p258 = scmp.ne.s32.totalorder %s253, %s255
      %p259 = scmp.eq.s32.totalorder %s32, 0
      %p260 = por %p258, %p259
      %p261 = scmp.ne.s32.totalorder %s253, %s255
      %p262 = scmp.eq.s32.totalorder %s37, 1
      %p263 = por %p261, %p262
      %p264 = scmp.ne.s32.totalorder %s255, %s256
      %p265 = scmp.eq.s32.totalorder %s37, 0
      %p266 = por %p264, %p265
      %p267 = scmp.ne.s32.totalorder %s255, %s256
      %p268 = scmp.eq.s32.totalorder %s38, 1
      %p269 = por %p267, %p268
      %p271 = scmp.ne.s32.totalorder %s256, %s270
      %p272 = scmp.eq.s32.totalorder %s38, 0
      %p273 = por %p271, %p272
      %s275 = sadd.s32 %s274, 1
      %p278 = scmp.eq.s32.totalorder %s32, 1
      %p279 = scmp.ne.s32.totalorder %s274, %s276
      %p280 = scmp.eq.s32.totalorder %s32, 0
      %p281 = por %p279, %p280
      %p282 = scmp.ne.s32.totalorder %s274, %s276
      %p283 = scmp.eq.s32.totalorder %s37, 1
      %p284 = por %p282, %p283
      %p285 = scmp.ne.s32.totalorder %s276, %s277
      %p286 = scmp.eq.s32.totalorder %s37, 0
      %p287 = por %p285, %p286
      %p288 = scmp.ne.s32.totalorder %s276, %s277
      %p289 = scmp.eq.s32.totalorder %s38, 1
      %p290 = por %p288, %p289
      %p292 = scmp.ne.s32.totalorder %s277, %s291
      %p293 = scmp.eq.s32.totalorder %s38, 0
      %p294 = por %p292, %p293
      %s296 = sadd.s32 %s295, 1
      %p299 = scmp.eq.s32.totalorder %s32, 1
      %p300 = scmp.ne.s32.totalorder %s295, %s297
      %p301 = scmp.eq.s32.totalorder %s32, 0
      %p302 = por %p300, %p301
      %p303 = scmp.ne.s32.totalorder %s295, %s297
      %p304 = scmp.eq.s32.totalorder %s37, 1
      %p305 = por %p303, %p304
      %p306 = scmp.ne.s32.totalorder %s297, %s298
      %p307 = scmp.eq.s32.totalorder %s37, 0
      %p308 = por %p306, %p307
      %p309 = scmp.ne.s32.totalorder %s297, %s298
      %p310 = scmp.eq.s32.totalorder %s38, 1
      %p311 = por %p309, %p310
      %p313 = scmp.ne.s32.totalorder %s298, %s312
      %p314 = scmp.eq.s32.totalorder %s38, 0
      %p315 = por %p313, %p314
      %s317 = sadd.s32 %s316, 1
      %p320 = scmp.eq.s32.totalorder %s32, 1
      %p321 = scmp.ne.s32.totalorder %s316, %s318
      %p322 = scmp.eq.s32.totalorder %s32, 0
      %p323 = por %p321, %p322
      %p324 = scmp.ne.s32.totalorder %s316, %s318
      %p325 = scmp.eq.s32.totalorder %s37, 1
      %p326 = por %p324, %p325
      %p327 = scmp.ne.s32.totalorder %s318, %s319
      %p328 = scmp.eq.s32.totalorder %s37, 0
      %p329 = por %p327, %p328
      %p330 = scmp.ne.s32.totalorder %s318, %s319
      %p331 = scmp.eq.s32.totalorder %s38, 1
      %p332 = por %p330, %p331
      %p334 = scmp.ne.s32.totalorder %s319, %s333
      %p335 = scmp.eq.s32.totalorder %s38, 0
      %p336 = por %p334, %p335
      %s338 = sadd.s32 %s337, 1
      %p341 = scmp.eq.s32.totalorder %s32, 1
      %p342 = scmp.ne.s32.totalorder %s337, %s339
      %p343 = scmp.eq.s32.totalorder %s32, 0
      %p344 = por %p342, %p343
      %p345 = scmp.ne.s32.totalorder %s337, %s339
      %p346 = scmp.eq.s32.totalorder %s37, 1
      %p347 = por %p345, %p346
      %p348 = scmp.ne.s32.totalorder %s339, %s340
      %p349 = scmp.eq.s32.totalorder %s37, 0
      %p350 = por %p348, %p349
      %p351 = scmp.ne.s32.totalorder %s339, %s340
      %p352 = scmp.eq.s32.totalorder %s38, 1
      %p353 = por %p351, %p352
      %p355 = scmp.ne.s32.totalorder %s340, %s354
      %p356 = scmp.eq.s32.totalorder %s38, 0
      %p357 = por %p355, %p356
      %s359 = sadd.s32 %s358, 1
      %p362 = scmp.eq.s32.totalorder %s32, 1
      %p363 = scmp.ne.s32.totalorder %s358, %s360
      %p364 = scmp.eq.s32.totalorder %s32, 0
      %p365 = por %p363, %p364
      %p366 = scmp.ne.s32.totalorder %s358, %s360
      %p367 = scmp.eq.s32.totalorder %s37, 1
      %p368 = por %p366, %p367
      %p369 = scmp.ne.s32.totalorder %s360, %s361
      %p370 = scmp.eq.s32.totalorder %s37, 0
      %p371 = por %p369, %p370
      %p372 = scmp.ne.s32.totalorder %s360, %s361
      %p373 = scmp.eq.s32.totalorder %s38, 1
      %p374 = por %p372, %p373
      %p376 = scmp.ne.s32.totalorder %s361, %s375
      %p377 = scmp.eq.s32.totalorder %s38, 0
      %p378 = por %p376, %p377
      %s379 = ssub.s32 %s39, %s51
      %s380 = ssub.s32 %s40, %s47
      %s381 = sor.u32 %s379, %s380
      %p382 = scmp.eq.s32.totalorder %s381, 0
      %s384 = sadd.s32 %s383, 1
      %s385 = scalar_select %p382, %s383, %s384
      %p388 = pneg %p382
      %p389 = scmp.eq.s32.totalorder %s32, 1
      %p390 = por %p388, %p389
      %p391 = scmp.ne.s32.totalorder %s383, %s386
      %p392 = scmp.eq.s32.totalorder %s32, 0
      %p393 = por %p391, %p392
      %p394 = scmp.ne.s32.totalorder %s383, %s386
      %p395 = scmp.eq.s32.totalorder %s37, 1
      %p396 = por %p394, %p395
      %p397 = scmp.ne.s32.totalorder %s386, %s387
      %p398 = scmp.eq.s32.totalorder %s37, 0
      %p399 = por %p397, %p398
      %p400 = scmp.ne.s32.totalorder %s386, %s387
      %p401 = scmp.eq.s32.totalorder %s38, 1
      %p402 = por %p400, %p401
      %p404 = scmp.ne.s32.totalorder %s387, %s403
      %p405 = scmp.eq.s32.totalorder %s38, 0
      %p406 = por %p404, %p405
      %p407 = scmp.le.s32.totalorder 1, %s32
      %p408 = scmp.lt.s32.totalorder %s32, 3
      %p409 = pnand %p407, %p408
      %p410 = pneg %p409
      // Predicated region
      $region9: #{tpu_custom_call.1} parent=5 // pred_check
        _
      $region10: #{tpu_custom_call.1} parent=5 // pred_check_branch
        %412 = sbr.rel (%p409) target = $region12
      $region11: #{tpu_custom_call.1} parent=5 // pred_region
        %s413 = ssub.s32 %s32, 1
        // Predicated region
        $region13: #{tpu_custom_call.1} parent=11 // pred_check
          %p414 = pneg %p203
        $region14: #{tpu_custom_call.1} parent=11 // pred_check_branch
          %416 = sbr.rel (%p414) target = $region16
        $region15: #{tpu_custom_call.1} parent=11 // pred_region
          %s418 = ssub.s32 1024, 1024
          %419 = vsyncadd [#allocation6], %s418
          %s420 = sshll.u32 [#allocation7], 4
          %s421 = int_to_ptr.vmem [resolvable:$true] %s420
          %426 = dma.hbm_to_vmem [thread:$0]  %s5, 1024, %s421, [#allocation6], 64, 64, 4
        $region16: #{tpu_custom_call.1} parent=11 // pred_fallthru
          _
        // Predicated region
        $region17: #{tpu_custom_call.1} parent=11 // pred_check
          %p427 = pneg %p224
        $region18: #{tpu_custom_call.1} parent=11 // pred_check_branch
          %429 = sbr.rel (%p427) target = $region20
        $region19: #{tpu_custom_call.1} parent=11 // pred_region
          %s431 = ssub.s32 1024, 1024
          %432 = vsyncadd [#allocation9], %s431
          %s433 = sshll.u32 [#allocation8], 4
          %s434 = int_to_ptr.vmem [resolvable:$true] %s433
          %439 = dma.hbm_to_vmem [thread:$0]  %s6, 1024, %s434, [#allocation9], 64, 64, 4
        $region20: #{tpu_custom_call.1} parent=11 // pred_fallthru
          _
        // Predicated region
        $region21: #{tpu_custom_call.1} parent=11 // pred_check
          %p440 = pneg %p245
        $region22: #{tpu_custom_call.1} parent=11 // pred_check_branch
          %442 = sbr.rel (%p440) target = $region24
        $region23: #{tpu_custom_call.1} parent=11 // pred_region
          %s444 = ssub.s32 1024, 1024
          %445 = vsyncadd [#allocation9], %s444
          %s446 = sshll.u32 [#allocation10], 4
          %s447 = int_to_ptr.vmem [resolvable:$true] %s446
          %452 = dma.hbm_to_vmem [thread:$0]  %s7, 1024, %s447, [#allocation9], 64, 64, 4
        $region24: #{tpu_custom_call.1} parent=11 // pred_fallthru
          _
        // Predicated region
        $region25: #{tpu_custom_call.1} parent=11 // pred_check
          %p453 = pneg %p266
        $region26: #{tpu_custom_call.1} parent=11 // pred_check_branch
          %455 = sbr.rel (%p453) target = $region28
        $region27: #{tpu_custom_call.1} parent=11 // pred_region
          %s457 = ssub.s32 1024, 1024
          %458 = vsyncadd [#allocation12], %s457
          %s459 = sshll.u32 [#allocation11], 4
          %s460 = int_to_ptr.vmem [resolvable:$true] %s459
          %465 = dma.hbm_to_vmem [thread:$0]  %s8, 1024, %s460, [#allocation12], 64, 64, 4
        $region28: #{tpu_custom_call.1} parent=11 // pred_fallthru
          _
        // Predicated region
        $region29: #{tpu_custom_call.1} parent=11 // pred_check
          %p466 = pneg %p287
        $region30: #{tpu_custom_call.1} parent=11 // pred_check_branch
          %468 = sbr.rel (%p466) target = $region32
        $region31: #{tpu_custom_call.1} parent=11 // pred_region
          %s470 = ssub.s32 1024, 1024
          %471 = vsyncadd [#allocation12], %s470
          %s472 = sshll.u32 [#allocation13], 4
          %s473 = int_to_ptr.vmem [resolvable:$true] %s472
          %478 = dma.hbm_to_vmem [thread:$0]  %s9, 1024, %s473, [#allocation12], 64, 64, 4
        $region32: #{tpu_custom_call.1} parent=11 // pred_fallthru
          _
        // Predicated region
        $region33: #{tpu_custom_call.1} parent=11 // pred_check
          %p479 = pneg %p308
        $region34: #{tpu_custom_call.1} parent=11 // pred_check_branch
          %481 = sbr.rel (%p479) target = $region36
        $region35: #{tpu_custom_call.1} parent=11 // pred_region
          _
        $region36: #{tpu_custom_call.1} parent=11 // pred_fallthru
          _
        // Predicated region
        $region37: #{tpu_custom_call.1} parent=11 // pred_check
          %p482 = pneg %p329
        $region38: #{tpu_custom_call.1} parent=11 // pred_check_branch
          %484 = sbr.rel (%p482) target = $region40
        $region39: #{tpu_custom_call.1} parent=11 // pred_region
          %s486 = ssub.s32 4096, 4096
          %487 = vsyncadd [#allocation15], %s486
          %s488 = sshll.u32 [#allocation14], 4
          %s489 = int_to_ptr.vmem [resolvable:$true] %s488
          %494 = dma.hbm_to_vmem [thread:$0]  %s11, 4096, %s489, [#allocation15], 64, 64, 4
        $region40: #{tpu_custom_call.1} parent=11 // pred_fallthru
          _
        // Predicated region
        $region41: #{tpu_custom_call.1} parent=11 // pred_check
          %p495 = pneg %p350
        $region42: #{tpu_custom_call.1} parent=11 // pred_check_branch
          %497 = sbr.rel (%p495) target = $region44
        $region43: #{tpu_custom_call.1} parent=11 // pred_region
          _
        $region44: #{tpu_custom_call.1} parent=11 // pred_fallthru
          _
        // Predicated region
        $region45: #{tpu_custom_call.1} parent=11 // pred_check
          %p498 = pneg %p371
        $region46: #{tpu_custom_call.1} parent=11 // pred_check_branch
          %500 = sbr.rel (%p498) target = $region48
        $region47: #{tpu_custom_call.1} parent=11 // pred_region
          _
        $region48: #{tpu_custom_call.1} parent=11 // pred_fallthru
          _
      $region12: #{tpu_custom_call.1} parent=5 // pred_fallthru
        _
      %p501 = scmp.lt.s32.totalorder %s32, 2
      // Predicated region
      $region49: #{tpu_custom_call.1} parent=5 // pred_check
        %p502 = pneg %p501
      $region50: #{tpu_custom_call.1} parent=5 // pred_check_branch
        %504 = sbr.rel (%p502) target = $region52
      $region51: #{tpu_custom_call.1} parent=5 // pred_region
        // Predicated region
        $region53: #{tpu_custom_call.1} parent=51 // pred_check
          %p505 = pneg %p64
        $region54: #{tpu_custom_call.1} parent=51 // pred_check_branch
          %507 = sbr.rel (%p505) target = $region56
        $region55: #{tpu_custom_call.1} parent=51 // pred_region
          %s508 = sand.u32 %s54, 1
          %s509 = scalar_lea.sflag [#allocation3], %s508
          %s510 = sand.u32 %s54, 1
          %s511 = smul.addr %s510, 32
          %s512 = scalar_lea.vmem [#allocation2], %s511
          %s514 = ssub.s32 512, 512
          %515 = vsyncadd %s509, %s514
          %s516 = smul.addr %s39, 4
          %s517 = smul.addr %s516, 128
          %s518 = scalar_lea.hbm %s0, %s517
          %s519 = sshll.u32 %s512, 4
          %s520 = int_to_ptr.vmem [resolvable:$true] %s519
          %525 = dma.hbm_to_vmem [thread:$0]  %s518, 512, %s520, %s509, 128, 128, 8
        $region56: #{tpu_custom_call.1} parent=51 // pred_fallthru
          _
        // Predicated region
        $region57: #{tpu_custom_call.1} parent=51 // pred_check
          %p526 = pneg %p92
        $region58: #{tpu_custom_call.1} parent=51 // pred_check_branch
          %528 = sbr.rel (%p526) target = $region60
        $region59: #{tpu_custom_call.1} parent=51 // pred_region
          %s529 = sand.u32 %s32, 1
          %s530 = scalar_lea.sflag [#allocation6], %s529
          %s531 = sand.u32 %s82, 1
          %s532 = smul.addr %s531, 128
          %s533 = scalar_lea.vmem [#allocation5], %s532
          %s534 = smul.u32 32, %s40
          %s536 = ssub.s32 2048, 2048
          %537 = vsyncadd %s530, %s536
          %s538 = smul.addr %s39, 32
          %s539 = sadd.s32 %s534, %s538
          %s540 = smul.addr %s539, 64
          %s541 = scalar_lea.hbm %s1, %s540
          %s542 = sshll.u32 %s533, 4
          %s543 = int_to_ptr.vmem [resolvable:$true] %s542
          %548 = dma.hbm_to_vmem [thread:$0]  %s541, 2048, %s543, %s530, 64, 64, 4
        $region60: #{tpu_custom_call.1} parent=51 // pred_fallthru
          _
        // Predicated region
        $region61: #{tpu_custom_call.1} parent=51 // pred_check
          %p549 = pneg %p120
        $region62: #{tpu_custom_call.1} parent=51 // pred_check_branch
          %551 = sbr.rel (%p549) target = $region64
        $region63: #{tpu_custom_call.1} parent=51 // pred_region
          %s552 = smul.u32 4, %s40
          %p553 = scmp.lt.s32.totalorder %s39, 1
          %s554 = scalar_select %p553, %s39, 1
          %p555 = scmp.lt.s32.totalorder %s552, 3
          %s556 = scalar_select %p555, %s552, 3
          %s557 = smul.addr %s554, 4
          %s558 = sadd.s32 %s556, %s557
          %s559 = smul.addr %s558, 8
          %s560 = scalar_lea.vmem %s2, %s559
          %s561 = smul.u32 4, %s40
        $region64: #{tpu_custom_call.1} parent=51 // pred_fallthru
          _
        // Predicated region
        $region65: #{tpu_custom_call.1} parent=51 // pred_check
          %p562 = pneg %p148
        $region66: #{tpu_custom_call.1} parent=51 // pred_check_branch
          %564 = sbr.rel (%p562) target = $region68
        $region67: #{tpu_custom_call.1} parent=51 // pred_region
          %s565 = smul.u32 4, %s40
          %p566 = scmp.lt.s32.totalorder %s39, 1
          %s567 = scalar_select %p566, %s39, 1
          %p568 = scmp.lt.s32.totalorder %s565, 3
          %s569 = scalar_select %p568, %s565, 3
          %s570 = smul.addr %s567, 4
          %s571 = sadd.s32 %s569, %s570
          %s572 = smul.addr %s571, 8
          %s573 = scalar_lea.vmem %s3, %s572
          %s574 = smul.u32 4, %s40
        $region68: #{tpu_custom_call.1} parent=51 // pred_fallthru
          _
        // Predicated region
        $region69: #{tpu_custom_call.1} parent=51 // pred_check
          %p575 = pneg %p176
        $region70: #{tpu_custom_call.1} parent=51 // pred_check_branch
          %577 = sbr.rel (%p575) target = $region72
        $region71: #{tpu_custom_call.1} parent=51 // pred_region
          %s578 = smul.u32 4, %s40
          %p579 = scmp.lt.s32.totalorder %s39, 1
          %s580 = scalar_select %p579, %s39, 1
          %p581 = scmp.lt.s32.totalorder %s578, 3
          %s582 = scalar_select %p581, %s578, 3
          %s583 = smul.addr %s580, 4
          %s584 = sadd.s32 %s582, %s583
          %s585 = smul.addr %s584, 8
          %s586 = scalar_lea.vmem %s4, %s585
          %s587 = smul.u32 4, %s40
        $region72: #{tpu_custom_call.1} parent=51 // pred_fallthru
          _
      $region52: #{tpu_custom_call.1} parent=5 // pred_fallthru
        _
      %p588 = scmp.le.s32.totalorder 1, %s32
      %p589 = scmp.lt.s32.totalorder %s32, 3
      %p590 = pnand %p588, %p589
      %p591 = pneg %p590
      // Predicated region
      $region73: #{tpu_custom_call.1} parent=5 // pred_check
        _
      $region74: #{tpu_custom_call.1} parent=5 // pred_check_branch
        %593 = sbr.rel (%p590) target = $region76
      $region75: #{tpu_custom_call.1} parent=5 // pred_region
        %s594 = ssub.s32 %s32, 1
        %s595 = sand.u32 %s57, 1
        %s596 = scalar_lea.sflag [#allocation3], %s595
        %s597 = sand.u32 %s57, 1
        %s598 = smul.addr %s597, 32
        %s599 = scalar_lea.vmem [#allocation2], %s598
        // Predicated region
        $region77: #{tpu_custom_call.1} parent=75 // pred_check
          %p600 = pneg %p70
        $region78: #{tpu_custom_call.1} parent=75 // pred_check_branch
          %602 = sbr.rel (%p600) target = $region80
        $region79: #{tpu_custom_call.1} parent=75 // pred_region
          %603 = dma.done %s596, 512
        $region80: #{tpu_custom_call.1} parent=75 // pred_fallthru
          _
        %s604 = sand.u32 %s37, 1
        %s605 = scalar_lea.sflag [#allocation6], %s604
        %s606 = sand.u32 %s85, 1
        %s607 = smul.addr %s606, 128
        %s608 = scalar_lea.vmem [#allocation5], %s607
        // Predicated region
        $region81: #{tpu_custom_call.1} parent=75 // pred_check
          %p609 = pneg %p98
        $region82: #{tpu_custom_call.1} parent=75 // pred_check_branch
          %611 = sbr.rel (%p609) target = $region84
        $region83: #{tpu_custom_call.1} parent=75 // pred_region
          %612 = dma.done %s605, 2048
        $region84: #{tpu_custom_call.1} parent=75 // pred_fallthru
          _
        // Predicated region
        $region85: #{tpu_custom_call.1} parent=75 // pred_check
          %p613 = pneg %p203
        $region86: #{tpu_custom_call.1} parent=75 // pred_check_branch
          %615 = sbr.rel (%p613) target = $region88
        $region87: #{tpu_custom_call.1} parent=75 // pred_region
          %616 = dma.done [#allocation6], 1024
        $region88: #{tpu_custom_call.1} parent=75 // pred_fallthru
          _
        // Predicated region
        $region89: #{tpu_custom_call.1} parent=75 // pred_check
          %p617 = pneg %p224
        $region90: #{tpu_custom_call.1} parent=75 // pred_check_branch
          %619 = sbr.rel (%p617) target = $region92
        $region91: #{tpu_custom_call.1} parent=75 // pred_region
          %620 = dma.done [#allocation9], 1024
        $region92: #{tpu_custom_call.1} parent=75 // pred_fallthru
          _
        // Predicated region
        $region93: #{tpu_custom_call.1} parent=75 // pred_check
          %p621 = pneg %p245
        $region94: #{tpu_custom_call.1} parent=75 // pred_check_branch
          %623 = sbr.rel (%p621) target = $region96
        $region95: #{tpu_custom_call.1} parent=75 // pred_region
          %624 = dma.done [#allocation9], 1024
        $region96: #{tpu_custom_call.1} parent=75 // pred_fallthru
          _
        // Predicated region
        $region97: #{tpu_custom_call.1} parent=75 // pred_check
          %p625 = pneg %p266
        $region98: #{tpu_custom_call.1} parent=75 // pred_check_branch
          %627 = sbr.rel (%p625) target = $region100
        $region99: #{tpu_custom_call.1} parent=75 // pred_region
          %628 = dma.done [#allocation12], 1024
        $region100: #{tpu_custom_call.1} parent=75 // pred_fallthru
          _
        // Predicated region
        $region101: #{tpu_custom_call.1} parent=75 // pred_check
          %p629 = pneg %p287
        $region102: #{tpu_custom_call.1} parent=75 // pred_check_branch
          %631 = sbr.rel (%p629) target = $region104
        $region103: #{tpu_custom_call.1} parent=75 // pred_region
          %632 = dma.done [#allocation12], 1024
        $region104: #{tpu_custom_call.1} parent=75 // pred_fallthru
          _
        // Predicated region
        $region105: #{tpu_custom_call.1} parent=75 // pred_check
          %p633 = pneg %p329
        $region106: #{tpu_custom_call.1} parent=75 // pred_check_branch
          %635 = sbr.rel (%p633) target = $region108
        $region107: #{tpu_custom_call.1} parent=75 // pred_region
          %636 = dma.done [#allocation15], 4096
        $region108: #{tpu_custom_call.1} parent=75 // pred_fallthru
          _
        %s637 = sand.u32 %s57, 1
        %s638 = scalar_lea.sflag [#allocation3], %s637
        %s639 = sand.u32 %s57, 1
        %s640 = smul.addr %s639, 32
        %s641 = scalar_lea.vmem [#allocation2], %s640
        %p642 = pneg %p70
        %p643 = pneg %p67
        %s644 = sand.u32 %s37, 1
        %s645 = scalar_lea.sflag [#allocation6], %s644
        %s646 = sand.u32 %s85, 1
        %s647 = smul.addr %s646, 128
        %s648 = scalar_lea.vmem [#allocation5], %s647
        %p649 = pneg %p98
        %p650 = pneg %p95
        %s651 = smul.u32 4, %s42
        %p652 = scmp.lt.s32.totalorder %s41, 1
        %s653 = scalar_select %p652, %s41, 1
        %p654 = scmp.lt.s32.totalorder %s651, 3
        %s655 = scalar_select %p654, %s651, 3
        %s656 = smul.addr %s653, 4
        %s657 = sadd.s32 %s655, %s656
        %s658 = smul.addr %s657, 8
        %s659 = scalar_lea.vmem %s2, %s658
        %p660 = pneg %p126
        %p661 = pneg %p123
        %s662 = smul.u32 4, %s42
        %p663 = scmp.lt.s32.totalorder %s41, 1
        %s664 = scalar_select %p663, %s41, 1
        %p665 = scmp.lt.s32.totalorder %s662, 3
        %s666 = scalar_select %p665, %s662, 3
        %s667 = smul.addr %s664, 4
        %s668 = sadd.s32 %s666, %s667
        %s669 = smul.addr %s668, 8
        %s670 = scalar_lea.vmem %s3, %s669
        %p671 = pneg %p154
        %p672 = pneg %p151
        %s673 = smul.u32 4, %s42
        %p674 = scmp.lt.s32.totalorder %s41, 1
        %s675 = scalar_select %p674, %s41, 1
        %p676 = scmp.lt.s32.totalorder %s673, 3
        %s677 = scalar_select %p676, %s673, 3
        %s678 = smul.addr %s675, 4
        %s679 = sadd.s32 %s677, %s678
        %s680 = smul.addr %s679, 8
        %s681 = scalar_lea.vmem %s4, %s680
        %p682 = pneg %p182
        %p683 = pneg %p179
        %p684 = pneg %p203
        %p685 = pneg %p200
        %p686 = pneg %p224
        %p687 = pneg %p221
        %p688 = pneg %p245
        %p689 = pneg %p242
        %p690 = pneg %p266
        %p691 = pneg %p263
        %p692 = pneg %p287
        %p693 = pneg %p284
        %p694 = pneg %p308
        %p695 = pneg %p305
        %p696 = pneg %p329
        %p697 = pneg %p326
        %p698 = pneg %p350
        %p699 = pneg %p347
        %p700 = pneg %p371
        %p701 = pneg %p368
        %p702 = pneg %p399
        %p703 = pneg %p396
        %s704 = sand.u32 %s386, 1
        %s705 = scalar_lea.sflag [#allocation4], %s704
        %s706 = sand.u32 %s386, 1
        %s707 = smul.addr %s706, 32
        %s708 = scalar_lea.vmem [#allocation16], %s707
        %s709 = smul.u32 32, %s42
        %s710 = smul.u32 4, %s42
        %p711 = scmp.lt.s32.totalorder %s41, 1
        %s712 = scalar_select %p711, %s41, 1
        %p713 = scmp.lt.s32.totalorder %s710, 3
        %s714 = scalar_select %p713, %s710, 3
        %s715 = smul.addr %s712, 4
        %s716 = sadd.s32 %s714, %s715
        %s717 = smul.addr %s716, 8
        %s718 = scalar_lea.vmem %s2, %s717
        %s719 = smul.u32 4, %s42
        %s720 = smul.u32 4, %s42
        %p721 = scmp.lt.s32.totalorder %s41, 1
        %s722 = scalar_select %p721, %s41, 1
        %p723 = scmp.lt.s32.totalorder %s720, 3
        %s724 = scalar_select %p723, %s720, 3
        %s725 = smul.addr %s722, 4
        %s726 = sadd.s32 %s724, %s725
        %s727 = smul.addr %s726, 8
        %s728 = scalar_lea.vmem %s3, %s727
        %s729 = smul.u32 4, %s42
        %s730 = smul.u32 4, %s42
        %p731 = scmp.lt.s32.totalorder %s41, 1
        %s732 = scalar_select %p731, %s41, 1
        %p733 = scmp.lt.s32.totalorder %s730, 3
        %s734 = scalar_select %p733, %s730, 3
        %s735 = smul.addr %s732, 4
        %s736 = sadd.s32 %s734, %s735
        %s737 = smul.addr %s736, 8
        %s738 = scalar_lea.vmem %s4, %s737
        %s739 = smul.u32 4, %s42
        %s740 = smul.u32 4, %s42
        %s742 = smul.u32 %s42, 32
        %v743 = vld [vmem:[%s599] sm:$0xff]
        %v744 = vld [vmem:[%s599 + $0x8] sm:$0xff]
        %v745 = vld [vmem:[%s599 + $0x10] sm:$0xff]
        %v746 = vld [vmem:[%s599 + $0x18] sm:$0xff]
        %s747 = scalar_lea.vmem %s599, %s742 [#allocation2]
        %v748 = vld [vmem:[%s747] sm:$0xff]
        %v749 = vld [vmem:[%s747 + $0x8] sm:$0xff]
        %v750 = vld [vmem:[%s747 + $0x10] sm:$0xff]
        %v751 = vld [vmem:[%s747 + $0x18] sm:$0xff]
        %v752 = vld [vmem:[%s608] sm:$0xf]
        %v753 = vld [vmem:[%s608 + $0x4] sm:$0xf]
        %v754 = vld [vmem:[%s608 + $0x8] sm:$0xf]
        %v755 = vld [vmem:[%s608 + $0xc] sm:$0xf]
        %v756 = vld [vmem:[%s608 + $0x10] sm:$0xf]
        %v757 = vld [vmem:[%s608 + $0x14] sm:$0xf]
        %v758 = vld [vmem:[%s608 + $0x18] sm:$0xf]
        %v759 = vld [vmem:[%s608 + $0x1c] sm:$0xf]
        %v760 = vld [vmem:[%s608 + $0x20] sm:$0xf]
        %v761 = vld [vmem:[%s608 + $0x24] sm:$0xf]
        %v762 = vld [vmem:[%s608 + $0x28] sm:$0xf]
        %v763 = vld [vmem:[%s608 + $0x2c] sm:$0xf]
        %v764 = vld [vmem:[%s608 + $0x30] sm:$0xf]
        %v765 = vld [vmem:[%s608 + $0x34] sm:$0xf]
        %v766 = vld [vmem:[%s608 + $0x38] sm:$0xf]
        %v767 = vld [vmem:[%s608 + $0x3c] sm:$0xf]
        %v768 = vld [vmem:[%s608 + $0x40] sm:$0xf]
        %v769 = vld [vmem:[%s608 + $0x44] sm:$0xf]
        %v770 = vld [vmem:[%s608 + $0x48] sm:$0xf]
        %v771 = vld [vmem:[%s608 + $0x4c] sm:$0xf]
        %v772 = vld [vmem:[%s608 + $0x50] sm:$0xf]
        %v773 = vld [vmem:[%s608 + $0x54] sm:$0xf]
        %v774 = vld [vmem:[%s608 + $0x58] sm:$0xf]
        %v775 = vld [vmem:[%s608 + $0x5c] sm:$0xf]
        %v776 = vld [vmem:[%s608 + $0x60] sm:$0xf]
        %v777 = vld [vmem:[%s608 + $0x64] sm:$0xf]
        %v778 = vld [vmem:[%s608 + $0x68] sm:$0xf]
        %v779 = vld [vmem:[%s608 + $0x6c] sm:$0xf]
        %v780 = vld [vmem:[%s608 + $0x70] sm:$0xf]
        %v781 = vld [vmem:[%s608 + $0x74] sm:$0xf]
        %v782 = vld [vmem:[%s608 + $0x78] sm:$0xf]
        %v783 = vld [vmem:[%s608 + $0x7c] sm:$0xf]
        %v784 = vld [vmem:[%s12] sm:$0xff]
        %v785 = vpack.c.bf16 %v749, %v748
        %v786 = vpack.c.bf16 %v751, %v750
        %v787 = vld [vmem:[#allocation7] sm:$0xf]
        %v788 = vld [vmem:[#allocation7 + $0x4] sm:$0xf]
        %v789 = vld [vmem:[#allocation7 + $0x8] sm:$0xf]
        %v790 = vld [vmem:[#allocation7 + $0xc] sm:$0xf]
        %v791 = vld [vmem:[#allocation7 + $0x10] sm:$0xf]
        %v792 = vld [vmem:[#allocation7 + $0x14] sm:$0xf]
        %v793 = vld [vmem:[#allocation7 + $0x18] sm:$0xf]
        %v794 = vld [vmem:[#allocation7 + $0x1c] sm:$0xf]
        %v795 = vld [vmem:[#allocation7 + $0x20] sm:$0xf]
        %v796 = vld [vmem:[#allocation7 + $0x24] sm:$0xf]
        %v797 = vld [vmem:[#allocation7 + $0x28] sm:$0xf]
        %v798 = vld [vmem:[#allocation7 + $0x2c] sm:$0xf]
        %v799 = vld [vmem:[#allocation7 + $0x30] sm:$0xf]
        %v800 = vld [vmem:[#allocation7 + $0x34] sm:$0xf]
        %v801 = vld [vmem:[#allocation7 + $0x38] sm:$0xf]
        %v802 = vld [vmem:[#allocation7 + $0x3c] sm:$0xf]
        %v803 = vlaneseq
        %v804 = vshrl.u32 %v803, 7
        %v805 = vsub.s32 0, %v804
        %v806 = vrot.slane %v784, %v805
        %v823 = vunpack.c.l.b16 %v787
        %v824 = vunpack.c.l.b16 %v788
        %v825 = vunpack.c.l.b16 %v789
        %v826 = vunpack.c.l.b16 %v790
        %v827 = vunpack.c.l.b16 %v791
        %v828 = vunpack.c.l.b16 %v792
        %v829 = vunpack.c.l.b16 %v793
        %v830 = vunpack.c.l.b16 %v794
        %v831 = vunpack.c.l.b16 %v795
        %v832 = vunpack.c.l.b16 %v796
        %v833 = vunpack.c.l.b16 %v797
        %v834 = vunpack.c.l.b16 %v798
        %v835 = vunpack.c.l.b16 %v799
        %v836 = vunpack.c.l.b16 %v800
        %v837 = vunpack.c.l.b16 %v801
        %v838 = vunpack.c.l.b16 %v802
        %v839 = vpack.c.b16 %v824, %v823
        %v840 = vpack.c.b16 %v826, %v825
        %v841 = vpack.c.b16 %v828, %v827
        %v842 = vpack.c.b16 %v830, %v829
        %v843 = vpack.c.b16 %v832, %v831
        %v844 = vpack.c.b16 %v834, %v833
        %v845 = vpack.c.b16 %v836, %v835
        %v846 = vpack.c.b16 %v838, %v837
        %855 = vmatprep.subr.bf16.mxu0 0
        %856 = vmatpush1.bf16.msra.mxu0 %v839
        %857 = vmatprep.subr.bf16.mxu0 0
        %858 = vmatpush1.bf16.msra.mxu0 %v840
        %859 = vmatprep.subr.bf16.mxu0 0
        %860 = vmatpush1.bf16.msra.mxu0 %v841
        %861 = vmatprep.subr.bf16.mxu0 0
        %862 = vmatpush1.bf16.msra.mxu0 %v842
        %863 = vmatprep.subr.bf16.mxu0 0
        %864 = vmatpush1.bf16.msra.mxu0 %v843
        %865 = vmatprep.subr.bf16.mxu0 0
        %866 = vmatpush1.bf16.msra.mxu0 %v844
        %867 = vmatprep.subr.bf16.mxu0 0
        %868 = vmatpush1.bf16.msra.mxu0 %v845
        %869 = vmatprep.subr.bf16.mxu0 0
        %870 = vmatpush1.bf16.msra.mxu0 %v846
        %871 = vmatprep.subr.bf16.mxu0 0
        %872 = vmatpush1.bf16.msra.mxu0 0
        %873 = vmatprep.subr.bf16.mxu0 0
        %874 = vmatpush1.bf16.msra.mxu0 0
        %875 = vmatprep.subr.bf16.mxu0 0
        %876 = vmatpush1.bf16.msra.mxu0 0
        %877 = vmatprep.subr.bf16.mxu0 0
        %878 = vmatpush1.bf16.msra.mxu0 0
        %879 = vmatprep.subr.bf16.mxu0 0
        %880 = vmatpush1.bf16.msra.mxu0 0
        %881 = vmatprep.subr.bf16.mxu0 0
        %882 = vmatpush1.bf16.msra.mxu0 0
        %883 = vmatprep.subr.bf16.mxu0 0
        %884 = vmatpush1.bf16.msra.mxu0 0
        %885 = vmatprep.subr.bf16.mxu0 0
        %886 = vmatpush1.bf16.msra.mxu0 0
        %887 = vmatprep.mubr.bf16.mxu0 0
        %888 = vmatmul.mubr.bf16.gmra.mrb[0].mxu0 %v785
        %v889 = vpop.f32.mrb[0].mxu0
        %v890 = vadd.f32 %v806, %v889
        %v891 = vpop.f32.mrb[0].mxu0
        %v892 = vpop.f32.mrb[0].mxu0
        %v893 = vadd.f32 %v806, %v892
        %v894 = vpop.f32.mrb[0].mxu0
        %895 = vmatprep.mubr.bf16.mxu0 0
        %896 = vmatmul.mubr.bf16.gmra.mrb[0].mxu0 %v786
        %v897 = vpop.f32.mrb[0].mxu0
        %v898 = vadd.f32 %v806, %v897
        %v899 = vpop.f32.mrb[0].mxu0
        %v900 = vpop.f32.mrb[0].mxu0
        %v901 = vadd.f32 %v806, %v900
        %v902 = vpop.f32.mrb[0].mxu0
        %903 = vdwg.mxu0
        %v904 = vld [vmem:[%s718] sm:$0xff]
        %v905 = vld [vmem:[%s718 + $0x8] sm:$0xff]
        %v906 = vld [vmem:[%s718 + $0x10] sm:$0xff]
        %v907 = vld [vmem:[%s718 + $0x18] sm:$0xff]
        %v908 = vpack.c.bf16 %v744, %v743
        %v909 = vpack.c.bf16 %v746, %v745
        %v910 = vld [vmem:[#allocation8] sm:$0xf]
        %v911 = vld [vmem:[#allocation8 + $0x4] sm:$0xf]
        %v912 = vld [vmem:[#allocation8 + $0x8] sm:$0xf]
        %v913 = vld [vmem:[#allocation8 + $0xc] sm:$0xf]
        %v914 = vld [vmem:[#allocation8 + $0x10] sm:$0xf]
        %v915 = vld [vmem:[#allocation8 + $0x14] sm:$0xf]
        %v916 = vld [vmem:[#allocation8 + $0x18] sm:$0xf]
        %v917 = vld [vmem:[#allocation8 + $0x1c] sm:$0xf]
        %v918 = vld [vmem:[#allocation8 + $0x20] sm:$0xf]
        %v919 = vld [vmem:[#allocation8 + $0x24] sm:$0xf]
        %v920 = vld [vmem:[#allocation8 + $0x28] sm:$0xf]
        %v921 = vld [vmem:[#allocation8 + $0x2c] sm:$0xf]
        %v922 = vld [vmem:[#allocation8 + $0x30] sm:$0xf]
        %v923 = vld [vmem:[#allocation8 + $0x34] sm:$0xf]
        %v924 = vld [vmem:[#allocation8 + $0x38] sm:$0xf]
        %v925 = vld [vmem:[#allocation8 + $0x3c] sm:$0xf]
        %v942 = vunpack.c.l.b16 %v910
        %v943 = vunpack.c.l.b16 %v911
        %v944 = vunpack.c.l.b16 %v912
        %v945 = vunpack.c.l.b16 %v913
        %v946 = vunpack.c.l.b16 %v914
        %v947 = vunpack.c.l.b16 %v915
        %v948 = vunpack.c.l.b16 %v916
        %v949 = vunpack.c.l.b16 %v917
        %v950 = vunpack.c.l.b16 %v918
        %v951 = vunpack.c.l.b16 %v919
        %v952 = vunpack.c.l.b16 %v920
        %v953 = vunpack.c.l.b16 %v921
        %v954 = vunpack.c.l.b16 %v922
        %v955 = vunpack.c.l.b16 %v923
        %v956 = vunpack.c.l.b16 %v924
        %v957 = vunpack.c.l.b16 %v925
        %v958 = vpack.c.b16 %v943, %v942
        %v959 = vpack.c.b16 %v945, %v944
        %v960 = vpack.c.b16 %v947, %v946
        %v961 = vpack.c.b16 %v949, %v948
        %v962 = vpack.c.b16 %v951, %v950
        %v963 = vpack.c.b16 %v953, %v952
        %v964 = vpack.c.b16 %v955, %v954
        %v965 = vpack.c.b16 %v957, %v956
        %974 = vmatprep.subr.bf16.mxu0 0
        %975 = vmatpush1.bf16.msra.mxu0 %v958
        %976 = vmatprep.subr.bf16.mxu0 0
        %977 = vmatpush1.bf16.msra.mxu0 %v959
        %978 = vmatprep.subr.bf16.mxu0 0
        %979 = vmatpush1.bf16.msra.mxu0 %v960
        %980 = vmatprep.subr.bf16.mxu0 0
        %981 = vmatpush1.bf16.msra.mxu0 %v961
        %982 = vmatprep.subr.bf16.mxu0 0
        %983 = vmatpush1.bf16.msra.mxu0 %v962
        %984 = vmatprep.subr.bf16.mxu0 0
        %985 = vmatpush1.bf16.msra.mxu0 %v963
        %986 = vmatprep.subr.bf16.mxu0 0
        %987 = vmatpush1.bf16.msra.mxu0 %v964
        %988 = vmatprep.subr.bf16.mxu0 0
        %989 = vmatpush1.bf16.msra.mxu0 %v965
        %990 = vmatprep.subr.bf16.mxu0 0
        %991 = vmatpush1.bf16.msra.mxu0 0
        %992 = vmatprep.subr.bf16.mxu0 0
        %993 = vmatpush1.bf16.msra.mxu0 0
        %994 = vmatprep.subr.bf16.mxu0 0
        %995 = vmatpush1.bf16.msra.mxu0 0
        %996 = vmatprep.subr.bf16.mxu0 0
        %997 = vmatpush1.bf16.msra.mxu0 0
        %998 = vmatprep.subr.bf16.mxu0 0
        %999 = vmatpush1.bf16.msra.mxu0 0
        %1000 = vmatprep.subr.bf16.mxu0 0
        %1001 = vmatpush1.bf16.msra.mxu0 0
        %1002 = vmatprep.subr.bf16.mxu0 0
        %1003 = vmatpush1.bf16.msra.mxu0 0
        %1004 = vmatprep.subr.bf16.mxu0 0
        %1005 = vmatpush1.bf16.msra.mxu0 0
        %1006 = vmatprep.mubr.bf16.mxu0 0
        %1007 = vmatmul.mubr.bf16.gmra.mrb[0].mxu0 %v908
        %v1008 = vpop.f32.mrb[0].mxu0
        %v1009 = vadd.f32 0.0, %v1008
        %v1010 = vpop.f32.mrb[0].mxu0
        %v1011 = vpop.f32.mrb[0].mxu0
        %v1012 = vadd.f32 0.0, %v1011
        %v1013 = vpop.f32.mrb[0].mxu0
        %1014 = vmatprep.mubr.bf16.mxu0 0
        %1015 = vmatmul.mubr.bf16.gmra.mrb[0].mxu0 %v909
        %v1016 = vpop.f32.mrb[0].mxu0
        %v1017 = vadd.f32 0.0, %v1016
        %v1018 = vpop.f32.mrb[0].mxu0
        %v1019 = vpop.f32.mrb[0].mxu0
        %v1020 = vadd.f32 0.0, %v1019
        %v1021 = vpop.f32.mrb[0].mxu0
        %1022 = vdwg.mxu0
        %v1023 = vpack.c.bf16 %v1012, %v1009
        %v1024 = vpack.c.bf16 %v1020, %v1017
        %v1025 = vlaneseq
        %v1026 = vand.u32 %v1025, 127
        %v1027 = vlaneseq
        %v1028 = vshrl.u32 %v1027, 7
        %v1029 = vsub.s32 0, %v1028
        %v1030 = vrot.slane %v904, %v1029
        %1032 = vbcast.lane.b32.xlu0 %v1030, 256
        %v1033 = vpop.permute.xlu0 %1032
        %v1034 = vlaneseq
        %v1035 = vshrl.u32 %v1034, 7
        %v1036 = vsub.s32 1, %v1035
        %v1037 = vrot.slane %v904, %v1036
        %1039 = vbcast.lane.b32.xlu0 %v1037, 256
        %v1040 = vpop.permute.xlu0 %1039
        %v1041 = vlaneseq
        %v1042 = vshrl.u32 %v1041, 7
        %v1043 = vsub.s32 2, %v1042
        %v1044 = vrot.slane %v904, %v1043
        %1046 = vbcast.lane.b32.xlu0 %v1044, 256
        %v1047 = vpop.permute.xlu0 %1046
        %v1048 = vlaneseq
        %v1049 = vshrl.u32 %v1048, 7
        %v1050 = vsub.s32 3, %v1049
        %v1051 = vrot.slane %v904, %v1050
        %1053 = vbcast.lane.b32.xlu0 %v1051, 256
        %v1054 = vpop.permute.xlu0 %1053
        %v1055 = vlaneseq
        %v1056 = vshrl.u32 %v1055, 7
        %v1057 = vsub.s32 4, %v1056
        %v1058 = vrot.slane %v904, %v1057
        %1060 = vbcast.lane.b32.xlu0 %v1058, 256
        %v1061 = vpop.permute.xlu0 %1060
        %v1062 = vlaneseq
        %v1063 = vshrl.u32 %v1062, 7
        %v1064 = vsub.s32 5, %v1063
        %v1065 = vrot.slane %v904, %v1064
        %1067 = vbcast.lane.b32.xlu0 %v1065, 256
        %v1068 = vpop.permute.xlu0 %1067
        %v1069 = vlaneseq
        %v1070 = vshrl.u32 %v1069, 7
        %v1071 = vsub.s32 6, %v1070
        %v1072 = vrot.slane %v904, %v1071
        %1074 = vbcast.lane.b32.xlu0 %v1072, 256
        %v1075 = vpop.permute.xlu0 %1074
        %v1076 = vlaneseq
        %v1077 = vshrl.u32 %v1076, 7
        %v1078 = vsub.s32 7, %v1077
        %v1079 = vrot.slane %v904, %v1078
        %1081 = vbcast.lane.b32.xlu0 %v1079, 256
        %v1082 = vpop.permute.xlu0 %1081
        %v1083 = vlaneseq
        %v1084 = vshrl.u32 %v1083, 7
        %v1085 = vsub.s32 0, %v1084
        %v1086 = vrot.slane %v905, %v1085
        %1088 = vbcast.lane.b32.xlu0 %v1086, 256
        %v1089 = vpop.permute.xlu0 %1088
        %v1090 = vlaneseq
        %v1091 = vshrl.u32 %v1090, 7
        %v1092 = vsub.s32 1, %v1091
        %v1093 = vrot.slane %v905, %v1092
        %1095 = vbcast.lane.b32.xlu0 %v1093, 256
        %v1096 = vpop.permute.xlu0 %1095
        %v1097 = vlaneseq
        %v1098 = vshrl.u32 %v1097, 7
        %v1099 = vsub.s32 2, %v1098
        %v1100 = vrot.slane %v905, %v1099
        %1102 = vbcast.lane.b32.xlu0 %v1100, 256
        %v1103 = vpop.permute.xlu0 %1102
        %v1104 = vlaneseq
        %v1105 = vshrl.u32 %v1104, 7
        %v1106 = vsub.s32 3, %v1105
        %v1107 = vrot.slane %v905, %v1106
        %1109 = vbcast.lane.b32.xlu0 %v1107, 256
        %v1110 = vpop.permute.xlu0 %1109
        %v1111 = vlaneseq
        %v1112 = vshrl.u32 %v1111, 7
        %v1113 = vsub.s32 4, %v1112
        %v1114 = vrot.slane %v905, %v1113
        %1116 = vbcast.lane.b32.xlu0 %v1114, 256
        %v1117 = vpop.permute.xlu0 %1116
        %v1118 = vlaneseq
        %v1119 = vshrl.u32 %v1118, 7
        %v1120 = vsub.s32 5, %v1119
        %v1121 = vrot.slane %v905, %v1120
        %1123 = vbcast.lane.b32.xlu0 %v1121, 256
        %v1124 = vpop.permute.xlu0 %1123
        %v1125 = vlaneseq
        %v1126 = vshrl.u32 %v1125, 7
        %v1127 = vsub.s32 6, %v1126
        %v1128 = vrot.slane %v905, %v1127
        %1130 = vbcast.lane.b32.xlu0 %v1128, 256
        %v1131 = vpop.permute.xlu0 %1130
        %v1132 = vlaneseq
        %v1133 = vshrl.u32 %v1132, 7
        %v1134 = vsub.s32 7, %v1133
        %v1135 = vrot.slane %v905, %v1134
        %1137 = vbcast.lane.b32.xlu0 %v1135, 256
        %v1138 = vpop.permute.xlu0 %1137
        %v1139 = vlaneseq
        %v1140 = vshrl.u32 %v1139, 7
        %v1141 = vsub.s32 0, %v1140
        %v1142 = vrot.slane %v906, %v1141
        %1144 = vbcast.lane.b32.xlu0 %v1142, 256
        %v1145 = vpop.permute.xlu0 %1144
        %v1146 = vlaneseq
        %v1147 = vshrl.u32 %v1146, 7
        %v1148 = vsub.s32 1, %v1147
        %v1149 = vrot.slane %v906, %v1148
        %1151 = vbcast.lane.b32.xlu0 %v1149, 256
        %v1152 = vpop.permute.xlu0 %1151
        %v1153 = vlaneseq
        %v1154 = vshrl.u32 %v1153, 7
        %v1155 = vsub.s32 2, %v1154
        %v1156 = vrot.slane %v906, %v1155
        %1158 = vbcast.lane.b32.xlu0 %v1156, 256
        %v1159 = vpop.permute.xlu0 %1158
        %v1160 = vlaneseq
        %v1161 = vshrl.u32 %v1160, 7
        %v1162 = vsub.s32 3, %v1161
        %v1163 = vrot.slane %v906, %v1162
        %1165 = vbcast.lane.b32.xlu0 %v1163, 256
        %v1166 = vpop.permute.xlu0 %1165
        %v1167 = vlaneseq
        %v1168 = vshrl.u32 %v1167, 7
        %v1169 = vsub.s32 4, %v1168
        %v1170 = vrot.slane %v906, %v1169
        %1172 = vbcast.lane.b32.xlu0 %v1170, 256
        %v1173 = vpop.permute.xlu0 %1172
        %v1174 = vlaneseq
        %v1175 = vshrl.u32 %v1174, 7
        %v1176 = vsub.s32 5, %v1175
        %v1177 = vrot.slane %v906, %v1176
        %1179 = vbcast.lane.b32.xlu0 %v1177, 256
        %v1180 = vpop.permute.xlu0 %1179
        %v1181 = vlaneseq
        %v1182 = vshrl.u32 %v1181, 7
        %v1183 = vsub.s32 6, %v1182
        %v1184 = vrot.slane %v906, %v1183
        %1186 = vbcast.lane.b32.xlu0 %v1184, 256
        %v1187 = vpop.permute.xlu0 %1186
        %v1188 = vlaneseq
        %v1189 = vshrl.u32 %v1188, 7
        %v1190 = vsub.s32 7, %v1189
        %v1191 = vrot.slane %v906, %v1190
        %1193 = vbcast.lane.b32.xlu0 %v1191, 256
        %v1194 = vpop.permute.xlu0 %1193
        %v1195 = vlaneseq
        %v1196 = vshrl.u32 %v1195, 7
        %v1197 = vsub.s32 0, %v1196
        %v1198 = vrot.slane %v907, %v1197
        %1200 = vbcast.lane.b32.xlu0 %v1198, 256
        %v1201 = vpop.permute.xlu0 %1200
        %v1202 = vlaneseq
        %v1203 = vshrl.u32 %v1202, 7
        %v1204 = vsub.s32 1, %v1203
        %v1205 = vrot.slane %v907, %v1204
        %1207 = vbcast.lane.b32.xlu0 %v1205, 256
        %v1208 = vpop.permute.xlu0 %1207
        %v1209 = vlaneseq
        %v1210 = vshrl.u32 %v1209, 7
        %v1211 = vsub.s32 2, %v1210
        %v1212 = vrot.slane %v907, %v1211
        %1214 = vbcast.lane.b32.xlu0 %v1212, 256
        %v1215 = vpop.permute.xlu0 %1214
        %v1216 = vlaneseq
        %v1217 = vshrl.u32 %v1216, 7
        %v1218 = vsub.s32 3, %v1217
        %v1219 = vrot.slane %v907, %v1218
        %1221 = vbcast.lane.b32.xlu0 %v1219, 256
        %v1222 = vpop.permute.xlu0 %1221
        %v1223 = vlaneseq
        %v1224 = vshrl.u32 %v1223, 7
        %v1225 = vsub.s32 4, %v1224
        %v1226 = vrot.slane %v907, %v1225
        %1228 = vbcast.lane.b32.xlu0 %v1226, 256
        %v1229 = vpop.permute.xlu0 %1228
        %v1230 = vlaneseq
        %v1231 = vshrl.u32 %v1230, 7
        %v1232 = vsub.s32 5, %v1231
        %v1233 = vrot.slane %v907, %v1232
        %1235 = vbcast.lane.b32.xlu0 %v1233, 256
        %v1236 = vpop.permute.xlu0 %1235
        %v1237 = vlaneseq
        %v1238 = vshrl.u32 %v1237, 7
        %v1239 = vsub.s32 6, %v1238
        %v1240 = vrot.slane %v907, %v1239
        %1242 = vbcast.lane.b32.xlu0 %v1240, 256
        %v1243 = vpop.permute.xlu0 %1242
        %v1244 = vlaneseq
        %v1245 = vshrl.u32 %v1244, 7
        %v1246 = vsub.s32 7, %v1245
        %v1247 = vrot.slane %v907, %v1246
        %1249 = vbcast.lane.b32.xlu0 %v1247, 256
        %v1250 = vpop.permute.xlu0 %1249
        %vm1251 = vcmp.eq.s32.totalorder %v1033, %v1026
        %vm1252 = vcmp.eq.s32.totalorder %v1040, %v1026
        %vm1253 = vcmp.eq.s32.totalorder %v1047, %v1026
        %vm1254 = vcmp.eq.s32.totalorder %v1054, %v1026
        %vm1255 = vcmp.eq.s32.totalorder %v1061, %v1026
        %vm1256 = vcmp.eq.s32.totalorder %v1068, %v1026
        %vm1257 = vcmp.eq.s32.totalorder %v1075, %v1026
        %vm1258 = vcmp.eq.s32.totalorder %v1082, %v1026
        %vm1259 = vcmp.eq.s32.totalorder %v1089, %v1026
        %vm1260 = vcmp.eq.s32.totalorder %v1096, %v1026
        %vm1261 = vcmp.eq.s32.totalorder %v1103, %v1026
        %vm1262 = vcmp.eq.s32.totalorder %v1110, %v1026
        %vm1263 = vcmp.eq.s32.totalorder %v1117, %v1026
        %vm1264 = vcmp.eq.s32.totalorder %v1124, %v1026
        %vm1265 = vcmp.eq.s32.totalorder %v1131, %v1026
        %vm1266 = vcmp.eq.s32.totalorder %v1138, %v1026
        %vm1267 = vcmp.eq.s32.totalorder %v1145, %v1026
        %vm1268 = vcmp.eq.s32.totalorder %v1152, %v1026
        %vm1269 = vcmp.eq.s32.totalorder %v1159, %v1026
        %vm1270 = vcmp.eq.s32.totalorder %v1166, %v1026
        %vm1271 = vcmp.eq.s32.totalorder %v1173, %v1026
        %vm1272 = vcmp.eq.s32.totalorder %v1180, %v1026
        %vm1273 = vcmp.eq.s32.totalorder %v1187, %v1026
        %vm1274 = vcmp.eq.s32.totalorder %v1194, %v1026
        %vm1275 = vcmp.eq.s32.totalorder %v1201, %v1026
        %vm1276 = vcmp.eq.s32.totalorder %v1208, %v1026
        %vm1277 = vcmp.eq.s32.totalorder %v1215, %v1026
        %vm1278 = vcmp.eq.s32.totalorder %v1222, %v1026
        %vm1279 = vcmp.eq.s32.totalorder %v1229, %v1026
        %vm1280 = vcmp.eq.s32.totalorder %v1236, %v1026
        %vm1281 = vcmp.eq.s32.totalorder %v1243, %v1026
        %vm1282 = vcmp.eq.s32.totalorder %v1250, %v1026
        %v1283 = vsel %vm1251, 1, 0
        %v1284 = vsel %vm1252, 1, 0
        %v1285 = vsel %vm1253, 1, 0
        %v1286 = vsel %vm1254, 1, 0
        %v1287 = vsel %vm1255, 1, 0
        %v1288 = vsel %vm1256, 1, 0
        %v1289 = vsel %vm1257, 1, 0
        %v1290 = vsel %vm1258, 1, 0
        %v1291 = vsel %vm1259, 1, 0
        %v1292 = vsel %vm1260, 1, 0
        %v1293 = vsel %vm1261, 1, 0
        %v1294 = vsel %vm1262, 1, 0
        %v1295 = vsel %vm1263, 1, 0
        %v1296 = vsel %vm1264, 1, 0
        %v1297 = vsel %vm1265, 1, 0
        %v1298 = vsel %vm1266, 1, 0
        %v1299 = vsel %vm1267, 1, 0
        %v1300 = vsel %vm1268, 1, 0
        %v1301 = vsel %vm1269, 1, 0
        %v1302 = vsel %vm1270, 1, 0
        %v1303 = vsel %vm1271, 1, 0
        %v1304 = vsel %vm1272, 1, 0
        %v1305 = vsel %vm1273, 1, 0
        %v1306 = vsel %vm1274, 1, 0
        %v1307 = vsel %vm1275, 1, 0
        %v1308 = vsel %vm1276, 1, 0
        %v1309 = vsel %vm1277, 1, 0
        %v1310 = vsel %vm1278, 1, 0
        %v1311 = vsel %vm1279, 1, 0
        %v1312 = vsel %vm1280, 1, 0
        %v1313 = vsel %vm1281, 1, 0
        %v1314 = vsel %vm1282, 1, 0
        %v1315 = vcvt.s32.f32 %v1283
        %v1316 = vcvt.s32.f32 %v1284
        %v1317 = vcvt.s32.f32 %v1285
        %v1318 = vcvt.s32.f32 %v1286
        %v1319 = vcvt.s32.f32 %v1287
        %v1320 = vcvt.s32.f32 %v1288
        %v1321 = vcvt.s32.f32 %v1289
        %v1322 = vcvt.s32.f32 %v1290
        %v1323 = vcvt.s32.f32 %v1291
        %v1324 = vcvt.s32.f32 %v1292
        %v1325 = vcvt.s32.f32 %v1293
        %v1326 = vcvt.s32.f32 %v1294
        %v1327 = vcvt.s32.f32 %v1295
        %v1328 = vcvt.s32.f32 %v1296
        %v1329 = vcvt.s32.f32 %v1297
        %v1330 = vcvt.s32.f32 %v1298
        %v1331 = vcvt.s32.f32 %v1299
        %v1332 = vcvt.s32.f32 %v1300
        %v1333 = vcvt.s32.f32 %v1301
        %v1334 = vcvt.s32.f32 %v1302
        %v1335 = vcvt.s32.f32 %v1303
        %v1336 = vcvt.s32.f32 %v1304
        %v1337 = vcvt.s32.f32 %v1305
        %v1338 = vcvt.s32.f32 %v1306
        %v1339 = vcvt.s32.f32 %v1307
        %v1340 = vcvt.s32.f32 %v1308
        %v1341 = vcvt.s32.f32 %v1309
        %v1342 = vcvt.s32.f32 %v1310
        %v1343 = vcvt.s32.f32 %v1311
        %v1344 = vcvt.s32.f32 %v1312
        %v1345 = vcvt.s32.f32 %v1313
        %v1346 = vcvt.s32.f32 %v1314
        %v1347 = vpack.c.bf16 %v1316, %v1315
        %v1348 = vpack.c.bf16 %v1318, %v1317
        %v1349 = vpack.c.bf16 %v1320, %v1319
        %v1350 = vpack.c.bf16 %v1322, %v1321
        %v1351 = vpack.c.bf16 %v1324, %v1323
        %v1352 = vpack.c.bf16 %v1326, %v1325
        %v1353 = vpack.c.bf16 %v1328, %v1327
        %v1354 = vpack.c.bf16 %v1330, %v1329
        %v1355 = vpack.c.bf16 %v1332, %v1331
        %v1356 = vpack.c.bf16 %v1334, %v1333
        %v1357 = vpack.c.bf16 %v1336, %v1335
        %v1358 = vpack.c.bf16 %v1338, %v1337
        %v1359 = vpack.c.bf16 %v1340, %v1339
        %v1360 = vpack.c.bf16 %v1342, %v1341
        %v1361 = vpack.c.bf16 %v1344, %v1343
        %v1362 = vpack.c.bf16 %v1346, %v1345
        %vm1363 = vcmask 261120
        %v1365 = vsel %vm1363, %v1347, 0
        %v1368 = vsel %vm1363, %v1348, 0
        %v1371 = vsel %vm1363, %v1349, 0
        %v1374 = vsel %vm1363, %v1350, 0
        %v1377 = vsel %vm1363, %v1351, 0
        %v1380 = vsel %vm1363, %v1352, 0
        %v1383 = vsel %vm1363, %v1353, 0
        %v1386 = vsel %vm1363, %v1354, 0
        %v1389 = vsel %vm1363, %v1355, 0
        %v1392 = vsel %vm1363, %v1356, 0
        %v1395 = vsel %vm1363, %v1357, 0
        %v1398 = vsel %vm1363, %v1358, 0
        %v1401 = vsel %vm1363, %v1359, 0
        %v1404 = vsel %vm1363, %v1360, 0
        %v1407 = vsel %vm1363, %v1361, 0
        %v1410 = vsel %vm1363, %v1362, 0
        %1412 = vmatprep.subr.bf16.mxu0 0
        %1413 = vmatpush1.bf16.msra.mxu0 %v1023
        %1414 = vmatprep.subr.bf16.mxu0 0
        %1415 = vmatpush1.bf16.msra.mxu0 %v1024
        %1416 = vmatprep.subr.bf16.mxu0 0
        %1417 = vmatpush1.bf16.msra.mxu0 0
        %1418 = vmatprep.subr.bf16.mxu0 0
        %1419 = vmatpush1.bf16.msra.mxu0 0
        %1420 = vmatprep.subr.bf16.mxu0 0
        %1421 = vmatpush1.bf16.msra.mxu0 0
        %1422 = vmatprep.subr.bf16.mxu0 0
        %1423 = vmatpush1.bf16.msra.mxu0 0
        %1424 = vmatprep.subr.bf16.mxu0 0
        %1425 = vmatpush1.bf16.msra.mxu0 0
        %1426 = vmatprep.subr.bf16.mxu0 0
        %1427 = vmatpush1.bf16.msra.mxu0 0
        %1428 = vmatprep.subr.bf16.mxu0 0
        %1429 = vmatpush1.bf16.msra.mxu0 0
        %1430 = vmatprep.subr.bf16.mxu0 0
        %1431 = vmatpush1.bf16.msra.mxu0 0
        %1432 = vmatprep.subr.bf16.mxu0 0
        %1433 = vmatpush1.bf16.msra.mxu0 0
        %1434 = vmatprep.subr.bf16.mxu0 0
        %1435 = vmatpush1.bf16.msra.mxu0 0
        %1436 = vmatprep.subr.bf16.mxu0 0
        %1437 = vmatpush1.bf16.msra.mxu0 0
        %1438 = vmatprep.subr.bf16.mxu0 0
        %1439 = vmatpush1.bf16.msra.mxu0 0
        %1440 = vmatprep.subr.bf16.mxu0 0
        %1441 = vmatpush1.bf16.msra.mxu0 0
        %1442 = vmatprep.subr.bf16.mxu0 0
        %1443 = vmatpush1.bf16.msra.mxu0 0
        %1444 = vmatprep.mubr.bf16.mxu0 0
        %1445 = vmatmul.mubr.bf16.gmra.mrb[0].mxu0 %v1365
        %v1446 = vpop.f32.mrb[0].mxu0
        %v1447 = vadd.f32 0.0, %v1446
        %v1448 = vpop.f32.mrb[0].mxu0
        %v1449 = vpop.f32.mrb[0].mxu0
        %v1450 = vadd.f32 0.0, %v1449
        %v1451 = vpop.f32.mrb[0].mxu0
        %1452 = vmatprep.mubr.bf16.mxu0 0
        %1453 = vmatmul.mubr.bf16.gmra.mrb[0].mxu0 %v1368
        %v1454 = vpop.f32.mrb[0].mxu0
        %v1455 = vadd.f32 0.0, %v1454
        %v1456 = vpop.f32.mrb[0].mxu0
        %v1457 = vpop.f32.mrb[0].mxu0
        %v1458 = vadd.f32 0.0, %v1457
        %v1459 = vpop.f32.mrb[0].mxu0
        %1460 = vmatprep.mubr.bf16.mxu0 0
        %1461 = vmatmul.mubr.bf16.gmra.mrb[0].mxu0 %v1371
        %v1462 = vpop.f32.mrb[0].mxu0
        %v1463 = vadd.f32 0.0, %v1462
        %v1464 = vpop.f32.mrb[0].mxu0
        %v1465 = vpop.f32.mrb[0].mxu0
        %v1466 = vadd.f32 0.0, %v1465
        %v1467 = vpop.f32.mrb[0].mxu0
        %1468 = vmatprep.mubr.bf16.mxu0 0
        %1469 = vmatmul.mubr.bf16.gmra.mrb[0].mxu0 %v1374
        %v1470 = vpop.f32.mrb[0].mxu0
        %v1471 = vadd.f32 0.0, %v1470
        %v1472 = vpop.f32.mrb[0].mxu0
        %v1473 = vpop.f32.mrb[0].mxu0
        %v1474 = vadd.f32 0.0, %v1473
        %v1475 = vpop.f32.mrb[0].mxu0
        %1476 = vmatprep.mubr.bf16.mxu0 0
        %1477 = vmatmul.mubr.bf16.gmra.mrb[0].mxu0 %v1377
        %v1478 = vpop.f32.mrb[0].mxu0
        %v1479 = vadd.f32 0.0, %v1478
        %v1480 = vpop.f32.mrb[0].mxu0
        %v1481 = vpop.f32.mrb[0].mxu0
        %v1482 = vadd.f32 0.0, %v1481
        %v1483 = vpop.f32.mrb[0].mxu0
        %1484 = vmatprep.mubr.bf16.mxu0 0
        %1485 = vmatmul.mubr.bf16.gmra.mrb[0].mxu0 %v1380
        %v1486 = vpop.f32.mrb[0].mxu0
        %v1487 = vadd.f32 0.0, %v1486
        %v1488 = vpop.f32.mrb[0].mxu0
        %v1489 = vpop.f32.mrb[0].mxu0
        %v1490 = vadd.f32 0.0, %v1489
        %v1491 = vpop.f32.mrb[0].mxu0
        %1492 = vmatprep.mubr.bf16.mxu0 0
        %1493 = vmatmul.mubr.bf16.gmra.mrb[0].mxu0 %v1383
        %v1494 = vpop.f32.mrb[0].mxu0
        %v1495 = vadd.f32 0.0, %v1494
        %v1496 = vpop.f32.mrb[0].mxu0
        %v1497 = vpop.f32.mrb[0].mxu0
        %v1498 = vadd.f32 0.0, %v1497
        %v1499 = vpop.f32.mrb[0].mxu0
        %1500 = vmatprep.mubr.bf16.mxu0 0
        %1501 = vmatmul.mubr.bf16.gmra.mrb[0].mxu0 %v1386
        %v1502 = vpop.f32.mrb[0].mxu0
        %v1503 = vadd.f32 0.0, %v1502
        %v1504 = vpop.f32.mrb[0].mxu0
        %v1505 = vpop.f32.mrb[0].mxu0
        %v1506 = vadd.f32 0.0, %v1505
        %v1507 = vpop.f32.mrb[0].mxu0
        %1508 = vmatprep.mubr.bf16.mxu0 0
        %1509 = vmatmul.mubr.bf16.gmra.mrb[0].mxu0 %v1389
        %v1510 = vpop.f32.mrb[0].mxu0
        %v1511 = vadd.f32 0.0, %v1510
        %v1512 = vpop.f32.mrb[0].mxu0
        %v1513 = vpop.f32.mrb[0].mxu0
        %v1514 = vadd.f32 0.0, %v1513
        %v1515 = vpop.f32.mrb[0].mxu0
        %1516 = vmatprep.mubr.bf16.mxu0 0
        %1517 = vmatmul.mubr.bf16.gmra.mrb[0].mxu0 %v1392
        %v1518 = vpop.f32.mrb[0].mxu0
        %v1519 = vadd.f32 0.0, %v1518
        %v1520 = vpop.f32.mrb[0].mxu0
        %v1521 = vpop.f32.mrb[0].mxu0
        %v1522 = vadd.f32 0.0, %v1521
        %v1523 = vpop.f32.mrb[0].mxu0
        %1524 = vmatprep.mubr.bf16.mxu0 0
        %1525 = vmatmul.mubr.bf16.gmra.mrb[0].mxu0 %v1395
        %v1526 = vpop.f32.mrb[0].mxu0
        %v1527 = vadd.f32 0.0, %v1526
        %v1528 = vpop.f32.mrb[0].mxu0
        %v1529 = vpop.f32.mrb[0].mxu0
        %v1530 = vadd.f32 0.0, %v1529
        %v1531 = vpop.f32.mrb[0].mxu0
        %1532 = vmatprep.mubr.bf16.mxu0 0
        %1533 = vmatmul.mubr.bf16.gmra.mrb[0].mxu0 %v1398
        %v1534 = vpop.f32.mrb[0].mxu0
        %v1535 = vadd.f32 0.0, %v1534
        %v1536 = vpop.f32.mrb[0].mxu0
        %v1537 = vpop.f32.mrb[0].mxu0
        %v1538 = vadd.f32 0.0, %v1537
        %v1539 = vpop.f32.mrb[0].mxu0
        %1540 = vmatprep.mubr.bf16.mxu0 0
        %1541 = vmatmul.mubr.bf16.gmra.mrb[0].mxu0 %v1401
        %v1542 = vpop.f32.mrb[0].mxu0
        %v1543 = vadd.f32 0.0, %v1542
        %v1544 = vpop.f32.mrb[0].mxu0
        %v1545 = vpop.f32.mrb[0].mxu0
        %v1546 = vadd.f32 0.0, %v1545
        %v1547 = vpop.f32.mrb[0].mxu0
        %1548 = vmatprep.mubr.bf16.mxu0 0
        %1549 = vmatmul.mubr.bf16.gmra.mrb[0].mxu0 %v1404
        %v1550 = vpop.f32.mrb[0].mxu0
        %v1551 = vadd.f32 0.0, %v1550
        %v1552 = vpop.f32.mrb[0].mxu0
        %v1553 = vpop.f32.mrb[0].mxu0
        %v1554 = vadd.f32 0.0, %v1553
        %v1555 = vpop.f32.mrb[0].mxu0
        %1556 = vmatprep.mubr.bf16.mxu0 0
        %1557 = vmatmul.mubr.bf16.gmra.mrb[0].mxu0 %v1407
        %v1558 = vpop.f32.mrb[0].mxu0
        %v1559 = vadd.f32 0.0, %v1558
        %v1560 = vpop.f32.mrb[0].mxu0
        %v1561 = vpop.f32.mrb[0].mxu0
        %v1562 = vadd.f32 0.0, %v1561
        %v1563 = vpop.f32.mrb[0].mxu0
        %1564 = vmatprep.mubr.bf16.mxu0 0
        %1565 = vmatmul.mubr.bf16.gmra.mrb[0].mxu0 %v1410
        %v1566 = vpop.f32.mrb[0].mxu0
        %v1567 = vadd.f32 0.0, %v1566
        %v1568 = vpop.f32.mrb[0].mxu0
        %v1569 = vpop.f32.mrb[0].mxu0
        %v1570 = vadd.f32 0.0, %v1569
        %v1571 = vpop.f32.mrb[0].mxu0
        %1572 = vdwg.mxu0
        %v1573 = vld [vmem:[#allocation10] sm:$0xf]
        %v1574 = vld [vmem:[#allocation10 + $0x4] sm:$0xf]
        %v1575 = vld [vmem:[#allocation10 + $0x8] sm:$0xf]
        %v1576 = vld [vmem:[#allocation10 + $0xc] sm:$0xf]
        %v1577 = vld [vmem:[#allocation10 + $0x10] sm:$0xf]
        %v1578 = vld [vmem:[#allocation10 + $0x14] sm:$0xf]
        %v1579 = vld [vmem:[#allocation10 + $0x18] sm:$0xf]
        %v1580 = vld [vmem:[#allocation10 + $0x1c] sm:$0xf]
        %v1581 = vld [vmem:[#allocation10 + $0x20] sm:$0xf]
        %v1582 = vld [vmem:[#allocation10 + $0x24] sm:$0xf]
        %v1583 = vld [vmem:[#allocation10 + $0x28] sm:$0xf]
        %v1584 = vld [vmem:[#allocation10 + $0x2c] sm:$0xf]
        %v1585 = vld [vmem:[#allocation10 + $0x30] sm:$0xf]
        %v1586 = vld [vmem:[#allocation10 + $0x34] sm:$0xf]
        %v1587 = vld [vmem:[#allocation10 + $0x38] sm:$0xf]
        %v1588 = vld [vmem:[#allocation10 + $0x3c] sm:$0xf]
        %v1621 = vunpack.c.l.b16 %v752
        %v1622 = vunpack.c.l.b16 %v753
        %v1623 = vunpack.c.l.b16 %v754
        %v1624 = vunpack.c.l.b16 %v755
        %v1625 = vunpack.c.l.b16 %v756
        %v1626 = vunpack.c.l.b16 %v757
        %v1627 = vunpack.c.l.b16 %v758
        %v1628 = vunpack.c.l.b16 %v759
        %v1629 = vunpack.c.l.b16 %v760
        %v1630 = vunpack.c.l.b16 %v761
        %v1631 = vunpack.c.l.b16 %v762
        %v1632 = vunpack.c.l.b16 %v763
        %v1633 = vunpack.c.l.b16 %v764
        %v1634 = vunpack.c.l.b16 %v765
        %v1635 = vunpack.c.l.b16 %v766
        %v1636 = vunpack.c.l.b16 %v767
        %v1637 = vunpack.c.l.b16 %v768
        %v1638 = vunpack.c.l.b16 %v769
        %v1639 = vunpack.c.l.b16 %v770
        %v1640 = vunpack.c.l.b16 %v771
        %v1641 = vunpack.c.l.b16 %v772
        %v1642 = vunpack.c.l.b16 %v773
        %v1643 = vunpack.c.l.b16 %v774
        %v1644 = vunpack.c.l.b16 %v775
        %v1645 = vunpack.c.l.b16 %v776
        %v1646 = vunpack.c.l.b16 %v777
        %v1647 = vunpack.c.l.b16 %v778
        %v1648 = vunpack.c.l.b16 %v779
        %v1649 = vunpack.c.l.b16 %v780
        %v1650 = vunpack.c.l.b16 %v781
        %v1651 = vunpack.c.l.b16 %v782
        %v1652 = vunpack.c.l.b16 %v783
        %v1653 = vpack.c.b16 %v1622, %v1621
        %v1654 = vpack.c.b16 %v1624, %v1623
        %v1655 = vpack.c.b16 %v1626, %v1625
        %v1656 = vpack.c.b16 %v1628, %v1627
        %v1657 = vpack.c.b16 %v1630, %v1629
        %v1658 = vpack.c.b16 %v1632, %v1631
        %v1659 = vpack.c.b16 %v1634, %v1633
        %v1660 = vpack.c.b16 %v1636, %v1635
        %v1661 = vpack.c.b16 %v1638, %v1637
        %v1662 = vpack.c.b16 %v1640, %v1639
        %v1663 = vpack.c.b16 %v1642, %v1641
        %v1664 = vpack.c.b16 %v1644, %v1643
        %v1665 = vpack.c.b16 %v1646, %v1645
        %v1666 = vpack.c.b16 %v1648, %v1647
        %v1667 = vpack.c.b16 %v1650, %v1649
        %v1668 = vpack.c.b16 %v1652, %v1651
        %v1701 = vunpack.c.l.b16 %v1573
        %v1702 = vunpack.c.l.b16 %v1574
        %v1703 = vunpack.c.l.b16 %v1575
        %v1704 = vunpack.c.l.b16 %v1576
        %v1705 = vunpack.c.l.b16 %v1577
        %v1706 = vunpack.c.l.b16 %v1578
        %v1707 = vunpack.c.l.b16 %v1579
        %v1708 = vunpack.c.l.b16 %v1580
        %v1709 = vunpack.c.l.b16 %v1581
        %v1710 = vunpack.c.l.b16 %v1582
        %v1711 = vunpack.c.l.b16 %v1583
        %v1712 = vunpack.c.l.b16 %v1584
        %v1713 = vunpack.c.l.b16 %v1585
        %v1714 = vunpack.c.l.b16 %v1586
        %v1715 = vunpack.c.l.b16 %v1587
        %v1716 = vunpack.c.l.b16 %v1588
        %v1717 = vpack.c.b16 %v1702, %v1701
        %v1718 = vpack.c.b16 %v1704, %v1703
        %v1719 = vpack.c.b16 %v1706, %v1705
        %v1720 = vpack.c.b16 %v1708, %v1707
        %v1721 = vpack.c.b16 %v1710, %v1709
        %v1722 = vpack.c.b16 %v1712, %v1711
        %v1723 = vpack.c.b16 %v1714, %v1713
        %v1724 = vpack.c.b16 %v1716, %v1715
        %1733 = vmatprep.subr.bf16.mxu0 0
        %1734 = vmatpush1.bf16.msra.mxu0 %v1717
        %1735 = vmatprep.subr.bf16.mxu0 0
        %1736 = vmatpush1.bf16.msra.mxu0 %v1718
        %1737 = vmatprep.subr.bf16.mxu0 0
        %1738 = vmatpush1.bf16.msra.mxu0 %v1719
        %1739 = vmatprep.subr.bf16.mxu0 0
        %1740 = vmatpush1.bf16.msra.mxu0 %v1720
        %1741 = vmatprep.subr.bf16.mxu0 0
        %1742 = vmatpush1.bf16.msra.mxu0 %v1721
        %1743 = vmatprep.subr.bf16.mxu0 0
        %1744 = vmatpush1.bf16.msra.mxu0 %v1722
        %1745 = vmatprep.subr.bf16.mxu0 0
        %1746 = vmatpush1.bf16.msra.mxu0 %v1723
        %1747 = vmatprep.subr.bf16.mxu0 0
        %1748 = vmatpush1.bf16.msra.mxu0 %v1724
        %1749 = vmatprep.subr.bf16.mxu0 0
        %1750 = vmatpush1.bf16.msra.mxu0 0
        %1751 = vmatprep.subr.bf16.mxu0 0
        %1752 = vmatpush1.bf16.msra.mxu0 0
        %1753 = vmatprep.subr.bf16.mxu0 0
        %1754 = vmatpush1.bf16.msra.mxu0 0
        %1755 = vmatprep.subr.bf16.mxu0 0
        %1756 = vmatpush1.bf16.msra.mxu0 0
        %1757 = vmatprep.subr.bf16.mxu0 0
        %1758 = vmatpush1.bf16.msra.mxu0 0
        %1759 = vmatprep.subr.bf16.mxu0 0
        %1760 = vmatpush1.bf16.msra.mxu0 0
        %1761 = vmatprep.subr.bf16.mxu0 0
        %1762 = vmatpush1.bf16.msra.mxu0 0
        %1763 = vmatprep.subr.bf16.mxu0 0
        %1764 = vmatpush1.bf16.msra.mxu0 0
        %1765 = vmatprep.mubr.bf16.mxu0 0
        %1766 = vmatmul.mubr.bf16.gmra.mrb[0].mxu0 %v1653
        %v1767 = vpop.f32.mrb[0].mxu0
        %v1768 = vadd.f32 %v1447, %v1767
        %v1769 = vpop.f32.mrb[0].mxu0
        %v1770 = vpop.f32.mrb[0].mxu0
        %v1771 = vadd.f32 %v1450, %v1770
        %v1772 = vpop.f32.mrb[0].mxu0
        %1773 = vmatprep.mubr.bf16.mxu0 0
        %1774 = vmatmul.mubr.bf16.gmra.mrb[0].mxu0 %v1654
        %v1775 = vpop.f32.mrb[0].mxu0
        %v1776 = vadd.f32 %v1455, %v1775
        %v1777 = vpop.f32.mrb[0].mxu0
        %v1778 = vpop.f32.mrb[0].mxu0
        %v1779 = vadd.f32 %v1458, %v1778
        %v1780 = vpop.f32.mrb[0].mxu0
        %1781 = vmatprep.mubr.bf16.mxu0 0
        %1782 = vmatmul.mubr.bf16.gmra.mrb[0].mxu0 %v1655
        %v1783 = vpop.f32.mrb[0].mxu0
        %v1784 = vadd.f32 %v1463, %v1783
        %v1785 = vpop.f32.mrb[0].mxu0
        %v1786 = vpop.f32.mrb[0].mxu0
        %v1787 = vadd.f32 %v1466, %v1786
        %v1788 = vpop.f32.mrb[0].mxu0
        %1789 = vmatprep.mubr.bf16.mxu0 0
        %1790 = vmatmul.mubr.bf16.gmra.mrb[0].mxu0 %v1656
        %v1791 = vpop.f32.mrb[0].mxu0
        %v1792 = vadd.f32 %v1471, %v1791
        %v1793 = vpop.f32.mrb[0].mxu0
        %v1794 = vpop.f32.mrb[0].mxu0
        %v1795 = vadd.f32 %v1474, %v1794
        %v1796 = vpop.f32.mrb[0].mxu0
        %1797 = vmatprep.mubr.bf16.mxu0 0
        %1798 = vmatmul.mubr.bf16.gmra.mrb[0].mxu0 %v1657
        %v1799 = vpop.f32.mrb[0].mxu0
        %v1800 = vadd.f32 %v1479, %v1799
        %v1801 = vpop.f32.mrb[0].mxu0
        %v1802 = vpop.f32.mrb[0].mxu0
        %v1803 = vadd.f32 %v1482, %v1802
        %v1804 = vpop.f32.mrb[0].mxu0
        %1805 = vmatprep.mubr.bf16.mxu0 0
        %1806 = vmatmul.mubr.bf16.gmra.mrb[0].mxu0 %v1658
        %v1807 = vpop.f32.mrb[0].mxu0
        %v1808 = vadd.f32 %v1487, %v1807
        %v1809 = vpop.f32.mrb[0].mxu0
        %v1810 = vpop.f32.mrb[0].mxu0
        %v1811 = vadd.f32 %v1490, %v1810
        %v1812 = vpop.f32.mrb[0].mxu0
        %1813 = vmatprep.mubr.bf16.mxu0 0
        %1814 = vmatmul.mubr.bf16.gmra.mrb[0].mxu0 %v1659
        %v1815 = vpop.f32.mrb[0].mxu0
        %v1816 = vadd.f32 %v1495, %v1815
        %v1817 = vpop.f32.mrb[0].mxu0
        %v1818 = vpop.f32.mrb[0].mxu0
        %v1819 = vadd.f32 %v1498, %v1818
        %v1820 = vpop.f32.mrb[0].mxu0
        %1821 = vmatprep.mubr.bf16.mxu0 0
        %1822 = vmatmul.mubr.bf16.gmra.mrb[0].mxu0 %v1660
        %v1823 = vpop.f32.mrb[0].mxu0
        %v1824 = vadd.f32 %v1503, %v1823
        %v1825 = vpop.f32.mrb[0].mxu0
        %v1826 = vpop.f32.mrb[0].mxu0
        %v1827 = vadd.f32 %v1506, %v1826
        %v1828 = vpop.f32.mrb[0].mxu0
        %1829 = vmatprep.mubr.bf16.mxu0 0
        %1830 = vmatmul.mubr.bf16.gmra.mrb[0].mxu0 %v1661
        %v1831 = vpop.f32.mrb[0].mxu0
        %v1832 = vadd.f32 %v1511, %v1831
        %v1833 = vpop.f32.mrb[0].mxu0
        %v1834 = vpop.f32.mrb[0].mxu0
        %v1835 = vadd.f32 %v1514, %v1834
        %v1836 = vpop.f32.mrb[0].mxu0
        %1837 = vmatprep.mubr.bf16.mxu0 0
        %1838 = vmatmul.mubr.bf16.gmra.mrb[0].mxu0 %v1662
        %v1839 = vpop.f32.mrb[0].mxu0
        %v1840 = vadd.f32 %v1519, %v1839
        %v1841 = vpop.f32.mrb[0].mxu0
        %v1842 = vpop.f32.mrb[0].mxu0
        %v1843 = vadd.f32 %v1522, %v1842
        %v1844 = vpop.f32.mrb[0].mxu0
        %1845 = vmatprep.mubr.bf16.mxu0 0
        %1846 = vmatmul.mubr.bf16.gmra.mrb[0].mxu0 %v1663
        %v1847 = vpop.f32.mrb[0].mxu0
        %v1848 = vadd.f32 %v1527, %v1847
        %v1849 = vpop.f32.mrb[0].mxu0
        %v1850 = vpop.f32.mrb[0].mxu0
        %v1851 = vadd.f32 %v1530, %v1850
        %v1852 = vpop.f32.mrb[0].mxu0
        %1853 = vmatprep.mubr.bf16.mxu0 0
        %1854 = vmatmul.mubr.bf16.gmra.mrb[0].mxu0 %v1664
        %v1855 = vpop.f32.mrb[0].mxu0
        %v1856 = vadd.f32 %v1535, %v1855
        %v1857 = vpop.f32.mrb[0].mxu0
        %v1858 = vpop.f32.mrb[0].mxu0
        %v1859 = vadd.f32 %v1538, %v1858
        %v1860 = vpop.f32.mrb[0].mxu0
        %1861 = vmatprep.mubr.bf16.mxu0 0
        %1862 = vmatmul.mubr.bf16.gmra.mrb[0].mxu0 %v1665
        %v1863 = vpop.f32.mrb[0].mxu0
        %v1864 = vadd.f32 %v1543, %v1863
        %v1865 = vpop.f32.mrb[0].mxu0
        %v1866 = vpop.f32.mrb[0].mxu0
        %v1867 = vadd.f32 %v1546, %v1866
        %v1868 = vpop.f32.mrb[0].mxu0
        %1869 = vmatprep.mubr.bf16.mxu0 0
        %1870 = vmatmul.mubr.bf16.gmra.mrb[0].mxu0 %v1666
        %v1871 = vpop.f32.mrb[0].mxu0
        %v1872 = vadd.f32 %v1551, %v1871
        %v1873 = vpop.f32.mrb[0].mxu0
        %v1874 = vpop.f32.mrb[0].mxu0
        %v1875 = vadd.f32 %v1554, %v1874
        %v1876 = vpop.f32.mrb[0].mxu0
        %1877 = vmatprep.mubr.bf16.mxu0 0
        %1878 = vmatmul.mubr.bf16.gmra.mrb[0].mxu0 %v1667
        %v1879 = vpop.f32.mrb[0].mxu0
        %v1880 = vadd.f32 %v1559, %v1879
        %v1881 = vpop.f32.mrb[0].mxu0
        %v1882 = vpop.f32.mrb[0].mxu0
        %v1883 = vadd.f32 %v1562, %v1882
        %v1884 = vpop.f32.mrb[0].mxu0
        %1885 = vmatprep.mubr.bf16.mxu0 0
        %1886 = vmatmul.mubr.bf16.gmra.mrb[0].mxu0 %v1668
        %v1887 = vpop.f32.mrb[0].mxu0
        %v1888 = vadd.f32 %v1567, %v1887
        %v1889 = vpop.f32.mrb[0].mxu0
        %v1890 = vpop.f32.mrb[0].mxu0
        %v1891 = vadd.f32 %v1570, %v1890
        %v1892 = vpop.f32.mrb[0].mxu0
        %1893 = vdwg.mxu0
        %v1898 = vcombine.high %v890, %v890
        %v1900 = vunpack.c.l.s4 1966171168
        %v1901 = vunpack.c.0.s8 %v1900
        %v1902 = vlaneseq
        %v1903 = vshrl.u32 %v1902, 7
        %v1904 = vsub.s32 %v1901, %v1903
        %v1905 = vrot.slane %v890, %v1904
        %v1907 = vunpack.c.l.s4 1966171168
        %v1908 = vunpack.c.0.s8 %v1907
        %v1909 = vlaneseq
        %v1910 = vshrl.u32 %v1909, 7
        %v1911 = vsub.s32 %v1908, %v1910
        %v1912 = vrot.slane %v1898, %v1911
        %v1913 = vcombine.high %v1905, %v1905
        %v1914 = vcombine.high %v1912, %v1912
        %v1916 = vunpack.c.l.s4 1966171168
        %v1917 = vunpack.c.0.s8 %v1916
        %v1918 = vlaneseq
        %v1919 = vshrl.u32 %v1918, 7
        %v1920 = vsub.s32 %v1917, %v1919
        %v1921 = vrot.slane %v1905, %v1920
        %v1923 = vunpack.c.l.s4 1966171168
        %v1924 = vunpack.c.0.s8 %v1923
        %v1925 = vlaneseq
        %v1926 = vshrl.u32 %v1925, 7
        %v1927 = vsub.s32 %v1924, %v1926
        %v1928 = vrot.slane %v1912, %v1927
        %v1930 = vunpack.c.l.s4 1966171168
        %v1931 = vunpack.c.0.s8 %v1930
        %v1932 = vlaneseq
        %v1933 = vshrl.u32 %v1932, 7
        %v1934 = vsub.s32 %v1931, %v1933
        %v1935 = vrot.slane %v1913, %v1934
        %v1937 = vunpack.c.l.s4 1966171168
        %v1938 = vunpack.c.0.s8 %v1937
        %v1939 = vlaneseq
        %v1940 = vshrl.u32 %v1939, 7
        %v1941 = vsub.s32 %v1938, %v1940
        %v1942 = vrot.slane %v1914, %v1941
        %v1943 = vcombine.high %v1921, %v1921
        %v1944 = vcombine.high %v1928, %v1928
        %v1945 = vcombine.high %v1935, %v1935
        %v1946 = vcombine.high %v1942, %v1942
        %v1947 = vcombine.high %v893, %v893
        %v1949 = vunpack.c.l.s4 1966171168
        %v1950 = vunpack.c.0.s8 %v1949
        %v1951 = vlaneseq
        %v1952 = vshrl.u32 %v1951, 7
        %v1953 = vsub.s32 %v1950, %v1952
        %v1954 = vrot.slane %v893, %v1953
        %v1956 = vunpack.c.l.s4 1966171168
        %v1957 = vunpack.c.0.s8 %v1956
        %v1958 = vlaneseq
        %v1959 = vshrl.u32 %v1958, 7
        %v1960 = vsub.s32 %v1957, %v1959
        %v1961 = vrot.slane %v1947, %v1960
        %v1962 = vcombine.high %v1954, %v1954
        %v1963 = vcombine.high %v1961, %v1961
        %v1965 = vunpack.c.l.s4 1966171168
        %v1966 = vunpack.c.0.s8 %v1965
        %v1967 = vlaneseq
        %v1968 = vshrl.u32 %v1967, 7
        %v1969 = vsub.s32 %v1966, %v1968
        %v1970 = vrot.slane %v1954, %v1969
        %v1972 = vunpack.c.l.s4 1966171168
        %v1973 = vunpack.c.0.s8 %v1972
        %v1974 = vlaneseq
        %v1975 = vshrl.u32 %v1974, 7
        %v1976 = vsub.s32 %v1973, %v1975
        %v1977 = vrot.slane %v1961, %v1976
        %v1979 = vunpack.c.l.s4 1966171168
        %v1980 = vunpack.c.0.s8 %v1979
        %v1981 = vlaneseq
        %v1982 = vshrl.u32 %v1981, 7
        %v1983 = vsub.s32 %v1980, %v1982
        %v1984 = vrot.slane %v1962, %v1983
        %v1986 = vunpack.c.l.s4 1966171168
        %v1987 = vunpack.c.0.s8 %v1986
        %v1988 = vlaneseq
        %v1989 = vshrl.u32 %v1988, 7
        %v1990 = vsub.s32 %v1987, %v1989
        %v1991 = vrot.slane %v1963, %v1990
        %v1992 = vcombine.high %v1970, %v1970
        %v1993 = vcombine.high %v1977, %v1977
        %v1994 = vcombine.high %v1984, %v1984
        %v1995 = vcombine.high %v1991, %v1991
        %v1996 = vcombine.high %v898, %v898
        %v1998 = vunpack.c.l.s4 1966171168
        %v1999 = vunpack.c.0.s8 %v1998
        %v2000 = vlaneseq
        %v2001 = vshrl.u32 %v2000, 7
        %v2002 = vsub.s32 %v1999, %v2001
        %v2003 = vrot.slane %v898, %v2002
        %v2005 = vunpack.c.l.s4 1966171168
        %v2006 = vunpack.c.0.s8 %v2005
        %v2007 = vlaneseq
        %v2008 = vshrl.u32 %v2007, 7
        %v2009 = vsub.s32 %v2006, %v2008
        %v2010 = vrot.slane %v1996, %v2009
        %v2011 = vcombine.high %v2003, %v2003
        %v2012 = vcombine.high %v2010, %v2010
        %v2014 = vunpack.c.l.s4 1966171168
        %v2015 = vunpack.c.0.s8 %v2014
        %v2016 = vlaneseq
        %v2017 = vshrl.u32 %v2016, 7
        %v2018 = vsub.s32 %v2015, %v2017
        %v2019 = vrot.slane %v2003, %v2018
        %v2021 = vunpack.c.l.s4 1966171168
        %v2022 = vunpack.c.0.s8 %v2021
        %v2023 = vlaneseq
        %v2024 = vshrl.u32 %v2023, 7
        %v2025 = vsub.s32 %v2022, %v2024
        %v2026 = vrot.slane %v2010, %v2025
        %v2028 = vunpack.c.l.s4 1966171168
        %v2029 = vunpack.c.0.s8 %v2028
        %v2030 = vlaneseq
        %v2031 = vshrl.u32 %v2030, 7
        %v2032 = vsub.s32 %v2029, %v2031
        %v2033 = vrot.slane %v2011, %v2032
        %v2035 = vunpack.c.l.s4 1966171168
        %v2036 = vunpack.c.0.s8 %v2035
        %v2037 = vlaneseq
        %v2038 = vshrl.u32 %v2037, 7
        %v2039 = vsub.s32 %v2036, %v2038
        %v2040 = vrot.slane %v2012, %v2039
        %v2041 = vcombine.high %v2019, %v2019
        %v2042 = vcombine.high %v2026, %v2026
        %v2043 = vcombine.high %v2033, %v2033
        %v2044 = vcombine.high %v2040, %v2040
        %v2045 = vcombine.high %v901, %v901
        %v2047 = vunpack.c.l.s4 1966171168
        %v2048 = vunpack.c.0.s8 %v2047
        %v2049 = vlaneseq
        %v2050 = vshrl.u32 %v2049, 7
        %v2051 = vsub.s32 %v2048, %v2050
        %v2052 = vrot.slane %v901, %v2051
        %v2054 = vunpack.c.l.s4 1966171168
        %v2055 = vunpack.c.0.s8 %v2054
        %v2056 = vlaneseq
        %v2057 = vshrl.u32 %v2056, 7
        %v2058 = vsub.s32 %v2055, %v2057
        %v2059 = vrot.slane %v2045, %v2058
        %v2060 = vcombine.high %v2052, %v2052
        %v2061 = vcombine.high %v2059, %v2059
        %v2063 = vunpack.c.l.s4 1966171168
        %v2064 = vunpack.c.0.s8 %v2063
        %v2065 = vlaneseq
        %v2066 = vshrl.u32 %v2065, 7
        %v2067 = vsub.s32 %v2064, %v2066
        %v2068 = vrot.slane %v2052, %v2067
        %v2070 = vunpack.c.l.s4 1966171168
        %v2071 = vunpack.c.0.s8 %v2070
        %v2072 = vlaneseq
        %v2073 = vshrl.u32 %v2072, 7
        %v2074 = vsub.s32 %v2071, %v2073
        %v2075 = vrot.slane %v2059, %v2074
        %v2077 = vunpack.c.l.s4 1966171168
        %v2078 = vunpack.c.0.s8 %v2077
        %v2079 = vlaneseq
        %v2080 = vshrl.u32 %v2079, 7
        %v2081 = vsub.s32 %v2078, %v2080
        %v2082 = vrot.slane %v2060, %v2081
        %v2084 = vunpack.c.l.s4 1966171168
        %v2085 = vunpack.c.0.s8 %v2084
        %v2086 = vlaneseq
        %v2087 = vshrl.u32 %v2086, 7
        %v2088 = vsub.s32 %v2085, %v2087
        %v2089 = vrot.slane %v2061, %v2088
        %v2090 = vcombine.high %v2068, %v2068
        %v2091 = vcombine.high %v2075, %v2075
        %v2092 = vcombine.high %v2082, %v2082
        %v2093 = vcombine.high %v2089, %v2089
        %v2094 = vlaneseq
        %v2095 = vshrl.u32 %v2094, 7
        %v2096 = vsub.s32 0, %v2095
        %v2097 = vrot.slane %v1921, %v2096
        %v2098 = vlaneseq
        %v2099 = vshrl.u32 %v2098, 7
        %v2100 = vsub.s32 0, %v2099
        %v2101 = vrot.slane %v1935, %v2100
        %v2102 = vlaneseq
        %v2103 = vshrl.u32 %v2102, 7
        %v2104 = vsub.s32 0, %v2103
        %v2105 = vrot.slane %v1943, %v2104
        %v2106 = vlaneseq
        %v2107 = vshrl.u32 %v2106, 7
        %v2108 = vsub.s32 0, %v2107
        %v2109 = vrot.slane %v1945, %v2108
        %v2110 = vlaneseq
        %v2111 = vshrl.u32 %v2110, 7
        %v2112 = vsub.s32 0, %v2111
        %v2113 = vrot.slane %v1928, %v2112
        %v2114 = vlaneseq
        %v2115 = vshrl.u32 %v2114, 7
        %v2116 = vsub.s32 0, %v2115
        %v2117 = vrot.slane %v1942, %v2116
        %v2118 = vlaneseq
        %v2119 = vshrl.u32 %v2118, 7
        %v2120 = vsub.s32 0, %v2119
        %v2121 = vrot.slane %v1944, %v2120
        %v2122 = vlaneseq
        %v2123 = vshrl.u32 %v2122, 7
        %v2124 = vsub.s32 0, %v2123
        %v2125 = vrot.slane %v1946, %v2124
        %v2126 = vlaneseq
        %v2127 = vshrl.u32 %v2126, 7
        %v2128 = vsub.s32 0, %v2127
        %v2129 = vrot.slane %v1970, %v2128
        %v2130 = vlaneseq
        %v2131 = vshrl.u32 %v2130, 7
        %v2132 = vsub.s32 0, %v2131
        %v2133 = vrot.slane %v1984, %v2132
        %v2134 = vlaneseq
        %v2135 = vshrl.u32 %v2134, 7
        %v2136 = vsub.s32 0, %v2135
        %v2137 = vrot.slane %v1992, %v2136
        %v2138 = vlaneseq
        %v2139 = vshrl.u32 %v2138, 7
        %v2140 = vsub.s32 0, %v2139
        %v2141 = vrot.slane %v1994, %v2140
        %v2142 = vlaneseq
        %v2143 = vshrl.u32 %v2142, 7
        %v2144 = vsub.s32 0, %v2143
        %v2145 = vrot.slane %v1977, %v2144
        %v2146 = vlaneseq
        %v2147 = vshrl.u32 %v2146, 7
        %v2148 = vsub.s32 0, %v2147
        %v2149 = vrot.slane %v1991, %v2148
        %v2150 = vlaneseq
        %v2151 = vshrl.u32 %v2150, 7
        %v2152 = vsub.s32 0, %v2151
        %v2153 = vrot.slane %v1993, %v2152
        %v2154 = vlaneseq
        %v2155 = vshrl.u32 %v2154, 7
        %v2156 = vsub.s32 0, %v2155
        %v2157 = vrot.slane %v1995, %v2156
        %v2158 = vlaneseq
        %v2159 = vshrl.u32 %v2158, 7
        %v2160 = vsub.s32 0, %v2159
        %v2161 = vrot.slane %v2019, %v2160
        %v2162 = vlaneseq
        %v2163 = vshrl.u32 %v2162, 7
        %v2164 = vsub.s32 0, %v2163
        %v2165 = vrot.slane %v2033, %v2164
        %v2166 = vlaneseq
        %v2167 = vshrl.u32 %v2166, 7
        %v2168 = vsub.s32 0, %v2167
        %v2169 = vrot.slane %v2041, %v2168
        %v2170 = vlaneseq
        %v2171 = vshrl.u32 %v2170, 7
        %v2172 = vsub.s32 0, %v2171
        %v2173 = vrot.slane %v2043, %v2172
        %v2174 = vlaneseq
        %v2175 = vshrl.u32 %v2174, 7
        %v2176 = vsub.s32 0, %v2175
        %v2177 = vrot.slane %v2026, %v2176
        %v2178 = vlaneseq
        %v2179 = vshrl.u32 %v2178, 7
        %v2180 = vsub.s32 0, %v2179
        %v2181 = vrot.slane %v2040, %v2180
        %v2182 = vlaneseq
        %v2183 = vshrl.u32 %v2182, 7
        %v2184 = vsub.s32 0, %v2183
        %v2185 = vrot.slane %v2042, %v2184
        %v2186 = vlaneseq
        %v2187 = vshrl.u32 %v2186, 7
        %v2188 = vsub.s32 0, %v2187
        %v2189 = vrot.slane %v2044, %v2188
        %v2190 = vlaneseq
        %v2191 = vshrl.u32 %v2190, 7
        %v2192 = vsub.s32 0, %v2191
        %v2193 = vrot.slane %v2068, %v2192
        %v2194 = vlaneseq
        %v2195 = vshrl.u32 %v2194, 7
        %v2196 = vsub.s32 0, %v2195
        %v2197 = vrot.slane %v2082, %v2196
        %v2198 = vlaneseq
        %v2199 = vshrl.u32 %v2198, 7
        %v2200 = vsub.s32 0, %v2199
        %v2201 = vrot.slane %v2090, %v2200
        %v2202 = vlaneseq
        %v2203 = vshrl.u32 %v2202, 7
        %v2204 = vsub.s32 0, %v2203
        %v2205 = vrot.slane %v2092, %v2204
        %v2206 = vlaneseq
        %v2207 = vshrl.u32 %v2206, 7
        %v2208 = vsub.s32 0, %v2207
        %v2209 = vrot.slane %v2075, %v2208
        %v2210 = vlaneseq
        %v2211 = vshrl.u32 %v2210, 7
        %v2212 = vsub.s32 0, %v2211
        %v2213 = vrot.slane %v2089, %v2212
        %v2214 = vlaneseq
        %v2215 = vshrl.u32 %v2214, 7
        %v2216 = vsub.s32 0, %v2215
        %v2217 = vrot.slane %v2091, %v2216
        %v2218 = vlaneseq
        %v2219 = vshrl.u32 %v2218, 7
        %v2220 = vsub.s32 0, %v2219
        %v2221 = vrot.slane %v2093, %v2220
        %v2254 = vadd.f32 %v1768, %v2097
        %v2255 = vadd.f32 %v1771, %v2101
        %v2256 = vadd.f32 %v1776, %v2105
        %v2257 = vadd.f32 %v1779, %v2109
        %v2258 = vadd.f32 %v1784, %v2113
        %v2259 = vadd.f32 %v1787, %v2117
        %v2260 = vadd.f32 %v1792, %v2121
        %v2261 = vadd.f32 %v1795, %v2125
        %v2262 = vadd.f32 %v1800, %v2129
        %v2263 = vadd.f32 %v1803, %v2133
        %v2264 = vadd.f32 %v1808, %v2137
        %v2265 = vadd.f32 %v1811, %v2141
        %v2266 = vadd.f32 %v1816, %v2145
        %v2267 = vadd.f32 %v1819, %v2149
        %v2268 = vadd.f32 %v1824, %v2153
        %v2269 = vadd.f32 %v1827, %v2157
        %v2270 = vadd.f32 %v1832, %v2161
        %v2271 = vadd.f32 %v1835, %v2165
        %v2272 = vadd.f32 %v1840, %v2169
        %v2273 = vadd.f32 %v1843, %v2173
        %v2274 = vadd.f32 %v1848, %v2177
        %v2275 = vadd.f32 %v1851, %v2181
        %v2276 = vadd.f32 %v1856, %v2185
        %v2277 = vadd.f32 %v1859, %v2189
        %v2278 = vadd.f32 %v1864, %v2193
        %v2279 = vadd.f32 %v1867, %v2197
        %v2280 = vadd.f32 %v1872, %v2201
        %v2281 = vadd.f32 %v1875, %v2205
        %v2282 = vadd.f32 %v1880, %v2209
        %v2283 = vadd.f32 %v1883, %v2213
        %v2284 = vadd.f32 %v1888, %v2217
        %v2285 = vadd.f32 %v1891, %v2221
        %v2286 = vmax.f32 %v2254, 0.0
        %v2287 = vmax.f32 %v2255, 0.0
        %v2288 = vmax.f32 %v2256, 0.0
        %v2289 = vmax.f32 %v2257, 0.0
        %v2290 = vmax.f32 %v2258, 0.0
        %v2291 = vmax.f32 %v2259, 0.0
        %v2292 = vmax.f32 %v2260, 0.0
        %v2293 = vmax.f32 %v2261, 0.0
        %v2294 = vmax.f32 %v2262, 0.0
        %v2295 = vmax.f32 %v2263, 0.0
        %v2296 = vmax.f32 %v2264, 0.0
        %v2297 = vmax.f32 %v2265, 0.0
        %v2298 = vmax.f32 %v2266, 0.0
        %v2299 = vmax.f32 %v2267, 0.0
        %v2300 = vmax.f32 %v2268, 0.0
        %v2301 = vmax.f32 %v2269, 0.0
        %v2302 = vmax.f32 %v2270, 0.0
        %v2303 = vmax.f32 %v2271, 0.0
        %v2304 = vmax.f32 %v2272, 0.0
        %v2305 = vmax.f32 %v2273, 0.0
        %v2306 = vmax.f32 %v2274, 0.0
        %v2307 = vmax.f32 %v2275, 0.0
        %v2308 = vmax.f32 %v2276, 0.0
        %v2309 = vmax.f32 %v2277, 0.0
        %v2310 = vmax.f32 %v2278, 0.0
        %v2311 = vmax.f32 %v2279, 0.0
        %v2312 = vmax.f32 %v2280, 0.0
        %v2313 = vmax.f32 %v2281, 0.0
        %v2314 = vmax.f32 %v2282, 0.0
        %v2315 = vmax.f32 %v2283, 0.0
        %v2316 = vmax.f32 %v2284, 0.0
        %v2317 = vmax.f32 %v2285, 0.0
        %v2318 = vpack.c.bf16 %v2287, %v2286
        %v2319 = vpack.c.bf16 %v2289, %v2288
        %v2320 = vpack.c.bf16 %v2291, %v2290
        %v2321 = vpack.c.bf16 %v2293, %v2292
        %v2322 = vpack.c.bf16 %v2295, %v2294
        %v2323 = vpack.c.bf16 %v2297, %v2296
        %v2324 = vpack.c.bf16 %v2299, %v2298
        %v2325 = vpack.c.bf16 %v2301, %v2300
        %v2326 = vpack.c.bf16 %v2303, %v2302
        %v2327 = vpack.c.bf16 %v2305, %v2304
        %v2328 = vpack.c.bf16 %v2307, %v2306
        %v2329 = vpack.c.bf16 %v2309, %v2308
        %v2330 = vpack.c.bf16 %v2311, %v2310
        %v2331 = vpack.c.bf16 %v2313, %v2312
        %v2332 = vpack.c.bf16 %v2315, %v2314
        %v2333 = vpack.c.bf16 %v2317, %v2316
        %v2334 = vld [vmem:[#allocation11] sm:$0xf]
        %v2335 = vld [vmem:[#allocation11 + $0x4] sm:$0xf]
        %v2336 = vld [vmem:[#allocation11 + $0x8] sm:$0xf]
        %v2337 = vld [vmem:[#allocation11 + $0xc] sm:$0xf]
        %v2338 = vld [vmem:[#allocation11 + $0x10] sm:$0xf]
        %v2339 = vld [vmem:[#allocation11 + $0x14] sm:$0xf]
        %v2340 = vld [vmem:[#allocation11 + $0x18] sm:$0xf]
        %v2341 = vld [vmem:[#allocation11 + $0x1c] sm:$0xf]
        %v2342 = vld [vmem:[#allocation11 + $0x20] sm:$0xf]
        %v2343 = vld [vmem:[#allocation11 + $0x24] sm:$0xf]
        %v2344 = vld [vmem:[#allocation11 + $0x28] sm:$0xf]
        %v2345 = vld [vmem:[#allocation11 + $0x2c] sm:$0xf]
        %v2346 = vld [vmem:[#allocation11 + $0x30] sm:$0xf]
        %v2347 = vld [vmem:[#allocation11 + $0x34] sm:$0xf]
        %v2348 = vld [vmem:[#allocation11 + $0x38] sm:$0xf]
        %v2349 = vld [vmem:[#allocation11 + $0x3c] sm:$0xf]
        %v2350 = vlaneseq
        %v2351 = vshrl.u32 %v2350, 7
        %v2352 = vsub.s32 1, %v2351
        %v2353 = vrot.slane %v784, %v2352
        %v2370 = vunpack.c.l.b16 %v2334
        %v2371 = vunpack.c.l.b16 %v2335
        %v2372 = vunpack.c.l.b16 %v2336
        %v2373 = vunpack.c.l.b16 %v2337
        %v2374 = vunpack.c.l.b16 %v2338
        %v2375 = vunpack.c.l.b16 %v2339
        %v2376 = vunpack.c.l.b16 %v2340
        %v2377 = vunpack.c.l.b16 %v2341
        %v2378 = vunpack.c.l.b16 %v2342
        %v2379 = vunpack.c.l.b16 %v2343
        %v2380 = vunpack.c.l.b16 %v2344
        %v2381 = vunpack.c.l.b16 %v2345
        %v2382 = vunpack.c.l.b16 %v2346
        %v2383 = vunpack.c.l.b16 %v2347
        %v2384 = vunpack.c.l.b16 %v2348
        %v2385 = vunpack.c.l.b16 %v2349
        %v2386 = vpack.c.b16 %v2371, %v2370
        %v2387 = vpack.c.b16 %v2373, %v2372
        %v2388 = vpack.c.b16 %v2375, %v2374
        %v2389 = vpack.c.b16 %v2377, %v2376
        %v2390 = vpack.c.b16 %v2379, %v2378
        %v2391 = vpack.c.b16 %v2381, %v2380
        %v2392 = vpack.c.b16 %v2383, %v2382
        %v2393 = vpack.c.b16 %v2385, %v2384
        %2402 = vmatprep.subr.bf16.mxu0 0
        %2403 = vmatpush1.bf16.msra.mxu0 %v2386
        %2404 = vmatprep.subr.bf16.mxu0 0
        %2405 = vmatpush1.bf16.msra.mxu0 %v2387
        %2406 = vmatprep.subr.bf16.mxu0 0
        %2407 = vmatpush1.bf16.msra.mxu0 %v2388
        %2408 = vmatprep.subr.bf16.mxu0 0
        %2409 = vmatpush1.bf16.msra.mxu0 %v2389
        %2410 = vmatprep.subr.bf16.mxu0 0
        %2411 = vmatpush1.bf16.msra.mxu0 %v2390
        %2412 = vmatprep.subr.bf16.mxu0 0
        %2413 = vmatpush1.bf16.msra.mxu0 %v2391
        %2414 = vmatprep.subr.bf16.mxu0 0
        %2415 = vmatpush1.bf16.msra.mxu0 %v2392
        %2416 = vmatprep.subr.bf16.mxu0 0
        %2417 = vmatpush1.bf16.msra.mxu0 %v2393
        %2418 = vmatprep.subr.bf16.mxu0 0
        %2419 = vmatpush1.bf16.msra.mxu0 0
        %2420 = vmatprep.subr.bf16.mxu0 0
        %2421 = vmatpush1.bf16.msra.mxu0 0
        %2422 = vmatprep.subr.bf16.mxu0 0
        %2423 = vmatpush1.bf16.msra.mxu0 0
        %2424 = vmatprep.subr.bf16.mxu0 0
        %2425 = vmatpush1.bf16.msra.mxu0 0
        %2426 = vmatprep.subr.bf16.mxu0 0
        %2427 = vmatpush1.bf16.msra.mxu0 0
        %2428 = vmatprep.subr.bf16.mxu0 0
        %2429 = vmatpush1.bf16.msra.mxu0 0
        %2430 = vmatprep.subr.bf16.mxu0 0
        %2431 = vmatpush1.bf16.msra.mxu0 0
        %2432 = vmatprep.subr.bf16.mxu0 0
        %2433 = vmatpush1.bf16.msra.mxu0 0
        %2434 = vmatprep.mubr.bf16.mxu0 0
        %2435 = vmatmul.mubr.bf16.gmra.mrb[0].mxu0 %v2318
        %v2436 = vpop.f32.mrb[0].mxu0
        %v2437 = vadd.f32 %v2353, %v2436
        %v2438 = vpop.f32.mrb[0].mxu0
        %v2439 = vpop.f32.mrb[0].mxu0
        %v2440 = vadd.f32 %v2353, %v2439
        %v2441 = vpop.f32.mrb[0].mxu0
        %2442 = vmatprep.mubr.bf16.mxu0 0
        %2443 = vmatmul.mubr.bf16.gmra.mrb[0].mxu0 %v2319
        %v2444 = vpop.f32.mrb[0].mxu0
        %v2445 = vadd.f32 %v2353, %v2444
        %v2446 = vpop.f32.mrb[0].mxu0
        %v2447 = vpop.f32.mrb[0].mxu0
        %v2448 = vadd.f32 %v2353, %v2447
        %v2449 = vpop.f32.mrb[0].mxu0
        %2450 = vmatprep.mubr.bf16.mxu0 0
        %2451 = vmatmul.mubr.bf16.gmra.mrb[0].mxu0 %v2320
        %v2452 = vpop.f32.mrb[0].mxu0
        %v2453 = vadd.f32 %v2353, %v2452
        %v2454 = vpop.f32.mrb[0].mxu0
        %v2455 = vpop.f32.mrb[0].mxu0
        %v2456 = vadd.f32 %v2353, %v2455
        %v2457 = vpop.f32.mrb[0].mxu0
        %2458 = vmatprep.mubr.bf16.mxu0 0
        %2459 = vmatmul.mubr.bf16.gmra.mrb[0].mxu0 %v2321
        %v2460 = vpop.f32.mrb[0].mxu0
        %v2461 = vadd.f32 %v2353, %v2460
        %v2462 = vpop.f32.mrb[0].mxu0
        %v2463 = vpop.f32.mrb[0].mxu0
        %v2464 = vadd.f32 %v2353, %v2463
        %v2465 = vpop.f32.mrb[0].mxu0
        %2466 = vmatprep.mubr.bf16.mxu0 0
        %2467 = vmatmul.mubr.bf16.gmra.mrb[0].mxu0 %v2322
        %v2468 = vpop.f32.mrb[0].mxu0
        %v2469 = vadd.f32 %v2353, %v2468
        %v2470 = vpop.f32.mrb[0].mxu0
        %v2471 = vpop.f32.mrb[0].mxu0
        %v2472 = vadd.f32 %v2353, %v2471
        %v2473 = vpop.f32.mrb[0].mxu0
        %2474 = vmatprep.mubr.bf16.mxu0 0
        %2475 = vmatmul.mubr.bf16.gmra.mrb[0].mxu0 %v2323
        %v2476 = vpop.f32.mrb[0].mxu0
        %v2477 = vadd.f32 %v2353, %v2476
        %v2478 = vpop.f32.mrb[0].mxu0
        %v2479 = vpop.f32.mrb[0].mxu0
        %v2480 = vadd.f32 %v2353, %v2479
        %v2481 = vpop.f32.mrb[0].mxu0
        %2482 = vmatprep.mubr.bf16.mxu0 0
        %2483 = vmatmul.mubr.bf16.gmra.mrb[0].mxu0 %v2324
        %v2484 = vpop.f32.mrb[0].mxu0
        %v2485 = vadd.f32 %v2353, %v2484
        %v2486 = vpop.f32.mrb[0].mxu0
        %v2487 = vpop.f32.mrb[0].mxu0
        %v2488 = vadd.f32 %v2353, %v2487
        %v2489 = vpop.f32.mrb[0].mxu0
        %2490 = vmatprep.mubr.bf16.mxu0 0
        %2491 = vmatmul.mubr.bf16.gmra.mrb[0].mxu0 %v2325
        %v2492 = vpop.f32.mrb[0].mxu0
        %v2493 = vadd.f32 %v2353, %v2492
        %v2494 = vpop.f32.mrb[0].mxu0
        %v2495 = vpop.f32.mrb[0].mxu0
        %v2496 = vadd.f32 %v2353, %v2495
        %v2497 = vpop.f32.mrb[0].mxu0
        %2498 = vmatprep.mubr.bf16.mxu0 0
        %2499 = vmatmul.mubr.bf16.gmra.mrb[0].mxu0 %v2326
        %v2500 = vpop.f32.mrb[0].mxu0
        %v2501 = vadd.f32 %v2353, %v2500
        %v2502 = vpop.f32.mrb[0].mxu0
        %v2503 = vpop.f32.mrb[0].mxu0
        %v2504 = vadd.f32 %v2353, %v2503
        %v2505 = vpop.f32.mrb[0].mxu0
        %2506 = vmatprep.mubr.bf16.mxu0 0
        %2507 = vmatmul.mubr.bf16.gmra.mrb[0].mxu0 %v2327
        %v2508 = vpop.f32.mrb[0].mxu0
        %v2509 = vadd.f32 %v2353, %v2508
        %v2510 = vpop.f32.mrb[0].mxu0
        %v2511 = vpop.f32.mrb[0].mxu0
        %v2512 = vadd.f32 %v2353, %v2511
        %v2513 = vpop.f32.mrb[0].mxu0
        %2514 = vmatprep.mubr.bf16.mxu0 0
        %2515 = vmatmul.mubr.bf16.gmra.mrb[0].mxu0 %v2328
        %v2516 = vpop.f32.mrb[0].mxu0
        %v2517 = vadd.f32 %v2353, %v2516
        %v2518 = vpop.f32.mrb[0].mxu0
        %v2519 = vpop.f32.mrb[0].mxu0
        %v2520 = vadd.f32 %v2353, %v2519
        %v2521 = vpop.f32.mrb[0].mxu0
        %2522 = vmatprep.mubr.bf16.mxu0 0
        %2523 = vmatmul.mubr.bf16.gmra.mrb[0].mxu0 %v2329
        %v2524 = vpop.f32.mrb[0].mxu0
        %v2525 = vadd.f32 %v2353, %v2524
        %v2526 = vpop.f32.mrb[0].mxu0
        %v2527 = vpop.f32.mrb[0].mxu0
        %v2528 = vadd.f32 %v2353, %v2527
        %v2529 = vpop.f32.mrb[0].mxu0
        %2530 = vmatprep.mubr.bf16.mxu0 0
        %2531 = vmatmul.mubr.bf16.gmra.mrb[0].mxu0 %v2330
        %v2532 = vpop.f32.mrb[0].mxu0
        %v2533 = vadd.f32 %v2353, %v2532
        %v2534 = vpop.f32.mrb[0].mxu0
        %v2535 = vpop.f32.mrb[0].mxu0
        %v2536 = vadd.f32 %v2353, %v2535
        %v2537 = vpop.f32.mrb[0].mxu0
        %2538 = vmatprep.mubr.bf16.mxu0 0
        %2539 = vmatmul.mubr.bf16.gmra.mrb[0].mxu0 %v2331
        %v2540 = vpop.f32.mrb[0].mxu0
        %v2541 = vadd.f32 %v2353, %v2540
        %v2542 = vpop.f32.mrb[0].mxu0
        %v2543 = vpop.f32.mrb[0].mxu0
        %v2544 = vadd.f32 %v2353, %v2543
        %v2545 = vpop.f32.mrb[0].mxu0
        %2546 = vmatprep.mubr.bf16.mxu0 0
        %2547 = vmatmul.mubr.bf16.gmra.mrb[0].mxu0 %v2332
        %v2548 = vpop.f32.mrb[0].mxu0
        %v2549 = vadd.f32 %v2353, %v2548
        %v2550 = vpop.f32.mrb[0].mxu0
        %v2551 = vpop.f32.mrb[0].mxu0
        %v2552 = vadd.f32 %v2353, %v2551
        %v2553 = vpop.f32.mrb[0].mxu0
        %2554 = vmatprep.mubr.bf16.mxu0 0
        %2555 = vmatmul.mubr.bf16.gmra.mrb[0].mxu0 %v2333
        %v2556 = vpop.f32.mrb[0].mxu0
        %v2557 = vadd.f32 %v2353, %v2556
        %v2558 = vpop.f32.mrb[0].mxu0
        %v2559 = vpop.f32.mrb[0].mxu0
        %v2560 = vadd.f32 %v2353, %v2559
        %v2561 = vpop.f32.mrb[0].mxu0
        %2562 = vdwg.mxu0
        %v2563 = vmax.f32 %v2437, 0.0
        %v2564 = vmax.f32 %v2440, 0.0
        %v2565 = vmax.f32 %v2445, 0.0
        %v2566 = vmax.f32 %v2448, 0.0
        %v2567 = vmax.f32 %v2453, 0.0
        %v2568 = vmax.f32 %v2456, 0.0
        %v2569 = vmax.f32 %v2461, 0.0
        %v2570 = vmax.f32 %v2464, 0.0
        %v2571 = vmax.f32 %v2469, 0.0
        %v2572 = vmax.f32 %v2472, 0.0
        %v2573 = vmax.f32 %v2477, 0.0
        %v2574 = vmax.f32 %v2480, 0.0
        %v2575 = vmax.f32 %v2485, 0.0
        %v2576 = vmax.f32 %v2488, 0.0
        %v2577 = vmax.f32 %v2493, 0.0
        %v2578 = vmax.f32 %v2496, 0.0
        %v2579 = vmax.f32 %v2501, 0.0
        %v2580 = vmax.f32 %v2504, 0.0
        %v2581 = vmax.f32 %v2509, 0.0
        %v2582 = vmax.f32 %v2512, 0.0
        %v2583 = vmax.f32 %v2517, 0.0
        %v2584 = vmax.f32 %v2520, 0.0
        %v2585 = vmax.f32 %v2525, 0.0
        %v2586 = vmax.f32 %v2528, 0.0
        %v2587 = vmax.f32 %v2533, 0.0
        %v2588 = vmax.f32 %v2536, 0.0
        %v2589 = vmax.f32 %v2541, 0.0
        %v2590 = vmax.f32 %v2544, 0.0
        %v2591 = vmax.f32 %v2549, 0.0
        %v2592 = vmax.f32 %v2552, 0.0
        %v2593 = vmax.f32 %v2557, 0.0
        %v2594 = vmax.f32 %v2560, 0.0
        %v2595 = vpack.c.bf16 %v2564, %v2563
        %v2596 = vpack.c.bf16 %v2566, %v2565
        %v2597 = vpack.c.bf16 %v2568, %v2567
        %v2598 = vpack.c.bf16 %v2570, %v2569
        %v2599 = vpack.c.bf16 %v2572, %v2571
        %v2600 = vpack.c.bf16 %v2574, %v2573
        %v2601 = vpack.c.bf16 %v2576, %v2575
        %v2602 = vpack.c.bf16 %v2578, %v2577
        %v2603 = vpack.c.bf16 %v2580, %v2579
        %v2604 = vpack.c.bf16 %v2582, %v2581
        %v2605 = vpack.c.bf16 %v2584, %v2583
        %v2606 = vpack.c.bf16 %v2586, %v2585
        %v2607 = vpack.c.bf16 %v2588, %v2587
        %v2608 = vpack.c.bf16 %v2590, %v2589
        %v2609 = vpack.c.bf16 %v2592, %v2591
        %v2610 = vpack.c.bf16 %v2594, %v2593
        %v2611 = vld [vmem:[#allocation13] sm:$0xf]
        %v2612 = vld [vmem:[#allocation13 + $0x4] sm:$0xf]
        %v2613 = vld [vmem:[#allocation13 + $0x8] sm:$0xf]
        %v2614 = vld [vmem:[#allocation13 + $0xc] sm:$0xf]
        %v2615 = vld [vmem:[#allocation13 + $0x10] sm:$0xf]
        %v2616 = vld [vmem:[#allocation13 + $0x14] sm:$0xf]
        %v2617 = vld [vmem:[#allocation13 + $0x18] sm:$0xf]
        %v2618 = vld [vmem:[#allocation13 + $0x1c] sm:$0xf]
        %v2619 = vld [vmem:[#allocation13 + $0x20] sm:$0xf]
        %v2620 = vld [vmem:[#allocation13 + $0x24] sm:$0xf]
        %v2621 = vld [vmem:[#allocation13 + $0x28] sm:$0xf]
        %v2622 = vld [vmem:[#allocation13 + $0x2c] sm:$0xf]
        %v2623 = vld [vmem:[#allocation13 + $0x30] sm:$0xf]
        %v2624 = vld [vmem:[#allocation13 + $0x34] sm:$0xf]
        %v2625 = vld [vmem:[#allocation13 + $0x38] sm:$0xf]
        %v2626 = vld [vmem:[#allocation13 + $0x3c] sm:$0xf]
        %v2627 = vlaneseq
        %v2628 = vshrl.u32 %v2627, 7
        %v2629 = vsub.s32 2, %v2628
        %v2630 = vrot.slane %v784, %v2629
        %v2647 = vunpack.c.l.b16 %v2611
        %v2648 = vunpack.c.l.b16 %v2612
        %v2649 = vunpack.c.l.b16 %v2613
        %v2650 = vunpack.c.l.b16 %v2614
        %v2651 = vunpack.c.l.b16 %v2615
        %v2652 = vunpack.c.l.b16 %v2616
        %v2653 = vunpack.c.l.b16 %v2617
        %v2654 = vunpack.c.l.b16 %v2618
        %v2655 = vunpack.c.l.b16 %v2619
        %v2656 = vunpack.c.l.b16 %v2620
        %v2657 = vunpack.c.l.b16 %v2621
        %v2658 = vunpack.c.l.b16 %v2622
        %v2659 = vunpack.c.l.b16 %v2623
        %v2660 = vunpack.c.l.b16 %v2624
        %v2661 = vunpack.c.l.b16 %v2625
        %v2662 = vunpack.c.l.b16 %v2626
        %v2663 = vpack.c.b16 %v2648, %v2647
        %v2664 = vpack.c.b16 %v2650, %v2649
        %v2665 = vpack.c.b16 %v2652, %v2651
        %v2666 = vpack.c.b16 %v2654, %v2653
        %v2667 = vpack.c.b16 %v2656, %v2655
        %v2668 = vpack.c.b16 %v2658, %v2657
        %v2669 = vpack.c.b16 %v2660, %v2659
        %v2670 = vpack.c.b16 %v2662, %v2661
        %2679 = vmatprep.subr.bf16.mxu0 0
        %2680 = vmatpush1.bf16.msra.mxu0 %v2663
        %2681 = vmatprep.subr.bf16.mxu0 0
        %2682 = vmatpush1.bf16.msra.mxu0 %v2664
        %2683 = vmatprep.subr.bf16.mxu0 0
        %2684 = vmatpush1.bf16.msra.mxu0 %v2665
        %2685 = vmatprep.subr.bf16.mxu0 0
        %2686 = vmatpush1.bf16.msra.mxu0 %v2666
        %2687 = vmatprep.subr.bf16.mxu0 0
        %2688 = vmatpush1.bf16.msra.mxu0 %v2667
        %2689 = vmatprep.subr.bf16.mxu0 0
        %2690 = vmatpush1.bf16.msra.mxu0 %v2668
        %2691 = vmatprep.subr.bf16.mxu0 0
        %2692 = vmatpush1.bf16.msra.mxu0 %v2669
        %2693 = vmatprep.subr.bf16.mxu0 0
        %2694 = vmatpush1.bf16.msra.mxu0 %v2670
        %2695 = vmatprep.subr.bf16.mxu0 0
        %2696 = vmatpush1.bf16.msra.mxu0 0
        %2697 = vmatprep.subr.bf16.mxu0 0
        %2698 = vmatpush1.bf16.msra.mxu0 0
        %2699 = vmatprep.subr.bf16.mxu0 0
        %2700 = vmatpush1.bf16.msra.mxu0 0
        %2701 = vmatprep.subr.bf16.mxu0 0
        %2702 = vmatpush1.bf16.msra.mxu0 0
        %2703 = vmatprep.subr.bf16.mxu0 0
        %2704 = vmatpush1.bf16.msra.mxu0 0
        %2705 = vmatprep.subr.bf16.mxu0 0
        %2706 = vmatpush1.bf16.msra.mxu0 0
        %2707 = vmatprep.subr.bf16.mxu0 0
        %2708 = vmatpush1.bf16.msra.mxu0 0
        %2709 = vmatprep.subr.bf16.mxu0 0
        %2710 = vmatpush1.bf16.msra.mxu0 0
        %2711 = vmatprep.mubr.bf16.mxu0 0
        %2712 = vmatmul.mubr.bf16.gmra.mrb[0].mxu0 %v2595
        %v2713 = vpop.f32.mrb[0].mxu0
        %v2714 = vadd.f32 %v2630, %v2713
        %v2715 = vpop.f32.mrb[0].mxu0
        %v2716 = vpop.f32.mrb[0].mxu0
        %v2717 = vadd.f32 %v2630, %v2716
        %v2718 = vpop.f32.mrb[0].mxu0
        %2719 = vmatprep.mubr.bf16.mxu0 0
        %2720 = vmatmul.mubr.bf16.gmra.mrb[0].mxu0 %v2596
        %v2721 = vpop.f32.mrb[0].mxu0
        %v2722 = vadd.f32 %v2630, %v2721
        %v2723 = vpop.f32.mrb[0].mxu0
        %v2724 = vpop.f32.mrb[0].mxu0
        %v2725 = vadd.f32 %v2630, %v2724
        %v2726 = vpop.f32.mrb[0].mxu0
        %2727 = vmatprep.mubr.bf16.mxu0 0
        %2728 = vmatmul.mubr.bf16.gmra.mrb[0].mxu0 %v2597
        %v2729 = vpop.f32.mrb[0].mxu0
        %v2730 = vadd.f32 %v2630, %v2729
        %v2731 = vpop.f32.mrb[0].mxu0
        %v2732 = vpop.f32.mrb[0].mxu0
        %v2733 = vadd.f32 %v2630, %v2732
        %v2734 = vpop.f32.mrb[0].mxu0
        %2735 = vmatprep.mubr.bf16.mxu0 0
        %2736 = vmatmul.mubr.bf16.gmra.mrb[0].mxu0 %v2598
        %v2737 = vpop.f32.mrb[0].mxu0
        %v2738 = vadd.f32 %v2630, %v2737
        %v2739 = vpop.f32.mrb[0].mxu0
        %v2740 = vpop.f32.mrb[0].mxu0
        %v2741 = vadd.f32 %v2630, %v2740
        %v2742 = vpop.f32.mrb[0].mxu0
        %2743 = vmatprep.mubr.bf16.mxu0 0
        %2744 = vmatmul.mubr.bf16.gmra.mrb[0].mxu0 %v2599
        %v2745 = vpop.f32.mrb[0].mxu0
        %v2746 = vadd.f32 %v2630, %v2745
        %v2747 = vpop.f32.mrb[0].mxu0
        %v2748 = vpop.f32.mrb[0].mxu0
        %v2749 = vadd.f32 %v2630, %v2748
        %v2750 = vpop.f32.mrb[0].mxu0
        %2751 = vmatprep.mubr.bf16.mxu0 0
        %2752 = vmatmul.mubr.bf16.gmra.mrb[0].mxu0 %v2600
        %v2753 = vpop.f32.mrb[0].mxu0
        %v2754 = vadd.f32 %v2630, %v2753
        %v2755 = vpop.f32.mrb[0].mxu0
        %v2756 = vpop.f32.mrb[0].mxu0
        %v2757 = vadd.f32 %v2630, %v2756
        %v2758 = vpop.f32.mrb[0].mxu0
        %2759 = vmatprep.mubr.bf16.mxu0 0
        %2760 = vmatmul.mubr.bf16.gmra.mrb[0].mxu0 %v2601
        %v2761 = vpop.f32.mrb[0].mxu0
        %v2762 = vadd.f32 %v2630, %v2761
        %v2763 = vpop.f32.mrb[0].mxu0
        %v2764 = vpop.f32.mrb[0].mxu0
        %v2765 = vadd.f32 %v2630, %v2764
        %v2766 = vpop.f32.mrb[0].mxu0
        %2767 = vmatprep.mubr.bf16.mxu0 0
        %2768 = vmatmul.mubr.bf16.gmra.mrb[0].mxu0 %v2602
        %v2769 = vpop.f32.mrb[0].mxu0
        %v2770 = vadd.f32 %v2630, %v2769
        %v2771 = vpop.f32.mrb[0].mxu0
        %v2772 = vpop.f32.mrb[0].mxu0
        %v2773 = vadd.f32 %v2630, %v2772
        %v2774 = vpop.f32.mrb[0].mxu0
        %2775 = vmatprep.mubr.bf16.mxu0 0
        %2776 = vmatmul.mubr.bf16.gmra.mrb[0].mxu0 %v2603
        %v2777 = vpop.f32.mrb[0].mxu0
        %v2778 = vadd.f32 %v2630, %v2777
        %v2779 = vpop.f32.mrb[0].mxu0
        %v2780 = vpop.f32.mrb[0].mxu0
        %v2781 = vadd.f32 %v2630, %v2780
        %v2782 = vpop.f32.mrb[0].mxu0
        %2783 = vmatprep.mubr.bf16.mxu0 0
        %2784 = vmatmul.mubr.bf16.gmra.mrb[0].mxu0 %v2604
        %v2785 = vpop.f32.mrb[0].mxu0
        %v2786 = vadd.f32 %v2630, %v2785
        %v2787 = vpop.f32.mrb[0].mxu0
        %v2788 = vpop.f32.mrb[0].mxu0
        %v2789 = vadd.f32 %v2630, %v2788
        %v2790 = vpop.f32.mrb[0].mxu0
        %2791 = vmatprep.mubr.bf16.mxu0 0
        %2792 = vmatmul.mubr.bf16.gmra.mrb[0].mxu0 %v2605
        %v2793 = vpop.f32.mrb[0].mxu0
        %v2794 = vadd.f32 %v2630, %v2793
        %v2795 = vpop.f32.mrb[0].mxu0
        %v2796 = vpop.f32.mrb[0].mxu0
        %v2797 = vadd.f32 %v2630, %v2796
        %v2798 = vpop.f32.mrb[0].mxu0
        %2799 = vmatprep.mubr.bf16.mxu0 0
        %2800 = vmatmul.mubr.bf16.gmra.mrb[0].mxu0 %v2606
        %v2801 = vpop.f32.mrb[0].mxu0
        %v2802 = vadd.f32 %v2630, %v2801
        %v2803 = vpop.f32.mrb[0].mxu0
        %v2804 = vpop.f32.mrb[0].mxu0
        %v2805 = vadd.f32 %v2630, %v2804
        %v2806 = vpop.f32.mrb[0].mxu0
        %2807 = vmatprep.mubr.bf16.mxu0 0
        %2808 = vmatmul.mubr.bf16.gmra.mrb[0].mxu0 %v2607
        %v2809 = vpop.f32.mrb[0].mxu0
        %v2810 = vadd.f32 %v2630, %v2809
        %v2811 = vpop.f32.mrb[0].mxu0
        %v2812 = vpop.f32.mrb[0].mxu0
        %v2813 = vadd.f32 %v2630, %v2812
        %v2814 = vpop.f32.mrb[0].mxu0
        %2815 = vmatprep.mubr.bf16.mxu0 0
        %2816 = vmatmul.mubr.bf16.gmra.mrb[0].mxu0 %v2608
        %v2817 = vpop.f32.mrb[0].mxu0
        %v2818 = vadd.f32 %v2630, %v2817
        %v2819 = vpop.f32.mrb[0].mxu0
        %v2820 = vpop.f32.mrb[0].mxu0
        %v2821 = vadd.f32 %v2630, %v2820
        %v2822 = vpop.f32.mrb[0].mxu0
        %2823 = vmatprep.mubr.bf16.mxu0 0
        %2824 = vmatmul.mubr.bf16.gmra.mrb[0].mxu0 %v2609
        %v2825 = vpop.f32.mrb[0].mxu0
        %v2826 = vadd.f32 %v2630, %v2825
        %v2827 = vpop.f32.mrb[0].mxu0
        %v2828 = vpop.f32.mrb[0].mxu0
        %v2829 = vadd.f32 %v2630, %v2828
        %v2830 = vpop.f32.mrb[0].mxu0
        %2831 = vmatprep.mubr.bf16.mxu0 0
        %2832 = vmatmul.mubr.bf16.gmra.mrb[0].mxu0 %v2610
        %v2833 = vpop.f32.mrb[0].mxu0
        %v2834 = vadd.f32 %v2630, %v2833
        %v2835 = vpop.f32.mrb[0].mxu0
        %v2836 = vpop.f32.mrb[0].mxu0
        %v2837 = vadd.f32 %v2630, %v2836
        %v2838 = vpop.f32.mrb[0].mxu0
        %2839 = vdwg.mxu0
        %v2840 = vld [vmem:[%s728] sm:$0xff]
        %v2841 = vld [vmem:[%s728 + $0x8] sm:$0xff]
        %v2842 = vld [vmem:[%s728 + $0x10] sm:$0xff]
        %v2843 = vld [vmem:[%s728 + $0x18] sm:$0xff]
        %v2844 = vlaneseq
        %v2845 = vshrl.u32 %v2844, 7
        %v2846 = vsub.s32 0, %v2845
        %v2847 = vrot.slane %v2840, %v2846
        %2849 = vbcast.lane.b32.xlu0 %v2847, 256
        %v2850 = vpop.permute.xlu0 %2849
        %v2851 = vlaneseq
        %v2852 = vshrl.u32 %v2851, 7
        %v2853 = vsub.s32 1, %v2852
        %v2854 = vrot.slane %v2840, %v2853
        %2856 = vbcast.lane.b32.xlu0 %v2854, 256
        %v2857 = vpop.permute.xlu0 %2856
        %v2858 = vlaneseq
        %v2859 = vshrl.u32 %v2858, 7
        %v2860 = vsub.s32 2, %v2859
        %v2861 = vrot.slane %v2840, %v2860
        %2863 = vbcast.lane.b32.xlu0 %v2861, 256
        %v2864 = vpop.permute.xlu0 %2863
        %v2865 = vlaneseq
        %v2866 = vshrl.u32 %v2865, 7
        %v2867 = vsub.s32 3, %v2866
        %v2868 = vrot.slane %v2840, %v2867
        %2870 = vbcast.lane.b32.xlu0 %v2868, 256
        %v2871 = vpop.permute.xlu0 %2870
        %v2872 = vlaneseq
        %v2873 = vshrl.u32 %v2872, 7
        %v2874 = vsub.s32 4, %v2873
        %v2875 = vrot.slane %v2840, %v2874
        %2877 = vbcast.lane.b32.xlu0 %v2875, 256
        %v2878 = vpop.permute.xlu0 %2877
        %v2879 = vlaneseq
        %v2880 = vshrl.u32 %v2879, 7
        %v2881 = vsub.s32 5, %v2880
        %v2882 = vrot.slane %v2840, %v2881
        %2884 = vbcast.lane.b32.xlu0 %v2882, 256
        %v2885 = vpop.permute.xlu0 %2884
        %v2886 = vlaneseq
        %v2887 = vshrl.u32 %v2886, 7
        %v2888 = vsub.s32 6, %v2887
        %v2889 = vrot.slane %v2840, %v2888
        %2891 = vbcast.lane.b32.xlu0 %v2889, 256
        %v2892 = vpop.permute.xlu0 %2891
        %v2893 = vlaneseq
        %v2894 = vshrl.u32 %v2893, 7
        %v2895 = vsub.s32 7, %v2894
        %v2896 = vrot.slane %v2840, %v2895
        %2898 = vbcast.lane.b32.xlu0 %v2896, 256
        %v2899 = vpop.permute.xlu0 %2898
        %v2900 = vlaneseq
        %v2901 = vshrl.u32 %v2900, 7
        %v2902 = vsub.s32 0, %v2901
        %v2903 = vrot.slane %v2841, %v2902
        %2905 = vbcast.lane.b32.xlu0 %v2903, 256
        %v2906 = vpop.permute.xlu0 %2905
        %v2907 = vlaneseq
        %v2908 = vshrl.u32 %v2907, 7
        %v2909 = vsub.s32 1, %v2908
        %v2910 = vrot.slane %v2841, %v2909
        %2912 = vbcast.lane.b32.xlu0 %v2910, 256
        %v2913 = vpop.permute.xlu0 %2912
        %v2914 = vlaneseq
        %v2915 = vshrl.u32 %v2914, 7
        %v2916 = vsub.s32 2, %v2915
        %v2917 = vrot.slane %v2841, %v2916
        %2919 = vbcast.lane.b32.xlu0 %v2917, 256
        %v2920 = vpop.permute.xlu0 %2919
        %v2921 = vlaneseq
        %v2922 = vshrl.u32 %v2921, 7
        %v2923 = vsub.s32 3, %v2922
        %v2924 = vrot.slane %v2841, %v2923
        %2926 = vbcast.lane.b32.xlu0 %v2924, 256
        %v2927 = vpop.permute.xlu0 %2926
        %v2928 = vlaneseq
        %v2929 = vshrl.u32 %v2928, 7
        %v2930 = vsub.s32 4, %v2929
        %v2931 = vrot.slane %v2841, %v2930
        %2933 = vbcast.lane.b32.xlu0 %v2931, 256
        %v2934 = vpop.permute.xlu0 %2933
        %v2935 = vlaneseq
        %v2936 = vshrl.u32 %v2935, 7
        %v2937 = vsub.s32 5, %v2936
        %v2938 = vrot.slane %v2841, %v2937
        %2940 = vbcast.lane.b32.xlu0 %v2938, 256
        %v2941 = vpop.permute.xlu0 %2940
        %v2942 = vlaneseq
        %v2943 = vshrl.u32 %v2942, 7
        %v2944 = vsub.s32 6, %v2943
        %v2945 = vrot.slane %v2841, %v2944
        %2947 = vbcast.lane.b32.xlu0 %v2945, 256
        %v2948 = vpop.permute.xlu0 %2947
        %v2949 = vlaneseq
        %v2950 = vshrl.u32 %v2949, 7
        %v2951 = vsub.s32 7, %v2950
        %v2952 = vrot.slane %v2841, %v2951
        %2954 = vbcast.lane.b32.xlu0 %v2952, 256
        %v2955 = vpop.permute.xlu0 %2954
        %v2956 = vlaneseq
        %v2957 = vshrl.u32 %v2956, 7
        %v2958 = vsub.s32 0, %v2957
        %v2959 = vrot.slane %v2842, %v2958
        %2961 = vbcast.lane.b32.xlu0 %v2959, 256
        %v2962 = vpop.permute.xlu0 %2961
        %v2963 = vlaneseq
        %v2964 = vshrl.u32 %v2963, 7
        %v2965 = vsub.s32 1, %v2964
        %v2966 = vrot.slane %v2842, %v2965
        %2968 = vbcast.lane.b32.xlu0 %v2966, 256
        %v2969 = vpop.permute.xlu0 %2968
        %v2970 = vlaneseq
        %v2971 = vshrl.u32 %v2970, 7
        %v2972 = vsub.s32 2, %v2971
        %v2973 = vrot.slane %v2842, %v2972
        %2975 = vbcast.lane.b32.xlu0 %v2973, 256
        %v2976 = vpop.permute.xlu0 %2975
        %v2977 = vlaneseq
        %v2978 = vshrl.u32 %v2977, 7
        %v2979 = vsub.s32 3, %v2978
        %v2980 = vrot.slane %v2842, %v2979
        %2982 = vbcast.lane.b32.xlu0 %v2980, 256
        %v2983 = vpop.permute.xlu0 %2982
        %v2984 = vlaneseq
        %v2985 = vshrl.u32 %v2984, 7
        %v2986 = vsub.s32 4, %v2985
        %v2987 = vrot.slane %v2842, %v2986
        %2989 = vbcast.lane.b32.xlu0 %v2987, 256
        %v2990 = vpop.permute.xlu0 %2989
        %v2991 = vlaneseq
        %v2992 = vshrl.u32 %v2991, 7
        %v2993 = vsub.s32 5, %v2992
        %v2994 = vrot.slane %v2842, %v2993
        %2996 = vbcast.lane.b32.xlu0 %v2994, 256
        %v2997 = vpop.permute.xlu0 %2996
        %v2998 = vlaneseq
        %v2999 = vshrl.u32 %v2998, 7
        %v3000 = vsub.s32 6, %v2999
        %v3001 = vrot.slane %v2842, %v3000
        %3003 = vbcast.lane.b32.xlu0 %v3001, 256
        %v3004 = vpop.permute.xlu0 %3003
        %v3005 = vlaneseq
        %v3006 = vshrl.u32 %v3005, 7
        %v3007 = vsub.s32 7, %v3006
        %v3008 = vrot.slane %v2842, %v3007
        %3010 = vbcast.lane.b32.xlu0 %v3008, 256
        %v3011 = vpop.permute.xlu0 %3010
        %v3012 = vlaneseq
        %v3013 = vshrl.u32 %v3012, 7
        %v3014 = vsub.s32 0, %v3013
        %v3015 = vrot.slane %v2843, %v3014
        %3017 = vbcast.lane.b32.xlu0 %v3015, 256
        %v3018 = vpop.permute.xlu0 %3017
        %v3019 = vlaneseq
        %v3020 = vshrl.u32 %v3019, 7
        %v3021 = vsub.s32 1, %v3020
        %v3022 = vrot.slane %v2843, %v3021
        %3024 = vbcast.lane.b32.xlu0 %v3022, 256
        %v3025 = vpop.permute.xlu0 %3024
        %v3026 = vlaneseq
        %v3027 = vshrl.u32 %v3026, 7
        %v3028 = vsub.s32 2, %v3027
        %v3029 = vrot.slane %v2843, %v3028
        %3031 = vbcast.lane.b32.xlu0 %v3029, 256
        %v3032 = vpop.permute.xlu0 %3031
        %v3033 = vlaneseq
        %v3034 = vshrl.u32 %v3033, 7
        %v3035 = vsub.s32 3, %v3034
        %v3036 = vrot.slane %v2843, %v3035
        %3038 = vbcast.lane.b32.xlu0 %v3036, 256
        %v3039 = vpop.permute.xlu0 %3038
        %v3040 = vlaneseq
        %v3041 = vshrl.u32 %v3040, 7
        %v3042 = vsub.s32 4, %v3041
        %v3043 = vrot.slane %v2843, %v3042
        %3045 = vbcast.lane.b32.xlu0 %v3043, 256
        %v3046 = vpop.permute.xlu0 %3045
        %v3047 = vlaneseq
        %v3048 = vshrl.u32 %v3047, 7
        %v3049 = vsub.s32 5, %v3048
        %v3050 = vrot.slane %v2843, %v3049
        %3052 = vbcast.lane.b32.xlu0 %v3050, 256
        %v3053 = vpop.permute.xlu0 %3052
        %v3054 = vlaneseq
        %v3055 = vshrl.u32 %v3054, 7
        %v3056 = vsub.s32 6, %v3055
        %v3057 = vrot.slane %v2843, %v3056
        %3059 = vbcast.lane.b32.xlu0 %v3057, 256
        %v3060 = vpop.permute.xlu0 %3059
        %v3061 = vlaneseq
        %v3062 = vshrl.u32 %v3061, 7
        %v3063 = vsub.s32 7, %v3062
        %v3064 = vrot.slane %v2843, %v3063
        %3066 = vbcast.lane.b32.xlu0 %v3064, 256
        %v3067 = vpop.permute.xlu0 %3066
        %v3068 = vmul.f32 %v2714, %v2850
        %v3069 = vmul.f32 %v2717, %v2857
        %v3070 = vmul.f32 %v2722, %v2864
        %v3071 = vmul.f32 %v2725, %v2871
        %v3072 = vmul.f32 %v2730, %v2878
        %v3073 = vmul.f32 %v2733, %v2885
        %v3074 = vmul.f32 %v2738, %v2892
        %v3075 = vmul.f32 %v2741, %v2899
        %v3076 = vmul.f32 %v2746, %v2906
        %v3077 = vmul.f32 %v2749, %v2913
        %v3078 = vmul.f32 %v2754, %v2920
        %v3079 = vmul.f32 %v2757, %v2927
        %v3080 = vmul.f32 %v2762, %v2934
        %v3081 = vmul.f32 %v2765, %v2941
        %v3082 = vmul.f32 %v2770, %v2948
        %v3083 = vmul.f32 %v2773, %v2955
        %v3084 = vmul.f32 %v2778, %v2962
        %v3085 = vmul.f32 %v2781, %v2969
        %v3086 = vmul.f32 %v2786, %v2976
        %v3087 = vmul.f32 %v2789, %v2983
        %v3088 = vmul.f32 %v2794, %v2990
        %v3089 = vmul.f32 %v2797, %v2997
        %v3090 = vmul.f32 %v2802, %v3004
        %v3091 = vmul.f32 %v2805, %v3011
        %v3092 = vmul.f32 %v2810, %v3018
        %v3093 = vmul.f32 %v2813, %v3025
        %v3094 = vmul.f32 %v2818, %v3032
        %v3095 = vmul.f32 %v2821, %v3039
        %v3096 = vmul.f32 %v2826, %v3046
        %v3097 = vmul.f32 %v2829, %v3053
        %v3098 = vmul.f32 %v2834, %v3060
        %v3099 = vmul.f32 %v2837, %v3067
        %v3100 = vrot.slane %v3068, 4
        %v3101 = vadd.f32 %v3068, %v3100
        %v3102 = vrot.slane %v3101, 2
        %v3103 = vadd.f32 %v3101, %v3102
        %v3104 = vrot.slane %v3103, 1
        %v3105 = vadd.f32 %v3103, %v3104
        %v3106 = vrot.slane %v3069, 4
        %v3107 = vadd.f32 %v3069, %v3106
        %v3108 = vrot.slane %v3107, 2
        %v3109 = vadd.f32 %v3107, %v3108
        %v3110 = vrot.slane %v3109, 1
        %v3111 = vadd.f32 %v3109, %v3110
        %v3112 = vrot.slane %v3070, 4
        %v3113 = vadd.f32 %v3070, %v3112
        %v3114 = vrot.slane %v3113, 2
        %v3115 = vadd.f32 %v3113, %v3114
        %v3116 = vrot.slane %v3115, 1
        %v3117 = vadd.f32 %v3115, %v3116
        %v3118 = vrot.slane %v3071, 4
        %v3119 = vadd.f32 %v3071, %v3118
        %v3120 = vrot.slane %v3119, 2
        %v3121 = vadd.f32 %v3119, %v3120
        %v3122 = vrot.slane %v3121, 1
        %v3123 = vadd.f32 %v3121, %v3122
        %v3124 = vrot.slane %v3072, 4
        %v3125 = vadd.f32 %v3072, %v3124
        %v3126 = vrot.slane %v3125, 2
        %v3127 = vadd.f32 %v3125, %v3126
        %v3128 = vrot.slane %v3127, 1
        %v3129 = vadd.f32 %v3127, %v3128
        %v3130 = vrot.slane %v3073, 4
        %v3131 = vadd.f32 %v3073, %v3130
        %v3132 = vrot.slane %v3131, 2
        %v3133 = vadd.f32 %v3131, %v3132
        %v3134 = vrot.slane %v3133, 1
        %v3135 = vadd.f32 %v3133, %v3134
        %v3136 = vrot.slane %v3074, 4
        %v3137 = vadd.f32 %v3074, %v3136
        %v3138 = vrot.slane %v3137, 2
        %v3139 = vadd.f32 %v3137, %v3138
        %v3140 = vrot.slane %v3139, 1
        %v3141 = vadd.f32 %v3139, %v3140
        %v3142 = vrot.slane %v3075, 4
        %v3143 = vadd.f32 %v3075, %v3142
        %v3144 = vrot.slane %v3143, 2
        %v3145 = vadd.f32 %v3143, %v3144
        %v3146 = vrot.slane %v3145, 1
        %v3147 = vadd.f32 %v3145, %v3146
        %v3148 = vrot.slane %v3076, 4
        %v3149 = vadd.f32 %v3076, %v3148
        %v3150 = vrot.slane %v3149, 2
        %v3151 = vadd.f32 %v3149, %v3150
        %v3152 = vrot.slane %v3151, 1
        %v3153 = vadd.f32 %v3151, %v3152
        %v3154 = vrot.slane %v3077, 4
        %v3155 = vadd.f32 %v3077, %v3154
        %v3156 = vrot.slane %v3155, 2
        %v3157 = vadd.f32 %v3155, %v3156
        %v3158 = vrot.slane %v3157, 1
        %v3159 = vadd.f32 %v3157, %v3158
        %v3160 = vrot.slane %v3078, 4
        %v3161 = vadd.f32 %v3078, %v3160
        %v3162 = vrot.slane %v3161, 2
        %v3163 = vadd.f32 %v3161, %v3162
        %v3164 = vrot.slane %v3163, 1
        %v3165 = vadd.f32 %v3163, %v3164
        %v3166 = vrot.slane %v3079, 4
        %v3167 = vadd.f32 %v3079, %v3166
        %v3168 = vrot.slane %v3167, 2
        %v3169 = vadd.f32 %v3167, %v3168
        %v3170 = vrot.slane %v3169, 1
        %v3171 = vadd.f32 %v3169, %v3170
        %v3172 = vrot.slane %v3080, 4
        %v3173 = vadd.f32 %v3080, %v3172
        %v3174 = vrot.slane %v3173, 2
        %v3175 = vadd.f32 %v3173, %v3174
        %v3176 = vrot.slane %v3175, 1
        %v3177 = vadd.f32 %v3175, %v3176
        %v3178 = vrot.slane %v3081, 4
        %v3179 = vadd.f32 %v3081, %v3178
        %v3180 = vrot.slane %v3179, 2
        %v3181 = vadd.f32 %v3179, %v3180
        %v3182 = vrot.slane %v3181, 1
        %v3183 = vadd.f32 %v3181, %v3182
        %v3184 = vrot.slane %v3082, 4
        %v3185 = vadd.f32 %v3082, %v3184
        %v3186 = vrot.slane %v3185, 2
        %v3187 = vadd.f32 %v3185, %v3186
        %v3188 = vrot.slane %v3187, 1
        %v3189 = vadd.f32 %v3187, %v3188
        %v3190 = vrot.slane %v3083, 4
        %v3191 = vadd.f32 %v3083, %v3190
        %v3192 = vrot.slane %v3191, 2
        %v3193 = vadd.f32 %v3191, %v3192
        %v3194 = vrot.slane %v3193, 1
        %v3195 = vadd.f32 %v3193, %v3194
        %v3196 = vrot.slane %v3084, 4
        %v3197 = vadd.f32 %v3084, %v3196
        %v3198 = vrot.slane %v3197, 2
        %v3199 = vadd.f32 %v3197, %v3198
        %v3200 = vrot.slane %v3199, 1
        %v3201 = vadd.f32 %v3199, %v3200
        %v3202 = vrot.slane %v3085, 4
        %v3203 = vadd.f32 %v3085, %v3202
        %v3204 = vrot.slane %v3203, 2
        %v3205 = vadd.f32 %v3203, %v3204
        %v3206 = vrot.slane %v3205, 1
        %v3207 = vadd.f32 %v3205, %v3206
        %v3208 = vrot.slane %v3086, 4
        %v3209 = vadd.f32 %v3086, %v3208
        %v3210 = vrot.slane %v3209, 2
        %v3211 = vadd.f32 %v3209, %v3210
        %v3212 = vrot.slane %v3211, 1
        %v3213 = vadd.f32 %v3211, %v3212
        %v3214 = vrot.slane %v3087, 4
        %v3215 = vadd.f32 %v3087, %v3214
        %v3216 = vrot.slane %v3215, 2
        %v3217 = vadd.f32 %v3215, %v3216
        %v3218 = vrot.slane %v3217, 1
        %v3219 = vadd.f32 %v3217, %v3218
        %v3220 = vrot.slane %v3088, 4
        %v3221 = vadd.f32 %v3088, %v3220
        %v3222 = vrot.slane %v3221, 2
        %v3223 = vadd.f32 %v3221, %v3222
        %v3224 = vrot.slane %v3223, 1
        %v3225 = vadd.f32 %v3223, %v3224
        %v3226 = vrot.slane %v3089, 4
        %v3227 = vadd.f32 %v3089, %v3226
        %v3228 = vrot.slane %v3227, 2
        %v3229 = vadd.f32 %v3227, %v3228
        %v3230 = vrot.slane %v3229, 1
        %v3231 = vadd.f32 %v3229, %v3230
        %v3232 = vrot.slane %v3090, 4
        %v3233 = vadd.f32 %v3090, %v3232
        %v3234 = vrot.slane %v3233, 2
        %v3235 = vadd.f32 %v3233, %v3234
        %v3236 = vrot.slane %v3235, 1
        %v3237 = vadd.f32 %v3235, %v3236
        %v3238 = vrot.slane %v3091, 4
        %v3239 = vadd.f32 %v3091, %v3238
        %v3240 = vrot.slane %v3239, 2
        %v3241 = vadd.f32 %v3239, %v3240
        %v3242 = vrot.slane %v3241, 1
        %v3243 = vadd.f32 %v3241, %v3242
        %v3244 = vrot.slane %v3092, 4
        %v3245 = vadd.f32 %v3092, %v3244
        %v3246 = vrot.slane %v3245, 2
        %v3247 = vadd.f32 %v3245, %v3246
        %v3248 = vrot.slane %v3247, 1
        %v3249 = vadd.f32 %v3247, %v3248
        %v3250 = vrot.slane %v3093, 4
        %v3251 = vadd.f32 %v3093, %v3250
        %v3252 = vrot.slane %v3251, 2
        %v3253 = vadd.f32 %v3251, %v3252
        %v3254 = vrot.slane %v3253, 1
        %v3255 = vadd.f32 %v3253, %v3254
        %v3256 = vrot.slane %v3094, 4
        %v3257 = vadd.f32 %v3094, %v3256
        %v3258 = vrot.slane %v3257, 2
        %v3259 = vadd.f32 %v3257, %v3258
        %v3260 = vrot.slane %v3259, 1
        %v3261 = vadd.f32 %v3259, %v3260
        %v3262 = vrot.slane %v3095, 4
        %v3263 = vadd.f32 %v3095, %v3262
        %v3264 = vrot.slane %v3263, 2
        %v3265 = vadd.f32 %v3263, %v3264
        %v3266 = vrot.slane %v3265, 1
        %v3267 = vadd.f32 %v3265, %v3266
        %v3268 = vrot.slane %v3096, 4
        %v3269 = vadd.f32 %v3096, %v3268
        %v3270 = vrot.slane %v3269, 2
        %v3271 = vadd.f32 %v3269, %v3270
        %v3272 = vrot.slane %v3271, 1
        %v3273 = vadd.f32 %v3271, %v3272
        %v3274 = vrot.slane %v3097, 4
        %v3275 = vadd.f32 %v3097, %v3274
        %v3276 = vrot.slane %v3275, 2
        %v3277 = vadd.f32 %v3275, %v3276
        %v3278 = vrot.slane %v3277, 1
        %v3279 = vadd.f32 %v3277, %v3278
        %v3280 = vrot.slane %v3098, 4
        %v3281 = vadd.f32 %v3098, %v3280
        %v3282 = vrot.slane %v3281, 2
        %v3283 = vadd.f32 %v3281, %v3282
        %v3284 = vrot.slane %v3283, 1
        %v3285 = vadd.f32 %v3283, %v3284
        %v3286 = vrot.slane %v3099, 4
        %v3287 = vadd.f32 %v3099, %v3286
        %v3288 = vrot.slane %v3287, 2
        %v3289 = vadd.f32 %v3287, %v3288
        %v3290 = vrot.slane %v3289, 1
        %v3291 = vadd.f32 %v3289, %v3290
        %vm3324 = vcmask 1041409
        %v3325 = vsel %vm3324, %v3111, %v3105
        %vm3326 = vcmask 1042434
        %v3327 = vsel %vm3326, %v3117, %v3325
        %vm3328 = vcmask 1043459
        %v3329 = vsel %vm3328, %v3123, %v3327
        %vm3330 = vcmask 1044484
        %v3331 = vsel %vm3330, %v3129, %v3329
        %vm3332 = vcmask 1045509
        %v3333 = vsel %vm3332, %v3135, %v3331
        %vm3334 = vcmask 1046534
        %v3335 = vsel %vm3334, %v3141, %v3333
        %vm3336 = vcmask 1047559
        %v3337 = vsel %vm3336, %v3147, %v3335
        %v3338 = vsel %vm3324, %v3159, %v3153
        %v3339 = vsel %vm3326, %v3165, %v3338
        %v3340 = vsel %vm3328, %v3171, %v3339
        %v3341 = vsel %vm3330, %v3177, %v3340
        %v3342 = vsel %vm3332, %v3183, %v3341
        %v3343 = vsel %vm3334, %v3189, %v3342
        %v3344 = vsel %vm3336, %v3195, %v3343
        %v3345 = vsel %vm3324, %v3207, %v3201
        %v3346 = vsel %vm3326, %v3213, %v3345
        %v3347 = vsel %vm3328, %v3219, %v3346
        %v3348 = vsel %vm3330, %v3225, %v3347
        %v3349 = vsel %vm3332, %v3231, %v3348
        %v3350 = vsel %vm3334, %v3237, %v3349
        %v3351 = vsel %vm3336, %v3243, %v3350
        %v3352 = vsel %vm3324, %v3255, %v3249
        %v3353 = vsel %vm3326, %v3261, %v3352
        %v3354 = vsel %vm3328, %v3267, %v3353
        %v3355 = vsel %vm3330, %v3273, %v3354
        %v3356 = vsel %vm3332, %v3279, %v3355
        %v3357 = vsel %vm3334, %v3285, %v3356
        %v3358 = vsel %vm3336, %v3291, %v3357
        %v3363 = vadd.f32 %v748, %v3337
        %v3364 = vadd.f32 %v749, %v3344
        %v3365 = vadd.f32 %v750, %v3351
        %v3366 = vadd.f32 %v751, %v3358
        %3367 = vadd.xlane.f32.xlu0 %v3363
        %v3368 = vpop.xlane.xlu0 %3367
        %3369 = vadd.xlane.f32.xlu0 %v3364
        %v3370 = vpop.xlane.xlu0 %3369
        %3371 = vadd.xlane.f32.xlu0 %v3365
        %v3372 = vpop.xlane.xlu0 %3371
        %3373 = vadd.xlane.f32.xlu0 %v3366
        %v3374 = vpop.xlane.xlu0 %3373
        %v3375 = vrcp.pop 128.0
        %v3376 = vmul.f32 %v3368, %v3375
        %v3377 = vmul.f32 %v3370, %v3375
        %v3378 = vmul.f32 %v3372, %v3375
        %v3379 = vmul.f32 %v3374, %v3375
        %v3380 = vsub.f32 %v3363, %v3376
        %v3381 = vsub.f32 %v3364, %v3377
        %v3382 = vsub.f32 %v3365, %v3378
        %v3383 = vsub.f32 %v3366, %v3379
        %v3384 = vmul.f32 %v3380, %v3380
        %v3385 = vmul.f32 %v3381, %v3381
        %v3386 = vmul.f32 %v3382, %v3382
        %v3387 = vmul.f32 %v3383, %v3383
        %3388 = vadd.xlane.f32.xlu0 %v3384
        %v3389 = vpop.xlane.xlu0 %3388
        %3390 = vadd.xlane.f32.xlu0 %v3385
        %v3391 = vpop.xlane.xlu0 %3390
        %3392 = vadd.xlane.f32.xlu0 %v3386
        %v3393 = vpop.xlane.xlu0 %3392
        %3394 = vadd.xlane.f32.xlu0 %v3387
        %v3395 = vpop.xlane.xlu0 %3394
        %v3396 = vmul.f32 %v3389, %v3375
        %v3397 = vmul.f32 %v3391, %v3375
        %v3398 = vmul.f32 %v3393, %v3375
        %v3399 = vmul.f32 %v3395, %v3375
        %v3400 = vadd.f32 %v3396, 1e-05
        %v3401 = vadd.f32 %v3397, 1e-05
        %v3402 = vadd.f32 %v3398, 1e-05
        %v3403 = vadd.f32 %v3399, 1e-05
        %v3404 = vrsqrt.pop %v3400
        %v3405 = vrsqrt.pop %v3401
        %v3406 = vrsqrt.pop %v3402
        %v3407 = vrsqrt.pop %v3403
        %v3408 = vmul.f32 %v3380, %v3404
        %v3409 = vmul.f32 %v3381, %v3405
        %v3410 = vmul.f32 %v3382, %v3406
        %v3411 = vmul.f32 %v3383, %v3407
        %v3412 = vlaneseq
        %v3413 = vshrl.u32 %v3412, 7
        %v3414 = vsub.s32 3, %v3413
        %v3415 = vrot.slane %v784, %v3414
        %v3416 = vmul.f32 %v3408, %v3415
        %v3417 = vmul.f32 %v3409, %v3415
        %v3418 = vmul.f32 %v3410, %v3415
        %v3419 = vmul.f32 %v3411, %v3415
        %v3420 = vlaneseq
        %v3421 = vshrl.u32 %v3420, 7
        %v3422 = vsub.s32 4, %v3421
        %v3423 = vrot.slane %v784, %v3422
        %v3424 = vadd.f32 %v3416, %v3423
        %v3425 = vadd.f32 %v3417, %v3423
        %v3426 = vadd.f32 %v3418, %v3423
        %v3427 = vadd.f32 %v3419, %v3423
        %v3428 = vpack.c.bf16 %v3425, %v3424
        %v3429 = vpack.c.bf16 %v3427, %v3426
        %v3430 = vld [vmem:[%s10] sm:$0xff]
        %v3431 = vld [vmem:[%s10 + $0x8] sm:$0xff]
        %v3432 = vld [vmem:[%s10 + $0x10] sm:$0xff]
        %v3433 = vld [vmem:[%s10 + $0x18] sm:$0xff]
        %v3434 = vld [vmem:[%s10 + $0x20] sm:$0xff]
        %v3435 = vld [vmem:[%s10 + $0x28] sm:$0xff]
        %v3436 = vld [vmem:[%s10 + $0x30] sm:$0xff]
        %v3437 = vld [vmem:[%s10 + $0x38] sm:$0xff]
        %v3438 = vld [vmem:[%s10 + $0x40] sm:$0xff]
        %v3439 = vld [vmem:[%s10 + $0x48] sm:$0xff]
        %v3440 = vld [vmem:[%s10 + $0x50] sm:$0xff]
        %v3441 = vld [vmem:[%s10 + $0x58] sm:$0xff]
        %v3442 = vld [vmem:[%s10 + $0x60] sm:$0xff]
        %v3443 = vld [vmem:[%s10 + $0x68] sm:$0xff]
        %v3444 = vld [vmem:[%s10 + $0x70] sm:$0xff]
        %v3445 = vld [vmem:[%s10 + $0x78] sm:$0xff]
        %v3446 = vld [vmem:[%s10 + $0x80] sm:$0xff]
        %v3447 = vld [vmem:[%s10 + $0x88] sm:$0xff]
        %v3448 = vld [vmem:[%s10 + $0x90] sm:$0xff]
        %v3449 = vld [vmem:[%s10 + $0x98] sm:$0xff]
        %v3450 = vld [vmem:[%s10 + $0xa0] sm:$0xff]
        %v3451 = vld [vmem:[%s10 + $0xa8] sm:$0xff]
        %v3452 = vld [vmem:[%s10 + $0xb0] sm:$0xff]
        %v3453 = vld [vmem:[%s10 + $0xb8] sm:$0xff]
        %v3454 = vld [vmem:[%s10 + $0xc0] sm:$0xff]
        %v3455 = vld [vmem:[%s10 + $0xc8] sm:$0xff]
        %v3456 = vld [vmem:[%s10 + $0xd0] sm:$0xff]
        %v3457 = vld [vmem:[%s10 + $0xd8] sm:$0xff]
        %v3458 = vld [vmem:[%s10 + $0xe0] sm:$0xff]
        %v3459 = vld [vmem:[%s10 + $0xe8] sm:$0xff]
        %v3460 = vld [vmem:[%s10 + $0xf0] sm:$0xff]
        %v3461 = vld [vmem:[%s10 + $0xf8] sm:$0xff]
        %v3462 = vld [vmem:[%s13] sm:$0xf]
        %v3464 = vlaneseq
        %v3465 = vshrl.u32 %v3464, 7
        %v3466 = vsub.s32 0, %v3465
        %v3467 = vrot.slane %v3462, %v3466
        %v3468 = vlaneseq
        %v3469 = vshrl.u32 %v3468, 7
        %v3470 = vsub.s32 1, %v3469
        %v3471 = vrot.slane %v3462, %v3470
        %v3472 = vlaneseq
        %v3473 = vshrl.u32 %v3472, 7
        %v3474 = vsub.s32 2, %v3473
        %v3475 = vrot.slane %v3462, %v3474
        %v3476 = vlaneseq
        %v3477 = vshrl.u32 %v3476, 7
        %v3478 = vsub.s32 3, %v3477
        %v3479 = vrot.slane %v3462, %v3478
        %v3516 = vunpack.c.l.b16 %v3430
        %v3517 = vunpack.c.h.b16 %v3430
        %v3518 = vunpack.c.l.b16 %v3431
        %v3519 = vunpack.c.h.b16 %v3431
        %v3520 = vunpack.c.l.b16 %v3432
        %v3521 = vunpack.c.h.b16 %v3432
        %v3522 = vunpack.c.l.b16 %v3433
        %v3523 = vunpack.c.h.b16 %v3433
        %v3524 = vunpack.c.l.b16 %v3434
        %v3525 = vunpack.c.h.b16 %v3434
        %v3526 = vunpack.c.l.b16 %v3435
        %v3527 = vunpack.c.h.b16 %v3435
        %v3528 = vunpack.c.l.b16 %v3436
        %v3529 = vunpack.c.h.b16 %v3436
        %v3530 = vunpack.c.l.b16 %v3437
        %v3531 = vunpack.c.h.b16 %v3437
        %v3532 = vunpack.c.l.b16 %v3438
        %v3533 = vunpack.c.h.b16 %v3438
        %v3534 = vunpack.c.l.b16 %v3439
        %v3535 = vunpack.c.h.b16 %v3439
        %v3536 = vunpack.c.l.b16 %v3440
        %v3537 = vunpack.c.h.b16 %v3440
        %v3538 = vunpack.c.l.b16 %v3441
        %v3539 = vunpack.c.h.b16 %v3441
        %v3540 = vunpack.c.l.b16 %v3442
        %v3541 = vunpack.c.h.b16 %v3442
        %v3542 = vunpack.c.l.b16 %v3443
        %v3543 = vunpack.c.h.b16 %v3443
        %v3544 = vunpack.c.l.b16 %v3444
        %v3545 = vunpack.c.h.b16 %v3444
        %v3546 = vunpack.c.l.b16 %v3445
        %v3547 = vunpack.c.h.b16 %v3445
        %v3548 = vunpack.c.l.b16 %v3446
        %v3549 = vunpack.c.h.b16 %v3446
        %v3550 = vunpack.c.l.b16 %v3447
        %v3551 = vunpack.c.h.b16 %v3447
        %v3552 = vunpack.c.l.b16 %v3448
        %v3553 = vunpack.c.h.b16 %v3448
        %v3554 = vunpack.c.l.b16 %v3449
        %v3555 = vunpack.c.h.b16 %v3449
        %v3556 = vunpack.c.l.b16 %v3450
        %v3557 = vunpack.c.h.b16 %v3450
        %v3558 = vunpack.c.l.b16 %v3451
        %v3559 = vunpack.c.h.b16 %v3451
        %v3560 = vunpack.c.l.b16 %v3452
        %v3561 = vunpack.c.h.b16 %v3452
        %v3562 = vunpack.c.l.b16 %v3453
        %v3563 = vunpack.c.h.b16 %v3453
        %v3564 = vunpack.c.l.b16 %v3454
        %v3565 = vunpack.c.h.b16 %v3454
        %v3566 = vunpack.c.l.b16 %v3455
        %v3567 = vunpack.c.h.b16 %v3455
        %v3568 = vunpack.c.l.b16 %v3456
        %v3569 = vunpack.c.h.b16 %v3456
        %v3570 = vunpack.c.l.b16 %v3457
        %v3571 = vunpack.c.h.b16 %v3457
        %v3572 = vunpack.c.l.b16 %v3458
        %v3573 = vunpack.c.h.b16 %v3458
        %v3574 = vunpack.c.l.b16 %v3459
        %v3575 = vunpack.c.h.b16 %v3459
        %v3576 = vunpack.c.l.b16 %v3460
        %v3577 = vunpack.c.h.b16 %v3460
        %v3578 = vunpack.c.l.b16 %v3461
        %v3579 = vunpack.c.h.b16 %v3461
        %v3580 = vpack.c.b16 %v3520, %v3516
        %v3581 = vpack.c.b16 %v3521, %v3517
        %v3582 = vpack.c.b16 %v3522, %v3518
        %v3583 = vpack.c.b16 %v3523, %v3519
        %v3584 = vpack.c.b16 %v3528, %v3524
        %v3585 = vpack.c.b16 %v3529, %v3525
        %v3586 = vpack.c.b16 %v3530, %v3526
        %v3587 = vpack.c.b16 %v3531, %v3527
        %v3588 = vpack.c.b16 %v3536, %v3532
        %v3589 = vpack.c.b16 %v3537, %v3533
        %v3590 = vpack.c.b16 %v3538, %v3534
        %v3591 = vpack.c.b16 %v3539, %v3535
        %v3592 = vpack.c.b16 %v3544, %v3540
        %v3593 = vpack.c.b16 %v3545, %v3541
        %v3594 = vpack.c.b16 %v3546, %v3542
        %v3595 = vpack.c.b16 %v3547, %v3543
        %v3596 = vpack.c.b16 %v3552, %v3548
        %v3597 = vpack.c.b16 %v3553, %v3549
        %v3598 = vpack.c.b16 %v3554, %v3550
        %v3599 = vpack.c.b16 %v3555, %v3551
        %v3600 = vpack.c.b16 %v3560, %v3556
        %v3601 = vpack.c.b16 %v3561, %v3557
        %v3602 = vpack.c.b16 %v3562, %v3558
        %v3603 = vpack.c.b16 %v3563, %v3559
        %v3604 = vpack.c.b16 %v3568, %v3564
        %v3605 = vpack.c.b16 %v3569, %v3565
        %v3606 = vpack.c.b16 %v3570, %v3566
        %v3607 = vpack.c.b16 %v3571, %v3567
        %v3608 = vpack.c.b16 %v3576, %v3572
        %v3609 = vpack.c.b16 %v3577, %v3573
        %v3610 = vpack.c.b16 %v3578, %v3574
        %v3611 = vpack.c.b16 %v3579, %v3575
        %3644 = vmatprep.subr.bf16.mxu0 %v3581
        %3645 = vmatpush1.bf16.msra.mxu0 %v3580
        %3646 = vmatprep.subr.bf16.mxu0 %v3585
        %3647 = vmatpush1.bf16.msra.mxu0 %v3584
        %3648 = vmatprep.subr.bf16.mxu0 %v3589
        %3649 = vmatpush1.bf16.msra.mxu0 %v3588
        %3650 = vmatprep.subr.bf16.mxu0 %v3593
        %3651 = vmatpush1.bf16.msra.mxu0 %v3592
        %3652 = vmatprep.subr.bf16.mxu0 %v3597
        %3653 = vmatpush1.bf16.msra.mxu0 %v3596
        %3654 = vmatprep.subr.bf16.mxu0 %v3601
        %3655 = vmatpush1.bf16.msra.mxu0 %v3600
        %3656 = vmatprep.subr.bf16.mxu0 %v3605
        %3657 = vmatpush1.bf16.msra.mxu0 %v3604
        %3658 = vmatprep.subr.bf16.mxu0 %v3609
        %3659 = vmatpush1.bf16.msra.mxu0 %v3608
        %3660 = vmatprep.subr.bf16.mxu0 0
        %3661 = vmatpush1.bf16.msra.mxu0 0
        %3662 = vmatprep.subr.bf16.mxu0 0
        %3663 = vmatpush1.bf16.msra.mxu0 0
        %3664 = vmatprep.subr.bf16.mxu0 0
        %3665 = vmatpush1.bf16.msra.mxu0 0
        %3666 = vmatprep.subr.bf16.mxu0 0
        %3667 = vmatpush1.bf16.msra.mxu0 0
        %3668 = vmatprep.subr.bf16.mxu0 0
        %3669 = vmatpush1.bf16.msra.mxu0 0
        %3670 = vmatprep.subr.bf16.mxu0 0
        %3671 = vmatpush1.bf16.msra.mxu0 0
        %3672 = vmatprep.subr.bf16.mxu0 0
        %3673 = vmatpush1.bf16.msra.mxu0 0
        %3674 = vmatprep.subr.bf16.mxu0 0
        %3675 = vmatpush1.bf16.msra.mxu0 0
        %3676 = vmatprep.mubr.bf16.mxu0 0
        %3677 = vmatmul.mubr.bf16.gmra.mrb[0].mxu0 %v3428
        %v3678 = vpop.f32.mrb[0].mxu0
        %v3679 = vadd.f32 %v3467, %v3678
        %v3680 = vpop.f32.mrb[0].mxu0
        %v3681 = vadd.f32 %v3471, %v3680
        %v3682 = vpop.f32.mrb[0].mxu0
        %v3683 = vadd.f32 %v3467, %v3682
        %v3684 = vpop.f32.mrb[0].mxu0
        %v3685 = vadd.f32 %v3471, %v3684
        %3686 = vmatprep.mubr.bf16.mxu0 0
        %3687 = vmatmul.mubr.bf16.gmra.mrb[0].mxu0 %v3429
        %v3688 = vpop.f32.mrb[0].mxu0
        %v3689 = vadd.f32 %v3467, %v3688
        %v3690 = vpop.f32.mrb[0].mxu0
        %v3691 = vadd.f32 %v3471, %v3690
        %v3692 = vpop.f32.mrb[0].mxu0
        %v3693 = vadd.f32 %v3467, %v3692
        %v3694 = vpop.f32.mrb[0].mxu0
        %v3695 = vadd.f32 %v3471, %v3694
        %3696 = vdwg.mxu0
        %3697 = vmatprep.subr.bf16.mxu0 %v3583
        %3698 = vmatpush1.bf16.msra.mxu0 %v3582
        %3699 = vmatprep.subr.bf16.mxu0 %v3587
        %3700 = vmatpush1.bf16.msra.mxu0 %v3586
        %3701 = vmatprep.subr.bf16.mxu0 %v3591
        %3702 = vmatpush1.bf16.msra.mxu0 %v3590
        %3703 = vmatprep.subr.bf16.mxu0 %v3595
        %3704 = vmatpush1.bf16.msra.mxu0 %v3594
        %3705 = vmatprep.subr.bf16.mxu0 %v3599
        %3706 = vmatpush1.bf16.msra.mxu0 %v3598
        %3707 = vmatprep.subr.bf16.mxu0 %v3603
        %3708 = vmatpush1.bf16.msra.mxu0 %v3602
        %3709 = vmatprep.subr.bf16.mxu0 %v3607
        %3710 = vmatpush1.bf16.msra.mxu0 %v3606
        %3711 = vmatprep.subr.bf16.mxu0 %v3611
        %3712 = vmatpush1.bf16.msra.mxu0 %v3610
        %3713 = vmatprep.subr.bf16.mxu0 0
        %3714 = vmatpush1.bf16.msra.mxu0 0
        %3715 = vmatprep.subr.bf16.mxu0 0
        %3716 = vmatpush1.bf16.msra.mxu0 0
        %3717 = vmatprep.subr.bf16.mxu0 0
        %3718 = vmatpush1.bf16.msra.mxu0 0
        %3719 = vmatprep.subr.bf16.mxu0 0
        %3720 = vmatpush1.bf16.msra.mxu0 0
        %3721 = vmatprep.subr.bf16.mxu0 0
        %3722 = vmatpush1.bf16.msra.mxu0 0
        %3723 = vmatprep.subr.bf16.mxu0 0
        %3724 = vmatpush1.bf16.msra.mxu0 0
        %3725 = vmatprep.subr.bf16.mxu0 0
        %3726 = vmatpush1.bf16.msra.mxu0 0
        %3727 = vmatprep.subr.bf16.mxu0 0
        %3728 = vmatpush1.bf16.msra.mxu0 0
        %3729 = vmatprep.mubr.bf16.mxu0 0
        %3730 = vmatmul.mubr.bf16.gmra.mrb[0].mxu0 %v3428
        %v3731 = vpop.f32.mrb[0].mxu0
        %v3732 = vadd.f32 %v3475, %v3731
        %v3733 = vpop.f32.mrb[0].mxu0
        %v3734 = vadd.f32 %v3479, %v3733
        %v3735 = vpop.f32.mrb[0].mxu0
        %v3736 = vadd.f32 %v3475, %v3735
        %v3737 = vpop.f32.mrb[0].mxu0
        %v3738 = vadd.f32 %v3479, %v3737
        %3739 = vmatprep.mubr.bf16.mxu0 0
        %3740 = vmatmul.mubr.bf16.gmra.mrb[0].mxu0 %v3429
        %v3741 = vpop.f32.mrb[0].mxu0
        %v3742 = vadd.f32 %v3475, %v3741
        %v3743 = vpop.f32.mrb[0].mxu0
        %v3744 = vadd.f32 %v3479, %v3743
        %v3745 = vpop.f32.mrb[0].mxu0
        %v3746 = vadd.f32 %v3475, %v3745
        %v3747 = vpop.f32.mrb[0].mxu0
        %v3748 = vadd.f32 %v3479, %v3747
        %3749 = vdwg.mxu0
        %v3750 = vmax.f32 %v3679, 0.0
        %v3751 = vmax.f32 %v3681, 0.0
        %v3752 = vmax.f32 %v3732, 0.0
        %v3753 = vmax.f32 %v3734, 0.0
        %v3754 = vmax.f32 %v3683, 0.0
        %v3755 = vmax.f32 %v3685, 0.0
        %v3756 = vmax.f32 %v3736, 0.0
        %v3757 = vmax.f32 %v3738, 0.0
        %v3758 = vmax.f32 %v3689, 0.0
        %v3759 = vmax.f32 %v3691, 0.0
        %v3760 = vmax.f32 %v3742, 0.0
        %v3761 = vmax.f32 %v3744, 0.0
        %v3762 = vmax.f32 %v3693, 0.0
        %v3763 = vmax.f32 %v3695, 0.0
        %v3764 = vmax.f32 %v3746, 0.0
        %v3765 = vmax.f32 %v3748, 0.0
        %v3766 = vpack.c.bf16 %v3754, %v3750
        %v3767 = vpack.c.bf16 %v3755, %v3751
        %v3768 = vpack.c.bf16 %v3756, %v3752
        %v3769 = vpack.c.bf16 %v3757, %v3753
        %v3770 = vpack.c.bf16 %v3762, %v3758
        %v3771 = vpack.c.bf16 %v3763, %v3759
        %v3772 = vpack.c.bf16 %v3764, %v3760
        %v3773 = vpack.c.bf16 %v3765, %v3761
        %v3774 = vld [vmem:[#allocation14] sm:$0xf]
        %v3775 = vld [vmem:[#allocation14 + $0x4] sm:$0xf]
        %v3776 = vld [vmem:[#allocation14 + $0x8] sm:$0xf]
        %v3777 = vld [vmem:[#allocation14 + $0xc] sm:$0xf]
        %v3778 = vld [vmem:[#allocation14 + $0x10] sm:$0xf]
        %v3779 = vld [vmem:[#allocation14 + $0x14] sm:$0xf]
        %v3780 = vld [vmem:[#allocation14 + $0x18] sm:$0xf]
        %v3781 = vld [vmem:[#allocation14 + $0x1c] sm:$0xf]
        %v3782 = vld [vmem:[#allocation14 + $0x20] sm:$0xf]
        %v3783 = vld [vmem:[#allocation14 + $0x24] sm:$0xf]
        %v3784 = vld [vmem:[#allocation14 + $0x28] sm:$0xf]
        %v3785 = vld [vmem:[#allocation14 + $0x2c] sm:$0xf]
        %v3786 = vld [vmem:[#allocation14 + $0x30] sm:$0xf]
        %v3787 = vld [vmem:[#allocation14 + $0x34] sm:$0xf]
        %v3788 = vld [vmem:[#allocation14 + $0x38] sm:$0xf]
        %v3789 = vld [vmem:[#allocation14 + $0x3c] sm:$0xf]
        %v3790 = vld [vmem:[#allocation14 + $0x40] sm:$0xf]
        %v3791 = vld [vmem:[#allocation14 + $0x44] sm:$0xf]
        %v3792 = vld [vmem:[#allocation14 + $0x48] sm:$0xf]
        %v3793 = vld [vmem:[#allocation14 + $0x4c] sm:$0xf]
        %v3794 = vld [vmem:[#allocation14 + $0x50] sm:$0xf]
        %v3795 = vld [vmem:[#allocation14 + $0x54] sm:$0xf]
        %v3796 = vld [vmem:[#allocation14 + $0x58] sm:$0xf]
        %v3797 = vld [vmem:[#allocation14 + $0x5c] sm:$0xf]
        %v3798 = vld [vmem:[#allocation14 + $0x60] sm:$0xf]
        %v3799 = vld [vmem:[#allocation14 + $0x64] sm:$0xf]
        %v3800 = vld [vmem:[#allocation14 + $0x68] sm:$0xf]
        %v3801 = vld [vmem:[#allocation14 + $0x6c] sm:$0xf]
        %v3802 = vld [vmem:[#allocation14 + $0x70] sm:$0xf]
        %v3803 = vld [vmem:[#allocation14 + $0x74] sm:$0xf]
        %v3804 = vld [vmem:[#allocation14 + $0x78] sm:$0xf]
        %v3805 = vld [vmem:[#allocation14 + $0x7c] sm:$0xf]
        %v3806 = vld [vmem:[#allocation14 + $0x80] sm:$0xf]
        %v3807 = vld [vmem:[#allocation14 + $0x84] sm:$0xf]
        %v3808 = vld [vmem:[#allocation14 + $0x88] sm:$0xf]
        %v3809 = vld [vmem:[#allocation14 + $0x8c] sm:$0xf]
        %v3810 = vld [vmem:[#allocation14 + $0x90] sm:$0xf]
        %v3811 = vld [vmem:[#allocation14 + $0x94] sm:$0xf]
        %v3812 = vld [vmem:[#allocation14 + $0x98] sm:$0xf]
        %v3813 = vld [vmem:[#allocation14 + $0x9c] sm:$0xf]
        %v3814 = vld [vmem:[#allocation14 + $0xa0] sm:$0xf]
        %v3815 = vld [vmem:[#allocation14 + $0xa4] sm:$0xf]
        %v3816 = vld [vmem:[#allocation14 + $0xa8] sm:$0xf]
        %v3817 = vld [vmem:[#allocation14 + $0xac] sm:$0xf]
        %v3818 = vld [vmem:[#allocation14 + $0xb0] sm:$0xf]
        %v3819 = vld [vmem:[#allocation14 + $0xb4] sm:$0xf]
        %v3820 = vld [vmem:[#allocation14 + $0xb8] sm:$0xf]
        %v3821 = vld [vmem:[#allocation14 + $0xbc] sm:$0xf]
        %v3822 = vld [vmem:[#allocation14 + $0xc0] sm:$0xf]
        %v3823 = vld [vmem:[#allocation14 + $0xc4] sm:$0xf]
        %v3824 = vld [vmem:[#allocation14 + $0xc8] sm:$0xf]
        %v3825 = vld [vmem:[#allocation14 + $0xcc] sm:$0xf]
        %v3826 = vld [vmem:[#allocation14 + $0xd0] sm:$0xf]
        %v3827 = vld [vmem:[#allocation14 + $0xd4] sm:$0xf]
        %v3828 = vld [vmem:[#allocation14 + $0xd8] sm:$0xf]
        %v3829 = vld [vmem:[#allocation14 + $0xdc] sm:$0xf]
        %v3830 = vld [vmem:[#allocation14 + $0xe0] sm:$0xf]
        %v3831 = vld [vmem:[#allocation14 + $0xe4] sm:$0xf]
        %v3832 = vld [vmem:[#allocation14 + $0xe8] sm:$0xf]
        %v3833 = vld [vmem:[#allocation14 + $0xec] sm:$0xf]
        %v3834 = vld [vmem:[#allocation14 + $0xf0] sm:$0xf]
        %v3835 = vld [vmem:[#allocation14 + $0xf4] sm:$0xf]
        %v3836 = vld [vmem:[#allocation14 + $0xf8] sm:$0xf]
        %v3837 = vld [vmem:[#allocation14 + $0xfc] sm:$0xf]
        %v3838 = vlaneseq
        %v3839 = vshrl.u32 %v3838, 7
        %v3840 = vsub.s32 5, %v3839
        %v3841 = vrot.slane %v784, %v3840
        %v3906 = vunpack.c.l.b16 %v3774
        %v3907 = vunpack.c.l.b16 %v3775
        %v3908 = vunpack.c.l.b16 %v3776
        %v3909 = vunpack.c.l.b16 %v3777
        %v3910 = vunpack.c.l.b16 %v3778
        %v3911 = vunpack.c.l.b16 %v3779
        %v3912 = vunpack.c.l.b16 %v3780
        %v3913 = vunpack.c.l.b16 %v3781
        %v3914 = vunpack.c.l.b16 %v3782
        %v3915 = vunpack.c.l.b16 %v3783
        %v3916 = vunpack.c.l.b16 %v3784
        %v3917 = vunpack.c.l.b16 %v3785
        %v3918 = vunpack.c.l.b16 %v3786
        %v3919 = vunpack.c.l.b16 %v3787
        %v3920 = vunpack.c.l.b16 %v3788
        %v3921 = vunpack.c.l.b16 %v3789
        %v3922 = vunpack.c.l.b16 %v3790
        %v3923 = vunpack.c.l.b16 %v3791
        %v3924 = vunpack.c.l.b16 %v3792
        %v3925 = vunpack.c.l.b16 %v3793
        %v3926 = vunpack.c.l.b16 %v3794
        %v3927 = vunpack.c.l.b16 %v3795
        %v3928 = vunpack.c.l.b16 %v3796
        %v3929 = vunpack.c.l.b16 %v3797
        %v3930 = vunpack.c.l.b16 %v3798
        %v3931 = vunpack.c.l.b16 %v3799
        %v3932 = vunpack.c.l.b16 %v3800
        %v3933 = vunpack.c.l.b16 %v3801
        %v3934 = vunpack.c.l.b16 %v3802
        %v3935 = vunpack.c.l.b16 %v3803
        %v3936 = vunpack.c.l.b16 %v3804
        %v3937 = vunpack.c.l.b16 %v3805
        %v3938 = vunpack.c.l.b16 %v3806
        %v3939 = vunpack.c.l.b16 %v3807
        %v3940 = vunpack.c.l.b16 %v3808
        %v3941 = vunpack.c.l.b16 %v3809
        %v3942 = vunpack.c.l.b16 %v3810
        %v3943 = vunpack.c.l.b16 %v3811
        %v3944 = vunpack.c.l.b16 %v3812
        %v3945 = vunpack.c.l.b16 %v3813
        %v3946 = vunpack.c.l.b16 %v3814
        %v3947 = vunpack.c.l.b16 %v3815
        %v3948 = vunpack.c.l.b16 %v3816
        %v3949 = vunpack.c.l.b16 %v3817
        %v3950 = vunpack.c.l.b16 %v3818
        %v3951 = vunpack.c.l.b16 %v3819
        %v3952 = vunpack.c.l.b16 %v3820
        %v3953 = vunpack.c.l.b16 %v3821
        %v3954 = vunpack.c.l.b16 %v3822
        %v3955 = vunpack.c.l.b16 %v3823
        %v3956 = vunpack.c.l.b16 %v3824
        %v3957 = vunpack.c.l.b16 %v3825
        %v3958 = vunpack.c.l.b16 %v3826
        %v3959 = vunpack.c.l.b16 %v3827
        %v3960 = vunpack.c.l.b16 %v3828
        %v3961 = vunpack.c.l.b16 %v3829
        %v3962 = vunpack.c.l.b16 %v3830
        %v3963 = vunpack.c.l.b16 %v3831
        %v3964 = vunpack.c.l.b16 %v3832
        %v3965 = vunpack.c.l.b16 %v3833
        %v3966 = vunpack.c.l.b16 %v3834
        %v3967 = vunpack.c.l.b16 %v3835
        %v3968 = vunpack.c.l.b16 %v3836
        %v3969 = vunpack.c.l.b16 %v3837
        %v3970 = vpack.c.b16 %v3907, %v3906
        %v3971 = vpack.c.b16 %v3909, %v3908
        %v3972 = vpack.c.b16 %v3911, %v3910
        %v3973 = vpack.c.b16 %v3913, %v3912
        %v3974 = vpack.c.b16 %v3915, %v3914
        %v3975 = vpack.c.b16 %v3917, %v3916
        %v3976 = vpack.c.b16 %v3919, %v3918
        %v3977 = vpack.c.b16 %v3921, %v3920
        %v3978 = vpack.c.b16 %v3923, %v3922
        %v3979 = vpack.c.b16 %v3925, %v3924
        %v3980 = vpack.c.b16 %v3927, %v3926
        %v3981 = vpack.c.b16 %v3929, %v3928
        %v3982 = vpack.c.b16 %v3931, %v3930
        %v3983 = vpack.c.b16 %v3933, %v3932
        %v3984 = vpack.c.b16 %v3935, %v3934
        %v3985 = vpack.c.b16 %v3937, %v3936
        %v3986 = vpack.c.b16 %v3939, %v3938
        %v3987 = vpack.c.b16 %v3941, %v3940
        %v3988 = vpack.c.b16 %v3943, %v3942
        %v3989 = vpack.c.b16 %v3945, %v3944
        %v3990 = vpack.c.b16 %v3947, %v3946
        %v3991 = vpack.c.b16 %v3949, %v3948
        %v3992 = vpack.c.b16 %v3951, %v3950
        %v3993 = vpack.c.b16 %v3953, %v3952
        %v3994 = vpack.c.b16 %v3955, %v3954
        %v3995 = vpack.c.b16 %v3957, %v3956
        %v3996 = vpack.c.b16 %v3959, %v3958
        %v3997 = vpack.c.b16 %v3961, %v3960
        %v3998 = vpack.c.b16 %v3963, %v3962
        %v3999 = vpack.c.b16 %v3965, %v3964
        %v4000 = vpack.c.b16 %v3967, %v3966
        %v4001 = vpack.c.b16 %v3969, %v3968
        %4034 = vmatprep.subr.bf16.mxu0 0
        %4035 = vmatpush1.bf16.msra.mxu0 %v3970
        %4036 = vmatprep.subr.bf16.mxu0 0
        %4037 = vmatpush1.bf16.msra.mxu0 %v3971
        %4038 = vmatprep.subr.bf16.mxu0 0
        %4039 = vmatpush1.bf16.msra.mxu0 %v3972
        %4040 = vmatprep.subr.bf16.mxu0 0
        %4041 = vmatpush1.bf16.msra.mxu0 %v3973
        %4042 = vmatprep.subr.bf16.mxu0 0
        %4043 = vmatpush1.bf16.msra.mxu0 %v3974
        %4044 = vmatprep.subr.bf16.mxu0 0
        %4045 = vmatpush1.bf16.msra.mxu0 %v3975
        %4046 = vmatprep.subr.bf16.mxu0 0
        %4047 = vmatpush1.bf16.msra.mxu0 %v3976
        %4048 = vmatprep.subr.bf16.mxu0 0
        %4049 = vmatpush1.bf16.msra.mxu0 %v3977
        %4050 = vmatprep.subr.bf16.mxu0 0
        %4051 = vmatpush1.bf16.msra.mxu0 %v3978
        %4052 = vmatprep.subr.bf16.mxu0 0
        %4053 = vmatpush1.bf16.msra.mxu0 %v3979
        %4054 = vmatprep.subr.bf16.mxu0 0
        %4055 = vmatpush1.bf16.msra.mxu0 %v3980
        %4056 = vmatprep.subr.bf16.mxu0 0
        %4057 = vmatpush1.bf16.msra.mxu0 %v3981
        %4058 = vmatprep.subr.bf16.mxu0 0
        %4059 = vmatpush1.bf16.msra.mxu0 %v3982
        %4060 = vmatprep.subr.bf16.mxu0 0
        %4061 = vmatpush1.bf16.msra.mxu0 %v3983
        %4062 = vmatprep.subr.bf16.mxu0 0
        %4063 = vmatpush1.bf16.msra.mxu0 %v3984
        %4064 = vmatprep.subr.bf16.mxu0 0
        %4065 = vmatpush1.bf16.msra.mxu0 %v3985
        %4066 = vmatprep.mubr.bf16.mxu0 %v3767
        %4067 = vmatmul.mubr.bf16.gmra.mrb[0].mxu0 %v3766
        %v4068 = vpop.f32.mrb[0].mxu0
        %v4069 = vadd.f32 %v3841, %v4068
        %v4070 = vpop.f32.mrb[0].mxu0
        %v4071 = vpop.f32.mrb[0].mxu0
        %v4072 = vadd.f32 %v3841, %v4071
        %v4073 = vpop.f32.mrb[0].mxu0
        %4074 = vmatprep.mubr.bf16.mxu0 %v3771
        %4075 = vmatmul.mubr.bf16.gmra.mrb[0].mxu0 %v3770
        %v4076 = vpop.f32.mrb[0].mxu0
        %v4077 = vadd.f32 %v3841, %v4076
        %v4078 = vpop.f32.mrb[0].mxu0
        %v4079 = vpop.f32.mrb[0].mxu0
        %v4080 = vadd.f32 %v3841, %v4079
        %v4081 = vpop.f32.mrb[0].mxu0
        %4082 = vdwg.mxu0
        %4083 = vmatprep.subr.bf16.mxu0 0
        %4084 = vmatpush1.bf16.msra.mxu0 %v3986
        %4085 = vmatprep.subr.bf16.mxu0 0
        %4086 = vmatpush1.bf16.msra.mxu0 %v3987
        %4087 = vmatprep.subr.bf16.mxu0 0
        %4088 = vmatpush1.bf16.msra.mxu0 %v3988
        %4089 = vmatprep.subr.bf16.mxu0 0
        %4090 = vmatpush1.bf16.msra.mxu0 %v3989
        %4091 = vmatprep.subr.bf16.mxu0 0
        %4092 = vmatpush1.bf16.msra.mxu0 %v3990
        %4093 = vmatprep.subr.bf16.mxu0 0
        %4094 = vmatpush1.bf16.msra.mxu0 %v3991
        %4095 = vmatprep.subr.bf16.mxu0 0
        %4096 = vmatpush1.bf16.msra.mxu0 %v3992
        %4097 = vmatprep.subr.bf16.mxu0 0
        %4098 = vmatpush1.bf16.msra.mxu0 %v3993
        %4099 = vmatprep.subr.bf16.mxu0 0
        %4100 = vmatpush1.bf16.msra.mxu0 %v3994
        %4101 = vmatprep.subr.bf16.mxu0 0
        %4102 = vmatpush1.bf16.msra.mxu0 %v3995
        %4103 = vmatprep.subr.bf16.mxu0 0
        %4104 = vmatpush1.bf16.msra.mxu0 %v3996
        %4105 = vmatprep.subr.bf16.mxu0 0
        %4106 = vmatpush1.bf16.msra.mxu0 %v3997
        %4107 = vmatprep.subr.bf16.mxu0 0
        %4108 = vmatpush1.bf16.msra.mxu0 %v3998
        %4109 = vmatprep.subr.bf16.mxu0 0
        %4110 = vmatpush1.bf16.msra.mxu0 %v3999
        %4111 = vmatprep.subr.bf16.mxu0 0
        %4112 = vmatpush1.bf16.msra.mxu0 %v4000
        %4113 = vmatprep.subr.bf16.mxu0 0
        %4114 = vmatpush1.bf16.msra.mxu0 %v4001
        %4115 = vmatprep.mubr.bf16.mxu0 %v3769
        %4116 = vmatmul.mubr.bf16.gmra.mrb[0].mxu0 %v3768
        %v4117 = vpop.f32.mrb[0].mxu0
        %v4118 = vadd.f32 %v4069, %v4117
        %v4119 = vpop.f32.mrb[0].mxu0
        %v4120 = vpop.f32.mrb[0].mxu0
        %v4121 = vadd.f32 %v4072, %v4120
        %v4122 = vpop.f32.mrb[0].mxu0
        %4123 = vmatprep.mubr.bf16.mxu0 %v3773
        %4124 = vmatmul.mubr.bf16.gmra.mrb[0].mxu0 %v3772
        %v4125 = vpop.f32.mrb[0].mxu0
        %v4126 = vadd.f32 %v4077, %v4125
        %v4127 = vpop.f32.mrb[0].mxu0
        %v4128 = vpop.f32.mrb[0].mxu0
        %v4129 = vadd.f32 %v4080, %v4128
        %v4130 = vpop.f32.mrb[0].mxu0
        %4131 = vdwg.mxu0
        %v4132 = vadd.f32 %v3424, %v4118
        %v4133 = vadd.f32 %v3425, %v4121
        %v4134 = vadd.f32 %v3426, %v4126
        %v4135 = vadd.f32 %v3427, %v4129
        %4136 = vadd.xlane.f32.xlu0 %v4132
        %v4137 = vpop.xlane.xlu0 %4136
        %4138 = vadd.xlane.f32.xlu0 %v4133
        %v4139 = vpop.xlane.xlu0 %4138
        %4140 = vadd.xlane.f32.xlu0 %v4134
        %v4141 = vpop.xlane.xlu0 %4140
        %4142 = vadd.xlane.f32.xlu0 %v4135
        %v4143 = vpop.xlane.xlu0 %4142
        %v4144 = vmul.f32 %v4137, %v3375
        %v4145 = vmul.f32 %v4139, %v3375
        %v4146 = vmul.f32 %v4141, %v3375
        %v4147 = vmul.f32 %v4143, %v3375
        %v4148 = vsub.f32 %v4132, %v4144
        %v4149 = vsub.f32 %v4133, %v4145
        %v4150 = vsub.f32 %v4134, %v4146
        %v4151 = vsub.f32 %v4135, %v4147
        %v4152 = vmul.f32 %v4148, %v4148
        %v4153 = vmul.f32 %v4149, %v4149
        %v4154 = vmul.f32 %v4150, %v4150
        %v4155 = vmul.f32 %v4151, %v4151
        %4156 = vadd.xlane.f32.xlu0 %v4152
        %v4157 = vpop.xlane.xlu0 %4156
        %4158 = vadd.xlane.f32.xlu0 %v4153
        %v4159 = vpop.xlane.xlu0 %4158
        %4160 = vadd.xlane.f32.xlu0 %v4154
        %v4161 = vpop.xlane.xlu0 %4160
        %4162 = vadd.xlane.f32.xlu0 %v4155
        %v4163 = vpop.xlane.xlu0 %4162
        %v4164 = vmul.f32 %v4157, %v3375
        %v4165 = vmul.f32 %v4159, %v3375
        %v4166 = vmul.f32 %v4161, %v3375
        %v4167 = vmul.f32 %v4163, %v3375
        %v4168 = vadd.f32 %v4164, 1e-05
        %v4169 = vadd.f32 %v4165, 1e-05
        %v4170 = vadd.f32 %v4166, 1e-05
        %v4171 = vadd.f32 %v4167, 1e-05
        %v4172 = vrsqrt.pop %v4168
        %v4173 = vrsqrt.pop %v4169
        %v4174 = vrsqrt.pop %v4170
        %v4175 = vrsqrt.pop %v4171
        %v4176 = vmul.f32 %v4148, %v4172
        %v4177 = vmul.f32 %v4149, %v4173
        %v4178 = vmul.f32 %v4150, %v4174
        %v4179 = vmul.f32 %v4151, %v4175
        %v4180 = vlaneseq
        %v4181 = vshrl.u32 %v4180, 7
        %v4182 = vsub.s32 6, %v4181
        %v4183 = vrot.slane %v784, %v4182
        %v4184 = vmul.f32 %v4176, %v4183
        %v4185 = vmul.f32 %v4177, %v4183
        %v4186 = vmul.f32 %v4178, %v4183
        %v4187 = vmul.f32 %v4179, %v4183
        %v4188 = vlaneseq
        %v4189 = vshrl.u32 %v4188, 7
        %v4190 = vsub.s32 7, %v4189
        %v4191 = vrot.slane %v784, %v4190
        %v4192 = vadd.f32 %v4184, %v4191
        %v4193 = vadd.f32 %v4185, %v4191
        %v4194 = vadd.f32 %v4186, %v4191
        %v4195 = vadd.f32 %v4187, %v4191
        %v4196 = vld [vmem:[%s738] sm:$0xff]
        %v4197 = vld [vmem:[%s738 + $0x8] sm:$0xff]
        %v4198 = vld [vmem:[%s738 + $0x10] sm:$0xff]
        %v4199 = vld [vmem:[%s738 + $0x18] sm:$0xff]
        %4201 = vset.pattern.permute.xlu0 0
        %4202 = vperm.xlu0 %4201, %v4196
        %v4203 = vpop.permute.xlu0 %4202
        %4206 = vset.pattern.permute.xlu0 0
        %4207 = vperm.xlu0 %4206, %v4197
        %v4208 = vpop.permute.xlu0 %4207
        %4211 = vset.pattern.permute.xlu0 0
        %4212 = vperm.xlu0 %4211, %v4198
        %v4213 = vpop.permute.xlu0 %4212
        %4216 = vset.pattern.permute.xlu0 0
        %4217 = vperm.xlu0 %4216, %v4199
        %v4218 = vpop.permute.xlu0 %4217
        %v4220 = vmul.f32 %v4192, %v4203
        %v4221 = vmul.f32 %v4193, %v4208
        %v4222 = vmul.f32 %v4194, %v4213
        %v4223 = vmul.f32 %v4195, %v4218
        %4224 = vst [vmem:[%s708] sm:$0xff] %v4220
        %4225 = vst [vmem:[%s708 + $0x8] sm:$0xff] %v4221
        %4226 = vst [vmem:[%s708 + $0x10] sm:$0xff] %v4222
        %4227 = vst [vmem:[%s708 + $0x18] sm:$0xff] %v4223
        %s4228 = sand.u32 %s386, 1
        %s4229 = scalar_lea.sflag [#allocation4], %s4228
        %s4230 = sand.u32 %s386, 1
        %s4231 = smul.addr %s4230, 32
        %s4232 = scalar_lea.vmem [#allocation16], %s4231
        // Predicated region
        $region109: #{tpu_custom_call.1} parent=75 // pred_check
          %p4233 = pneg %p396
        $region110: #{tpu_custom_call.1} parent=75 // pred_check_branch
          %4235 = sbr.rel (%p4233) target = $region112
        $region111: #{tpu_custom_call.1} parent=75 // pred_region
          %s4236 = smul.u32 4, %s42
          %s4238 = ssub.s32 512, 512
          %4239 = vsyncadd %s4229, %s4238
          %s4240 = smul.addr %s41, 4
          %s4241 = sadd.s32 %s4236, %s4240
          %s4242 = smul.addr %s4241, 128
          %s4243 = scalar_lea.hbm %s14, %s4242
          %s4244 = sshll.u32 %s4232, 4
          %s4245 = int_to_ptr.vmem [resolvable:$true] %s4244
          %4250 = dma.vmem_to_hbm [thread:$0]  %s4245, 512, %s4243, %s4229, 128, 128, 8
        $region112: #{tpu_custom_call.1} parent=75 // pred_fallthru
          _
      $region76: #{tpu_custom_call.1} parent=5 // pred_fallthru
        _
      %p4251 = scmp.le.s32.totalorder 2, %s32
      // Predicated region
      $region113: #{tpu_custom_call.1} parent=5 // pred_check
        %p4252 = pneg %p4251
      $region114: #{tpu_custom_call.1} parent=5 // pred_check_branch
        %4254 = sbr.rel (%p4252) target = $region116
      $region115: #{tpu_custom_call.1} parent=5 // pred_region
        %s4255 = ssub.s32 %s32, 2
        // Predicated region
        $region117: #{tpu_custom_call.1} parent=115 // pred_check
          %p4256 = pneg %p402
        $region118: #{tpu_custom_call.1} parent=115 // pred_check_branch
          %4258 = sbr.rel (%p4256) target = $region120
        $region119: #{tpu_custom_call.1} parent=115 // pred_region
          %s4259 = sand.u32 %s387, 1
          %s4260 = scalar_lea.sflag [#allocation4], %s4259
          %s4261 = sand.u32 %s387, 1
          %s4262 = smul.addr %s4261, 32
          %s4263 = scalar_lea.vmem [#allocation16], %s4262
          %4264 = dma.done %s4260, 512
        $region120: #{tpu_custom_call.1} parent=115 // pred_fallthru
          _
      $region116: #{tpu_custom_call.1} parent=5 // pred_fallthru
        _
    $region6: #{tpu_custom_call.1} parent=1 // loop_footer
      %s36 = sadd.s32 1, %s32
    $region7: #{tpu_custom_call.1} parent=1 // loop_footer_branch
      %31 = sbr.rel target = $region3
    $region8: #{tpu_custom_call.1} parent=1 // loop_exit
      _
    %4265 = vsyncpa [#allocation3], 1
    %s4266 = scalar_lea.sflag [#allocation3], 1
    %4267 = vsyncpa %s4266, 1
    %4268 = vsyncpa [#allocation6], 1
    %s4269 = scalar_lea.sflag [#allocation6], 1
    %4270 = vsyncpa %s4269, 1
    %4271 = vsyncpa [#allocation9], 1
    %4272 = vsyncpa [#allocation12], 1
    %4273 = vsyncpa [#allocation15], 1
    %4274 = vsyncpa [#allocation4], 1
    %s4275 = scalar_lea.sflag [#allocation4], 1
    %4276 = vsyncpa %s4275, 1

</llo_original>
